<compile_context>
chip_gen: v5e
topology: v5e:2x2
jax: 0.10.0
libtpu: 0.0.40
codegen_flags: <defaults>
</compile_context>

<pallas_src>
import functools

import jax
import jax.numpy as jnp
from jax.experimental import pallas as pl
from jax.experimental.pallas import tpu as pltpu


# ----------------------------------------------------------------------------
# Kernel
# ----------------------------------------------------------------------------
def _matmul_kernel(a_ref, b_ref, o_ref):
    """One (tm, tn) output tile; grid axis 2 (innermost, "arbitrary") walks K.

    The output BlockSpec maps to the same (i, j) block for every k, so o_ref is
    resident in VMEM across the whole K reduction and doubles as the f32
    accumulator.  NOTE: this init/accumulate pattern relies on the reduction
    axis being the innermost grid axis -- do not reorder the grid.
    """

    @pl.when(pl.program_id(2) == 0)
    def _():
        o_ref[...] = jnp.zeros_like(o_ref)

    # Operands may be f32 or bf16; accumulation is always f32 on the MXU.
    o_ref[...] += jnp.dot(
        a_ref[...], b_ref[...], preferred_element_type=jnp.float32
    )


@functools.partial(
    jax.jit, static_argnames=("tm", "tn", "tk", "vmem_limit", "flops")
)
def _pallas_matmul(a, b, *, tm, tn, tk, vmem_limit, flops):
    N, K = a.shape
    K2, M = b.shape
    assert K == K2
    # Shapes are prepared by the caller; assert instead of silently truncating.
    assert N % tm == 0 and M % tn == 0 and K % tk == 0
    grid = (N // tm, M // tn, K // tk)
    itemsize = jnp.dtype(a.dtype).itemsize
    # A is streamed once per N-column-of-B-blocks (grid[1] times), B once per
    # row-of-A-blocks (grid[0] times); output written once in f32.
    bytes_accessed = itemsize * (N * K * grid[1] + K * M * grid[0]) + 4 * N * M
    return pl.pallas_call(
        _matmul_kernel,
        out_shape=jax.ShapeDtypeStruct((N, M), jnp.float32),
        grid_spec=pltpu.PrefetchScalarGridSpec(
            num_scalar_prefetch=0,
            grid=grid,
            in_specs=[
                pl.BlockSpec((tm, tk), lambda i, j, k: (i, k)),
                pl.BlockSpec((tk, tn), lambda i, j, k: (k, j)),
            ],
            out_specs=pl.BlockSpec((tm, tn), lambda i, j, k: (i, j)),
        ),
        compiler_params=pltpu.CompilerParams(
            # i/j parallel => megacore / dual-TC (v7x) sharding; K is the reduction.
            dimension_semantics=("parallel", "parallel", "arbitrary"),
            vmem_limit_bytes=vmem_limit,
        ),
        cost_estimate=pl.CostEstimate(
            flops=flops, transcendentals=0, bytes_accessed=bytes_accessed
        ),
    )(a, b)


# ----------------------------------------------------------------------------
# Tile planning
# ----------------------------------------------------------------------------
def _round_up(x, m):
    return (x + m - 1) // m * m


def _largest_aligned_divisor(dim, align, upper):
    """Largest multiple of `align` that divides `dim` and is <= `upper` (0 if none)."""
    t = (upper // align) * align
    while t >= align:
        if dim % t == 0:
            return t
        t -= align
    return 0


def _plan_dim(dim, align, tile_max):
    """Return (tile, padded_dim) for one matmul dimension."""
    if dim <= tile_max:
        # Whole dim in a single block: BlockSpec allows a block dim equal to the
        # full array dim even when it is not (8,128)-aligned -> no padding.
        return dim, dim
    padded = _round_up(dim, align)
    tile = _largest_aligned_divisor(padded, align, tile_max)
    if tile * 2 < tile_max:
        # Divisor search only found a tiny tile (e.g. dim ~ prime * align):
        # pad a little further instead and use a full-size tile.
        tile = (tile_max // align) * align
        padded = _round_up(dim, tile)
    return tile, padded


def _device_kind():
    try:
        return jax.devices()[0].device_kind.lower()
    except Exception:  # pragma: no cover - be robust on exotic runtimes
        return ""


def _vmem_capacity_bytes():
    try:
        cap = getattr(pltpu.get_tpu_info(), "vmem_capacity_bytes", None)
        if cap:
            return int(cap)
    except Exception:
        pass
    # Fallback: v7x has 64 MiB VMEM per TensorCore, v5e/v6e have 128 MiB.
    return (64 << 20) if "v7" in _device_kind() else (128 << 20)


def _plan_tiles(N, M, K):
    cap = _vmem_capacity_bytes()
    # ~25% headroom for Mosaic internal scratch / double buffers.
    vmem_limit = int(min(cap * 3 // 4, 100 << 20))
    # Generation-aware output tiles: >=512x512 everywhere; 1024x1024 on the
    # 128 MiB-VMEM chips (v5e/v6e) when the problem is big enough to use it.
    # Worst-case footprint (f32, 1024x1024x1024): 2*4 + 2*4 + 2*4 = 24 MiB.
    if vmem_limit >= (80 << 20) and min(N, M) >= 2048:
        tm_max = tn_max = 1024
    else:
        tm_max = tn_max = 512
    tk_max = 1024

    tm, Np = _plan_dim(N, 8, tm_max)      # sublane-aligned
    tn, Mp = _plan_dim(M, 128, tn_max)    # lane-aligned (unmasked vst)
    tk, Kp = _plan_dim(K, 128, tk_max)

    # v7x has 2 TensorCores per chip: avoid a degenerate (1, 1, k) parallel grid
    # so both cores get work.  Split N first (sublane-aligned), else M.
    if "v7" in _device_kind() and tm == Np and tn == Mp:
        t = _largest_aligned_divisor(Np, 8, Np // 2)
        if t >= 64:
            tm = t
        else:
            t = _largest_aligned_divisor(Mp, 128, Mp // 2)
            if t:
                tn = t
    return tm, tn, tk, Np, Mp, Kp, vmem_limit


# ----------------------------------------------------------------------------
# Forward wrapper (the CustomOp.forward compute)
# ----------------------------------------------------------------------------
def antares_matmul(a, b, *, operand_dtype=None):
    """Forward of the IR `output0[N, M] +=! input0[N, K] * input1[K, M]`."""
    N, K = a.shape
    K2, M = b.shape
    assert K == K2, "contraction dims must match"

    # Operand dtype policy (accumulation is always f32, output is always f32):
    #   * explicit operand_dtype wins (opt-in bf16: ~4-8x MXU rate on v6e/v7x
    #     and half the HBM operand traffic),
    #   * bf16 inputs are kept in bf16 (never upcast to f32),
    #   * everything else runs in f32, as the Antares IR declares.
    if operand_dtype is not None:
        a = a.astype(operand_dtype)
        b = b.astype(operand_dtype)
    elif not (a.dtype == jnp.bfloat16 and b.dtype == jnp.bfloat16):
        a = a.astype(jnp.float32)
        b = b.astype(jnp.float32)

    # Small-problem fast path: pad/launch/grid-step overhead dominates and the
    # kernel has no bandwidth or compute advantage -- let XLA's fused dot run it.
    if N * M * K <= (1 << 24):
        return jnp.dot(a, b, preferred_element_type=jnp.float32)

    tm, tn, tk, Np, Mp, Kp, vmem_limit = _plan_tiles(N, M, K)

    # Minimal-alignment padding only: dims that fit in a single block are used
    # whole (no HBM round trip at all); otherwise pad to (8,128) alignment.
    # Zero rows/cols contribute nothing to the reduction.
    if (Np, Kp) != (N, K):
        a = jnp.pad(a, ((0, Np - N), (0, Kp - K)))
    if (Kp, Mp) != (K, M):
        b = jnp.pad(b, ((0, Kp - K), (0, Mp - M)))

    out = _pallas_matmul(
        a, b, tm=tm, tn=tn, tk=tk, vmem_limit=vmem_limit, flops=2 * N * M * K
    )
    if (Np, Mp) != (N, M):
        out = out[:N, :M]
    return out


class CustomOpPallas:
    """Minimal stand-in for `CustomOp` with the matmul IR, backed by Pallas."""

    def __init__(self, input_orders):
        # CustomOp sorts its inputs by key name and remembers the original index.
        input_list = []
        for index, k in enumerate(input_orders):
            v = input_orders[k]
            input_list.append((k, index, tuple(v.shape), v.dtype))
        self.input_orders = sorted(input_list, key=lambda x: x[0])
        # Output metadata (what Antares' `// GLOBALS:` line would declare).
        n = self.input_orders[0][2][0]
        m = self.input_orders[1][2][1]
        self.output_infos = [("output0", jnp.float32, [n, m])]

    def forward(self, *inputs):
        ordered = [inputs[entry[1]] for entry in self.input_orders]
        data, weight = ordered
        return antares_matmul(data, weight)

    __call__ = forward


if __name__ == "__main__":
    key = jax.random.PRNGKey(0)
    k0, k1, k2, k3, k4, k5, k6, k7 = jax.random.split(key, 8)

    # 1) Ragged shapes (not (8,128)-aligned): with the new planning every dim
    #    fits in one block, so this runs with NO padding at all.
    N, K, M = 320, 520, 384
    data = jax.random.normal(k0, (N, K), dtype=jnp.float32)
    weight = jax.random.normal(k1, (K, M), dtype=jnp.float32)
    op = CustomOpPallas(input_orders={"input0": data, "input1": weight})
    out = jax.block_until_ready(op(data, weight))
    ref = jnp.dot(data, weight, precision=jax.lax.Precision.HIGHEST)
    assert out.shape == tuple(op.output_infos[0][2])
    assert out.dtype == jnp.float32
    assert jnp.allclose(out, ref, rtol=1e-2, atol=1e-1), float(
        jnp.max(jnp.abs(out - ref))
    )

    # 2) Multi-block tiled path (parallel grid > 1), f32 operands.
    a2 = jax.random.normal(k2, (1536, 1024), dtype=jnp.float32)
    b2 = jax.random.normal(k3, (1024, 1280), dtype=jnp.float32)
    out2 = jax.block_until_ready(antares_matmul(a2, b2))
    ref2 = jnp.dot(a2, b2, precision=jax.lax.Precision.HIGHEST)
    assert jnp.allclose(out2, ref2, rtol=1e-2, atol=2e-1), float(
        jnp.max(jnp.abs(out2 - ref2))
    )

    # 3) bf16 operands stay bf16 (f32 accumulation) -> full-rate MXU path.
    a3 = jax.random.normal(k4, (384, 768), dtype=jnp.bfloat16)
    b3 = jax.random.normal(k5, (768, 512), dtype=jnp.bfloat16)
    out3 = jax.block_until_ready(antares_matmul(a3, b3))
    ref3 = jnp.dot(a3, b3, preferred_element_type=jnp.float32)
    assert out3.dtype == jnp.float32
    assert jnp.allclose(out3, ref3, rtol=2e-2, atol=5e-1), float(
        jnp.max(jnp.abs(out3 - ref3))
    )

    # 4) Tiny case (the original 64x128x128 example) exercises the fast path.
    small_a = jax.random.normal(k6, (64, 128), dtype=jnp.float32)
    small_b = jax.random.normal(k7, (128, 128), dtype=jnp.float32)
    op_small = CustomOpPallas(input_orders={"input0": small_a, "input1": small_b})
    out_small = jax.block_until_ready(op_small(small_a, small_b))
    ref_small = jnp.dot(small_a, small_b, precision=jax.lax.Precision.HIGHEST)
    assert out_small.shape == tuple(op_small.output_infos[0][2])
    assert jnp.allclose(out_small, ref_small, rtol=1e-2, atol=1e-1)

    print("KERNEL_OK")
</pallas_src>

<mosaic_0001>
module attributes {stable_mosaic.version = 11 : i64} {
  func.func @_matmul_kernel(%arg0: i32, %arg1: i32, %arg2: i32, %arg3: memref<320x520xf32, #tpu.memory_space<vmem>>, %arg4: memref<520x384xf32, #tpu.memory_space<vmem>>, %arg5: memref<320x384xf32, #tpu.memory_space<vmem>>) attributes {dimension_semantics = [#tpu.dimension_semantics<parallel>, #tpu.dimension_semantics<parallel>, #tpu.dimension_semantics<arbitrary>], iteration_bounds = array<i64: 1, 1, 1>, scalar_prefetch = 0 : i64, scratch_operands = 0 : i64, tpu.core_type = #tpu.core_type<tc>, window_params = [{transform_indices = @transform_0, window_bounds = array<i64: 320, 520>}, {transform_indices = @transform_1, window_bounds = array<i64: 520, 384>}, {transform_indices = @transform_2, window_bounds = array<i64: 320, 384>}]} {
    %c0_i32 = arith.constant 0 : i32
    %0 = arith.cmpi eq, %arg2, %c0_i32 : i32
    %1 = arith.extui %0 : i1 to i32
    %c0_i32_0 = arith.constant 0 : i32
    %2 = arith.cmpi ne, %1, %c0_i32_0 : i32
    scf.if %2 {
      %cst_8 = arith.constant 0.000000e+00 : f32
      %9 = vector.broadcast %cst_8 : f32 to vector<320x384xf32>
      %c0_9 = arith.constant 0 : index
      %c0_10 = arith.constant 0 : index
      %10 = vector.load %arg5[%c0_9, %c0_10] : memref<320x384xf32, #tpu.memory_space<vmem>>, vector<320x384xf32>
      tpu.vector_store %arg5[%c0_9, %c0_10], %9 {strides = array<i32>} : memref<320x384xf32, #tpu.memory_space<vmem>>, vector<320x384xf32>,
    } else {
    }
    %c0 = arith.constant 0 : index
    %c0_1 = arith.constant 0 : index
    %3 = vector.load %arg5[%c0, %c0_1] : memref<320x384xf32, #tpu.memory_space<vmem>>, vector<320x384xf32>
    %c0_2 = arith.constant 0 : index
    %c0_3 = arith.constant 0 : index
    %4 = vector.load %arg3[%c0_2, %c0_3] : memref<320x520xf32, #tpu.memory_space<vmem>>, vector<320x520xf32>
    %c0_4 = arith.constant 0 : index
    %c0_5 = arith.constant 0 : index
    %5 = vector.load %arg4[%c0_4, %c0_5] : memref<520x384xf32, #tpu.memory_space<vmem>>, vector<520x384xf32>
    %cst = arith.constant dense<0.000000e+00> : vector<320x384xf32>
    %6 = tpu.matmul %4, %5, %cst {dimension_numbers = #tpu.dot_dimension_numbers<[1], [0], [0], [1], [0, 0, 1, 1], [], []>} : vector<320x520xf32>, vector<520x384xf32>, vector<320x384xf32> -> vector<320x384xf32>
    %7 = arith.addf %3, %6 : vector<320x384xf32>
    %c0_6 = arith.constant 0 : index
    %c0_7 = arith.constant 0 : index
    %8 = vector.load %arg5[%c0_6, %c0_7] : memref<320x384xf32, #tpu.memory_space<vmem>>, vector<320x384xf32>
    tpu.vector_store %arg5[%c0_6, %c0_7], %7 {strides = array<i32>} : memref<320x384xf32, #tpu.memory_space<vmem>>, vector<320x384xf32>,
    return
  }
  func.func @transform_0(%arg0: i32, %arg1: i32, %arg2: i32) -> (i32, i32) {
    %c0_i32 = arith.constant 0 : i32
    return %arg0, %arg2 : i32, i32
  }
  func.func @transform_1(%arg0: i32, %arg1: i32, %arg2: i32) -> (i32, i32) {
    %c0_i32 = arith.constant 0 : i32
    return %arg2, %arg1 : i32, i32
  }
  func.func @transform_2(%arg0: i32, %arg1: i32, %arg2: i32) -> (i32, i32) {
    %c0_i32 = arith.constant 0 : i32
    return %arg0, %arg1 : i32, i32
  }
}

</mosaic_0001>

<llo_original>
// kernel: _pallas_matmul.1
$region0: #{_pallas_matmul.1}
  #allocation0 [shape = 'u32[]', space=smem, size = 0x4, offset = 0x4, fixed_abs, tag = 'smem constant byte address 0x4 - core index']
  #allocation1 [shape = 'u32[72,128]{1,0:T(1,128)}', space=vmem, size = 0x9000, scoped, tag = 'internal scratch']
  %s0 = inlined_call_operand.vmem [shape: f32[320,520], index: 0, kind: input, shape index: {}]
  %s1 = inlined_call_operand.vmem [shape: f32[520,384], index: 1, kind: input, shape index: {}]
  %s2 = inlined_call_operand.hbm [shape: f32[320,384], index: 2, kind: output, shape index: {}]
  %s3 = sld [smem:[#allocation0]]
  $region22: #{_pallas_matmul.1} parent=0
    _
  %s5 = ssub.s32 1, %s3
  %s6 = scalar_select 0, %s5, %s3
  $region1: #{_pallas_matmul.1} parent=0
    #allocation2 [shape = 'u8[491520]{0}', space=vmem, size = 0x78000, scoped, tag = 'output window, operand 0, single buffered']
    #allocation3 [shape = 's32[1]{0}', space=sflag, size = 0x4, scoped, tag = 'scoped memory for _pallas_matmul.1']
    %7 = vsyncpa [#allocation3], 0
    // Predicated region
    $region2: #{_pallas_matmul.1} parent=1 // pred_check
      _
    $region3: #{_pallas_matmul.1} parent=1 // pred_check_branch
      %9 = sbr.rel (0) target = $region5
    $region4: #{_pallas_matmul.1} parent=1 // pred_region
      _
    $region5: #{_pallas_matmul.1} parent=1 // pred_fallthru
      _
    // Predicated region
    $region6: #{_pallas_matmul.1} parent=1 // pred_check
      _
    $region7: #{_pallas_matmul.1} parent=1 // pred_check_branch
      %11 = sbr.rel (0) target = $region9
    $region8: #{_pallas_matmul.1} parent=1 // pred_region
      _
    $region9: #{_pallas_matmul.1} parent=1 // pred_fallthru
      _
    %p12 = scmp.eq.s32.totalorder 0, 0
    // Predicated region
    $region10: #{_pallas_matmul.1} parent=1 // pred_check
      %p13 = pneg %p12
    $region11: #{_pallas_matmul.1} parent=1 // pred_check_branch
      %15 = sbr.rel (%p13) target = $region13
    $region12: #{_pallas_matmul.1} parent=1 // pred_region
      %16 = vst [vmem:[#allocation2] sm:$0xff] 0.0
      %17 = vst [vmem:[#allocation2 + $0x8] sm:$0xff] 0.0
      %18 = vst [vmem:[#allocation2 + $0x10] sm:$0xff] 0.0
      %19 = vst [vmem:[#allocation2 + $0x18] sm:$0xff] 0.0
      %20 = vst [vmem:[#allocation2 + $0x20] sm:$0xff] 0.0
      %21 = vst [vmem:[#allocation2 + $0x28] sm:$0xff] 0.0
      %22 = vst [vmem:[#allocation2 + $0x30] sm:$0xff] 0.0
      %23 = vst [vmem:[#allocation2 + $0x38] sm:$0xff] 0.0
      %24 = vst [vmem:[#allocation2 + $0x40] sm:$0xff] 0.0
      %25 = vst [vmem:[#allocation2 + $0x48] sm:$0xff] 0.0
      %26 = vst [vmem:[#allocation2 + $0x50] sm:$0xff] 0.0
      %27 = vst [vmem:[#allocation2 + $0x58] sm:$0xff] 0.0
      %28 = vst [vmem:[#allocation2 + $0x60] sm:$0xff] 0.0
      %29 = vst [vmem:[#allocation2 + $0x68] sm:$0xff] 0.0
      %30 = vst [vmem:[#allocation2 + $0x70] sm:$0xff] 0.0
      %31 = vst [vmem:[#allocation2 + $0x78] sm:$0xff] 0.0
      %32 = vst [vmem:[#allocation2 + $0x80] sm:$0xff] 0.0
      %33 = vst [vmem:[#allocation2 + $0x88] sm:$0xff] 0.0
      %34 = vst [vmem:[#allocation2 + $0x90] sm:$0xff] 0.0
      %35 = vst [vmem:[#allocation2 + $0x98] sm:$0xff] 0.0
      %36 = vst [vmem:[#allocation2 + $0xa0] sm:$0xff] 0.0
      %37 = vst [vmem:[#allocation2 + $0xa8] sm:$0xff] 0.0
      %38 = vst [vmem:[#allocation2 + $0xb0] sm:$0xff] 0.0
      %39 = vst [vmem:[#allocation2 + $0xb8] sm:$0xff] 0.0
      %40 = vst [vmem:[#allocation2 + $0xc0] sm:$0xff] 0.0
      %41 = vst [vmem:[#allocation2 + $0xc8] sm:$0xff] 0.0
      %42 = vst [vmem:[#allocation2 + $0xd0] sm:$0xff] 0.0
      %43 = vst [vmem:[#allocation2 + $0xd8] sm:$0xff] 0.0
      %44 = vst [vmem:[#allocation2 + $0xe0] sm:$0xff] 0.0
      %45 = vst [vmem:[#allocation2 + $0xe8] sm:$0xff] 0.0
      %46 = vst [vmem:[#allocation2 + $0xf0] sm:$0xff] 0.0
      %47 = vst [vmem:[#allocation2 + $0xf8] sm:$0xff] 0.0
      %48 = vst [vmem:[#allocation2 + $0x100] sm:$0xff] 0.0
      %49 = vst [vmem:[#allocation2 + $0x108] sm:$0xff] 0.0
      %50 = vst [vmem:[#allocation2 + $0x110] sm:$0xff] 0.0
      %51 = vst [vmem:[#allocation2 + $0x118] sm:$0xff] 0.0
      %52 = vst [vmem:[#allocation2 + $0x120] sm:$0xff] 0.0
      %53 = vst [vmem:[#allocation2 + $0x128] sm:$0xff] 0.0
      %54 = vst [vmem:[#allocation2 + $0x130] sm:$0xff] 0.0
      %55 = vst [vmem:[#allocation2 + $0x138] sm:$0xff] 0.0
      %56 = vst [vmem:[#allocation2 + $0x140] sm:$0xff] 0.0
      %57 = vst [vmem:[#allocation2 + $0x148] sm:$0xff] 0.0
      %58 = vst [vmem:[#allocation2 + $0x150] sm:$0xff] 0.0
      %59 = vst [vmem:[#allocation2 + $0x158] sm:$0xff] 0.0
      %60 = vst [vmem:[#allocation2 + $0x160] sm:$0xff] 0.0
      %61 = vst [vmem:[#allocation2 + $0x168] sm:$0xff] 0.0
      %62 = vst [vmem:[#allocation2 + $0x170] sm:$0xff] 0.0
      %63 = vst [vmem:[#allocation2 + $0x178] sm:$0xff] 0.0
      %64 = vst [vmem:[#allocation2 + $0x180] sm:$0xff] 0.0
      %65 = vst [vmem:[#allocation2 + $0x188] sm:$0xff] 0.0
      %66 = vst [vmem:[#allocation2 + $0x190] sm:$0xff] 0.0
      %67 = vst [vmem:[#allocation2 + $0x198] sm:$0xff] 0.0
      %68 = vst [vmem:[#allocation2 + $0x1a0] sm:$0xff] 0.0
      %69 = vst [vmem:[#allocation2 + $0x1a8] sm:$0xff] 0.0
      %70 = vst [vmem:[#allocation2 + $0x1b0] sm:$0xff] 0.0
      %71 = vst [vmem:[#allocation2 + $0x1b8] sm:$0xff] 0.0
      %72 = vst [vmem:[#allocation2 + $0x1c0] sm:$0xff] 0.0
      %73 = vst [vmem:[#allocation2 + $0x1c8] sm:$0xff] 0.0
      %74 = vst [vmem:[#allocation2 + $0x1d0] sm:$0xff] 0.0
      %75 = vst [vmem:[#allocation2 + $0x1d8] sm:$0xff] 0.0
      %76 = vst [vmem:[#allocation2 + $0x1e0] sm:$0xff] 0.0
      %77 = vst [vmem:[#allocation2 + $0x1e8] sm:$0xff] 0.0
      %78 = vst [vmem:[#allocation2 + $0x1f0] sm:$0xff] 0.0
      %79 = vst [vmem:[#allocation2 + $0x1f8] sm:$0xff] 0.0
      %80 = vst [vmem:[#allocation2 + $0x200] sm:$0xff] 0.0
      %81 = vst [vmem:[#allocation2 + $0x208] sm:$0xff] 0.0
      %82 = vst [vmem:[#allocation2 + $0x210] sm:$0xff] 0.0
      %83 = vst [vmem:[#allocation2 + $0x218] sm:$0xff] 0.0
      %84 = vst [vmem:[#allocation2 + $0x220] sm:$0xff] 0.0
      %85 = vst [vmem:[#allocation2 + $0x228] sm:$0xff] 0.0
      %86 = vst [vmem:[#allocation2 + $0x230] sm:$0xff] 0.0
      %87 = vst [vmem:[#allocation2 + $0x238] sm:$0xff] 0.0
      %88 = vst [vmem:[#allocation2 + $0x240] sm:$0xff] 0.0
      %89 = vst [vmem:[#allocation2 + $0x248] sm:$0xff] 0.0
      %90 = vst [vmem:[#allocation2 + $0x250] sm:$0xff] 0.0
      %91 = vst [vmem:[#allocation2 + $0x258] sm:$0xff] 0.0
      %92 = vst [vmem:[#allocation2 + $0x260] sm:$0xff] 0.0
      %93 = vst [vmem:[#allocation2 + $0x268] sm:$0xff] 0.0
      %94 = vst [vmem:[#allocation2 + $0x270] sm:$0xff] 0.0
      %95 = vst [vmem:[#allocation2 + $0x278] sm:$0xff] 0.0
      %96 = vst [vmem:[#allocation2 + $0x280] sm:$0xff] 0.0
      %97 = vst [vmem:[#allocation2 + $0x288] sm:$0xff] 0.0
      %98 = vst [vmem:[#allocation2 + $0x290] sm:$0xff] 0.0
      %99 = vst [vmem:[#allocation2 + $0x298] sm:$0xff] 0.0
      %100 = vst [vmem:[#allocation2 + $0x2a0] sm:$0xff] 0.0
      %101 = vst [vmem:[#allocation2 + $0x2a8] sm:$0xff] 0.0
      %102 = vst [vmem:[#allocation2 + $0x2b0] sm:$0xff] 0.0
      %103 = vst [vmem:[#allocation2 + $0x2b8] sm:$0xff] 0.0
      %104 = vst [vmem:[#allocation2 + $0x2c0] sm:$0xff] 0.0
      %105 = vst [vmem:[#allocation2 + $0x2c8] sm:$0xff] 0.0
      %106 = vst [vmem:[#allocation2 + $0x2d0] sm:$0xff] 0.0
      %107 = vst [vmem:[#allocation2 + $0x2d8] sm:$0xff] 0.0
      %108 = vst [vmem:[#allocation2 + $0x2e0] sm:$0xff] 0.0
      %109 = vst [vmem:[#allocation2 + $0x2e8] sm:$0xff] 0.0
      %110 = vst [vmem:[#allocation2 + $0x2f0] sm:$0xff] 0.0
      %111 = vst [vmem:[#allocation2 + $0x2f8] sm:$0xff] 0.0
      %112 = vst [vmem:[#allocation2 + $0x300] sm:$0xff] 0.0
      %113 = vst [vmem:[#allocation2 + $0x308] sm:$0xff] 0.0
      %114 = vst [vmem:[#allocation2 + $0x310] sm:$0xff] 0.0
      %115 = vst [vmem:[#allocation2 + $0x318] sm:$0xff] 0.0
      %116 = vst [vmem:[#allocation2 + $0x320] sm:$0xff] 0.0
      %117 = vst [vmem:[#allocation2 + $0x328] sm:$0xff] 0.0
      %118 = vst [vmem:[#allocation2 + $0x330] sm:$0xff] 0.0
      %119 = vst [vmem:[#allocation2 + $0x338] sm:$0xff] 0.0
      %120 = vst [vmem:[#allocation2 + $0x340] sm:$0xff] 0.0
      %121 = vst [vmem:[#allocation2 + $0x348] sm:$0xff] 0.0
      %122 = vst [vmem:[#allocation2 + $0x350] sm:$0xff] 0.0
      %123 = vst [vmem:[#allocation2 + $0x358] sm:$0xff] 0.0
      %124 = vst [vmem:[#allocation2 + $0x360] sm:$0xff] 0.0
      %125 = vst [vmem:[#allocation2 + $0x368] sm:$0xff] 0.0
      %126 = vst [vmem:[#allocation2 + $0x370] sm:$0xff] 0.0
      %127 = vst [vmem:[#allocation2 + $0x378] sm:$0xff] 0.0
      %128 = vst [vmem:[#allocation2 + $0x380] sm:$0xff] 0.0
      %129 = vst [vmem:[#allocation2 + $0x388] sm:$0xff] 0.0
      %130 = vst [vmem:[#allocation2 + $0x390] sm:$0xff] 0.0
      %131 = vst [vmem:[#allocation2 + $0x398] sm:$0xff] 0.0
      %132 = vst [vmem:[#allocation2 + $0x3a0] sm:$0xff] 0.0
      %133 = vst [vmem:[#allocation2 + $0x3a8] sm:$0xff] 0.0
      %134 = vst [vmem:[#allocation2 + $0x3b0] sm:$0xff] 0.0
      %135 = vst [vmem:[#allocation2 + $0x3b8] sm:$0xff] 0.0
    $region13: #{_pallas_matmul.1} parent=1 // pred_fallthru
      _
    %v136 = vld [vmem:[#allocation2] sm:$0xff]
    %v137 = vld [vmem:[#allocation2 + $0x8] sm:$0xff]
    %v138 = vld [vmem:[#allocation2 + $0x10] sm:$0xff]
    %v139 = vld [vmem:[#allocation2 + $0x18] sm:$0xff]
    %v140 = vld [vmem:[#allocation2 + $0x20] sm:$0xff]
    %v141 = vld [vmem:[#allocation2 + $0x28] sm:$0xff]
    %v142 = vld [vmem:[#allocation2 + $0x30] sm:$0xff]
    %v143 = vld [vmem:[#allocation2 + $0x38] sm:$0xff]
    %v144 = vld [vmem:[#allocation2 + $0x40] sm:$0xff]
    %v145 = vld [vmem:[#allocation2 + $0x48] sm:$0xff]
    %v146 = vld [vmem:[#allocation2 + $0x50] sm:$0xff]
    %v147 = vld [vmem:[#allocation2 + $0x58] sm:$0xff]
    %v148 = vld [vmem:[#allocation2 + $0x60] sm:$0xff]
    %v149 = vld [vmem:[#allocation2 + $0x68] sm:$0xff]
    %v150 = vld [vmem:[#allocation2 + $0x70] sm:$0xff]
    %v151 = vld [vmem:[#allocation2 + $0x78] sm:$0xff]
    %v152 = vld [vmem:[#allocation2 + $0x80] sm:$0xff]
    %v153 = vld [vmem:[#allocation2 + $0x88] sm:$0xff]
    %v154 = vld [vmem:[#allocation2 + $0x90] sm:$0xff]
    %v155 = vld [vmem:[#allocation2 + $0x98] sm:$0xff]
    %v156 = vld [vmem:[#allocation2 + $0xa0] sm:$0xff]
    %v157 = vld [vmem:[#allocation2 + $0xa8] sm:$0xff]
    %v158 = vld [vmem:[#allocation2 + $0xb0] sm:$0xff]
    %v159 = vld [vmem:[#allocation2 + $0xb8] sm:$0xff]
    %v160 = vld [vmem:[#allocation2 + $0xc0] sm:$0xff]
    %v161 = vld [vmem:[#allocation2 + $0xc8] sm:$0xff]
    %v162 = vld [vmem:[#allocation2 + $0xd0] sm:$0xff]
    %v163 = vld [vmem:[#allocation2 + $0xd8] sm:$0xff]
    %v164 = vld [vmem:[#allocation2 + $0xe0] sm:$0xff]
    %v165 = vld [vmem:[#allocation2 + $0xe8] sm:$0xff]
    %v166 = vld [vmem:[#allocation2 + $0xf0] sm:$0xff]
    %v167 = vld [vmem:[#allocation2 + $0xf8] sm:$0xff]
    %v168 = vld [vmem:[#allocation2 + $0x100] sm:$0xff]
    %v169 = vld [vmem:[#allocation2 + $0x108] sm:$0xff]
    %v170 = vld [vmem:[#allocation2 + $0x110] sm:$0xff]
    %v171 = vld [vmem:[#allocation2 + $0x118] sm:$0xff]
    %v172 = vld [vmem:[#allocation2 + $0x120] sm:$0xff]
    %v173 = vld [vmem:[#allocation2 + $0x128] sm:$0xff]
    %v174 = vld [vmem:[#allocation2 + $0x130] sm:$0xff]
    %v175 = vld [vmem:[#allocation2 + $0x138] sm:$0xff]
    %v176 = vld [vmem:[#allocation2 + $0x140] sm:$0xff]
    %v177 = vld [vmem:[#allocation2 + $0x148] sm:$0xff]
    %v178 = vld [vmem:[#allocation2 + $0x150] sm:$0xff]
    %v179 = vld [vmem:[#allocation2 + $0x158] sm:$0xff]
    %v180 = vld [vmem:[#allocation2 + $0x160] sm:$0xff]
    %v181 = vld [vmem:[#allocation2 + $0x168] sm:$0xff]
    %v182 = vld [vmem:[#allocation2 + $0x170] sm:$0xff]
    %v183 = vld [vmem:[#allocation2 + $0x178] sm:$0xff]
    %v184 = vld [vmem:[#allocation2 + $0x180] sm:$0xff]
    %v185 = vld [vmem:[#allocation2 + $0x188] sm:$0xff]
    %v186 = vld [vmem:[#allocation2 + $0x190] sm:$0xff]
    %v187 = vld [vmem:[#allocation2 + $0x198] sm:$0xff]
    %v188 = vld [vmem:[#allocation2 + $0x1a0] sm:$0xff]
    %v189 = vld [vmem:[#allocation2 + $0x1a8] sm:$0xff]
    %v190 = vld [vmem:[#allocation2 + $0x1b0] sm:$0xff]
    %v191 = vld [vmem:[#allocation2 + $0x1b8] sm:$0xff]
    %v192 = vld [vmem:[#allocation2 + $0x1c0] sm:$0xff]
    %v193 = vld [vmem:[#allocation2 + $0x1c8] sm:$0xff]
    %v194 = vld [vmem:[#allocation2 + $0x1d0] sm:$0xff]
    %v195 = vld [vmem:[#allocation2 + $0x1d8] sm:$0xff]
    %v196 = vld [vmem:[#allocation2 + $0x1e0] sm:$0xff]
    %v197 = vld [vmem:[#allocation2 + $0x1e8] sm:$0xff]
    %v198 = vld [vmem:[#allocation2 + $0x1f0] sm:$0xff]
    %v199 = vld [vmem:[#allocation2 + $0x1f8] sm:$0xff]
    %v200 = vld [vmem:[#allocation2 + $0x200] sm:$0xff]
    %v201 = vld [vmem:[#allocation2 + $0x208] sm:$0xff]
    %v202 = vld [vmem:[#allocation2 + $0x210] sm:$0xff]
    %v203 = vld [vmem:[#allocation2 + $0x218] sm:$0xff]
    %v204 = vld [vmem:[#allocation2 + $0x220] sm:$0xff]
    %v205 = vld [vmem:[#allocation2 + $0x228] sm:$0xff]
    %v206 = vld [vmem:[#allocation2 + $0x230] sm:$0xff]
    %v207 = vld [vmem:[#allocation2 + $0x238] sm:$0xff]
    %v208 = vld [vmem:[#allocation2 + $0x240] sm:$0xff]
    %v209 = vld [vmem:[#allocation2 + $0x248] sm:$0xff]
    %v210 = vld [vmem:[#allocation2 + $0x250] sm:$0xff]
    %v211 = vld [vmem:[#allocation2 + $0x258] sm:$0xff]
    %v212 = vld [vmem:[#allocation2 + $0x260] sm:$0xff]
    %v213 = vld [vmem:[#allocation2 + $0x268] sm:$0xff]
    %v214 = vld [vmem:[#allocation2 + $0x270] sm:$0xff]
    %v215 = vld [vmem:[#allocation2 + $0x278] sm:$0xff]
    %v216 = vld [vmem:[#allocation2 + $0x280] sm:$0xff]
    %v217 = vld [vmem:[#allocation2 + $0x288] sm:$0xff]
    %v218 = vld [vmem:[#allocation2 + $0x290] sm:$0xff]
    %v219 = vld [vmem:[#allocation2 + $0x298] sm:$0xff]
    %v220 = vld [vmem:[#allocation2 + $0x2a0] sm:$0xff]
    %v221 = vld [vmem:[#allocation2 + $0x2a8] sm:$0xff]
    %v222 = vld [vmem:[#allocation2 + $0x2b0] sm:$0xff]
    %v223 = vld [vmem:[#allocation2 + $0x2b8] sm:$0xff]
    %v224 = vld [vmem:[#allocation2 + $0x2c0] sm:$0xff]
    %v225 = vld [vmem:[#allocation2 + $0x2c8] sm:$0xff]
    %v226 = vld [vmem:[#allocation2 + $0x2d0] sm:$0xff]
    %v227 = vld [vmem:[#allocation2 + $0x2d8] sm:$0xff]
    %v228 = vld [vmem:[#allocation2 + $0x2e0] sm:$0xff]
    %v229 = vld [vmem:[#allocation2 + $0x2e8] sm:$0xff]
    %v230 = vld [vmem:[#allocation2 + $0x2f0] sm:$0xff]
    %v231 = vld [vmem:[#allocation2 + $0x2f8] sm:$0xff]
    %v232 = vld [vmem:[#allocation2 + $0x300] sm:$0xff]
    %v233 = vld [vmem:[#allocation2 + $0x308] sm:$0xff]
    %v234 = vld [vmem:[#allocation2 + $0x310] sm:$0xff]
    %v235 = vld [vmem:[#allocation2 + $0x318] sm:$0xff]
    %v236 = vld [vmem:[#allocation2 + $0x320] sm:$0xff]
    %v237 = vld [vmem:[#allocation2 + $0x328] sm:$0xff]
    %v238 = vld [vmem:[#allocation2 + $0x330] sm:$0xff]
    %v239 = vld [vmem:[#allocation2 + $0x338] sm:$0xff]
    %v240 = vld [vmem:[#allocation2 + $0x340] sm:$0xff]
    %v241 = vld [vmem:[#allocation2 + $0x348] sm:$0xff]
    %v242 = vld [vmem:[#allocation2 + $0x350] sm:$0xff]
    %v243 = vld [vmem:[#allocation2 + $0x358] sm:$0xff]
    %v244 = vld [vmem:[#allocation2 + $0x360] sm:$0xff]
    %v245 = vld [vmem:[#allocation2 + $0x368] sm:$0xff]
    %v246 = vld [vmem:[#allocation2 + $0x370] sm:$0xff]
    %v247 = vld [vmem:[#allocation2 + $0x378] sm:$0xff]
    %v248 = vld [vmem:[#allocation2 + $0x380] sm:$0xff]
    %v249 = vld [vmem:[#allocation2 + $0x388] sm:$0xff]
    %v250 = vld [vmem:[#allocation2 + $0x390] sm:$0xff]
    %v251 = vld [vmem:[#allocation2 + $0x398] sm:$0xff]
    %v252 = vld [vmem:[#allocation2 + $0x3a0] sm:$0xff]
    %v253 = vld [vmem:[#allocation2 + $0x3a8] sm:$0xff]
    %v254 = vld [vmem:[#allocation2 + $0x3b0] sm:$0xff]
    %v255 = vld [vmem:[#allocation2 + $0x3b8] sm:$0xff]
    %v256 = vld [vmem:[%s0] sm:$0xff]
    %v257 = vld [vmem:[%s0 + $0x8] sm:$0xff]
    %v258 = vld [vmem:[%s0 + $0x10] sm:$0xff]
    %v259 = vld [vmem:[%s0 + $0x18] sm:$0xff]
    %v260 = vld [vmem:[%s0 + $0x20] sm:$0xff]
    %v261 = vld [vmem:[%s0 + $0x28] sm:$0xff]
    %v262 = vld [vmem:[%s0 + $0x30] sm:$0xff]
    %v263 = vld [vmem:[%s0 + $0x38] sm:$0xff]
    %v264 = vld [vmem:[%s0 + $0x40] sm:$0xff]
    %v265 = vld [vmem:[%s0 + $0x48] sm:$0xff]
    %v266 = vld [vmem:[%s0 + $0x50] sm:$0xff]
    %v267 = vld [vmem:[%s0 + $0x58] sm:$0xff]
    %v268 = vld [vmem:[%s0 + $0x60] sm:$0xff]
    %v269 = vld [vmem:[%s0 + $0x68] sm:$0xff]
    %v270 = vld [vmem:[%s0 + $0x70] sm:$0xff]
    %v271 = vld [vmem:[%s0 + $0x78] sm:$0xff]
    %v272 = vld [vmem:[%s0 + $0x80] sm:$0xff]
    %v273 = vld [vmem:[%s0 + $0x88] sm:$0xff]
    %v274 = vld [vmem:[%s0 + $0x90] sm:$0xff]
    %v275 = vld [vmem:[%s0 + $0x98] sm:$0xff]
    %v276 = vld [vmem:[%s0 + $0xa0] sm:$0xff]
    %v277 = vld [vmem:[%s0 + $0xa8] sm:$0xff]
    %v278 = vld [vmem:[%s0 + $0xb0] sm:$0xff]
    %v279 = vld [vmem:[%s0 + $0xb8] sm:$0xff]
    %v280 = vld [vmem:[%s0 + $0xc0] sm:$0xff]
    %v281 = vld [vmem:[%s0 + $0xc8] sm:$0xff]
    %v282 = vld [vmem:[%s0 + $0xd0] sm:$0xff]
    %v283 = vld [vmem:[%s0 + $0xd8] sm:$0xff]
    %v284 = vld [vmem:[%s0 + $0xe0] sm:$0xff]
    %v285 = vld [vmem:[%s0 + $0xe8] sm:$0xff]
    %v286 = vld [vmem:[%s0 + $0xf0] sm:$0xff]
    %v287 = vld [vmem:[%s0 + $0xf8] sm:$0xff]
    %v288 = vld [vmem:[%s0 + $0x100] sm:$0xff]
    %v289 = vld [vmem:[%s0 + $0x108] sm:$0xff]
    %v290 = vld [vmem:[%s0 + $0x110] sm:$0xff]
    %v291 = vld [vmem:[%s0 + $0x118] sm:$0xff]
    %v292 = vld [vmem:[%s0 + $0x120] sm:$0xff]
    %v293 = vld [vmem:[%s0 + $0x128] sm:$0xff]
    %v294 = vld [vmem:[%s0 + $0x130] sm:$0xff]
    %v295 = vld [vmem:[%s0 + $0x138] sm:$0xff]
    %v296 = vld [vmem:[%s0 + $0x140] sm:$0xff]
    %v297 = vld [vmem:[%s0 + $0x148] sm:$0xff]
    %v298 = vld [vmem:[%s0 + $0x150] sm:$0xff]
    %v299 = vld [vmem:[%s0 + $0x158] sm:$0xff]
    %v300 = vld [vmem:[%s0 + $0x160] sm:$0xff]
    %v301 = vld [vmem:[%s0 + $0x168] sm:$0xff]
    %v302 = vld [vmem:[%s0 + $0x170] sm:$0xff]
    %v303 = vld [vmem:[%s0 + $0x178] sm:$0xff]
    %v304 = vld [vmem:[%s0 + $0x180] sm:$0xff]
    %v305 = vld [vmem:[%s0 + $0x188] sm:$0xff]
    %v306 = vld [vmem:[%s0 + $0x190] sm:$0xff]
    %v307 = vld [vmem:[%s0 + $0x198] sm:$0xff]
    %v308 = vld [vmem:[%s0 + $0x1a0] sm:$0xff]
    %v309 = vld [vmem:[%s0 + $0x1a8] sm:$0xff]
    %v310 = vld [vmem:[%s0 + $0x1b0] sm:$0xff]
    %v311 = vld [vmem:[%s0 + $0x1b8] sm:$0xff]
    %v312 = vld [vmem:[%s0 + $0x1c0] sm:$0xff]
    %v313 = vld [vmem:[%s0 + $0x1c8] sm:$0xff]
    %v314 = vld [vmem:[%s0 + $0x1d0] sm:$0xff]
    %v315 = vld [vmem:[%s0 + $0x1d8] sm:$0xff]
    %v316 = vld [vmem:[%s0 + $0x1e0] sm:$0xff]
    %v317 = vld [vmem:[%s0 + $0x1e8] sm:$0xff]
    %v318 = vld [vmem:[%s0 + $0x1f0] sm:$0xff]
    %v319 = vld [vmem:[%s0 + $0x1f8] sm:$0xff]
    %v320 = vld [vmem:[%s0 + $0x200] sm:$0xff]
    %v321 = vld [vmem:[%s0 + $0x208] sm:$0xff]
    %v322 = vld [vmem:[%s0 + $0x210] sm:$0xff]
    %v323 = vld [vmem:[%s0 + $0x218] sm:$0xff]
    %v324 = vld [vmem:[%s0 + $0x220] sm:$0xff]
    %v325 = vld [vmem:[%s0 + $0x228] sm:$0xff]
    %v326 = vld [vmem:[%s0 + $0x230] sm:$0xff]
    %v327 = vld [vmem:[%s0 + $0x238] sm:$0xff]
    %v328 = vld [vmem:[%s0 + $0x240] sm:$0xff]
    %v329 = vld [vmem:[%s0 + $0x248] sm:$0xff]
    %v330 = vld [vmem:[%s0 + $0x250] sm:$0xff]
    %v331 = vld [vmem:[%s0 + $0x258] sm:$0xff]
    %v332 = vld [vmem:[%s0 + $0x260] sm:$0xff]
    %v333 = vld [vmem:[%s0 + $0x268] sm:$0xff]
    %v334 = vld [vmem:[%s0 + $0x270] sm:$0xff]
    %v335 = vld [vmem:[%s0 + $0x278] sm:$0xff]
    %v336 = vld [vmem:[%s0 + $0x280] sm:$0xff]
    %v337 = vld [vmem:[%s0 + $0x288] sm:$0xff]
    %v338 = vld [vmem:[%s0 + $0x290] sm:$0xff]
    %v339 = vld [vmem:[%s0 + $0x298] sm:$0xff]
    %v340 = vld [vmem:[%s0 + $0x2a0] sm:$0xff]
    %v341 = vld [vmem:[%s0 + $0x2a8] sm:$0xff]
    %v342 = vld [vmem:[%s0 + $0x2b0] sm:$0xff]
    %v343 = vld [vmem:[%s0 + $0x2b8] sm:$0xff]
    %v344 = vld [vmem:[%s0 + $0x2c0] sm:$0xff]
    %v345 = vld [vmem:[%s0 + $0x2c8] sm:$0xff]
    %v346 = vld [vmem:[%s0 + $0x2d0] sm:$0xff]
    %v347 = vld [vmem:[%s0 + $0x2d8] sm:$0xff]
    %v348 = vld [vmem:[%s0 + $0x2e0] sm:$0xff]
    %v349 = vld [vmem:[%s0 + $0x2e8] sm:$0xff]
    %v350 = vld [vmem:[%s0 + $0x2f0] sm:$0xff]
    %v351 = vld [vmem:[%s0 + $0x2f8] sm:$0xff]
    %v352 = vld [vmem:[%s0 + $0x300] sm:$0xff]
    %v353 = vld [vmem:[%s0 + $0x308] sm:$0xff]
    %v354 = vld [vmem:[%s0 + $0x310] sm:$0xff]
    %v355 = vld [vmem:[%s0 + $0x318] sm:$0xff]
    %v356 = vld [vmem:[%s0 + $0x320] sm:$0xff]
    %v357 = vld [vmem:[%s0 + $0x328] sm:$0xff]
    %v358 = vld [vmem:[%s0 + $0x330] sm:$0xff]
    %v359 = vld [vmem:[%s0 + $0x338] sm:$0xff]
    %v360 = vld [vmem:[%s0 + $0x340] sm:$0xff]
    %v361 = vld [vmem:[%s0 + $0x348] sm:$0xff]
    %v362 = vld [vmem:[%s0 + $0x350] sm:$0xff]
    %v363 = vld [vmem:[%s0 + $0x358] sm:$0xff]
    %v364 = vld [vmem:[%s0 + $0x360] sm:$0xff]
    %v365 = vld [vmem:[%s0 + $0x368] sm:$0xff]
    %v366 = vld [vmem:[%s0 + $0x370] sm:$0xff]
    %v367 = vld [vmem:[%s0 + $0x378] sm:$0xff]
    %v368 = vld [vmem:[%s0 + $0x380] sm:$0xff]
    %v369 = vld [vmem:[%s0 + $0x388] sm:$0xff]
    %v370 = vld [vmem:[%s0 + $0x390] sm:$0xff]
    %v371 = vld [vmem:[%s0 + $0x398] sm:$0xff]
    %v372 = vld [vmem:[%s0 + $0x3a0] sm:$0xff]
    %v373 = vld [vmem:[%s0 + $0x3a8] sm:$0xff]
    %v374 = vld [vmem:[%s0 + $0x3b0] sm:$0xff]
    %v375 = vld [vmem:[%s0 + $0x3b8] sm:$0xff]
    %v376 = vld [vmem:[%s0 + $0x3c0] sm:$0xff]
    %v377 = vld [vmem:[%s0 + $0x3c8] sm:$0xff]
    %v378 = vld [vmem:[%s0 + $0x3d0] sm:$0xff]
    %v379 = vld [vmem:[%s0 + $0x3d8] sm:$0xff]
    %v380 = vld [vmem:[%s0 + $0x3e0] sm:$0xff]
    %v381 = vld [vmem:[%s0 + $0x3e8] sm:$0xff]
    %v382 = vld [vmem:[%s0 + $0x3f0] sm:$0xff]
    %v383 = vld [vmem:[%s0 + $0x3f8] sm:$0xff]
    %v384 = vld [vmem:[%s0 + $0x400] sm:$0xff]
    %v385 = vld [vmem:[%s0 + $0x408] sm:$0xff]
    %v386 = vld [vmem:[%s0 + $0x410] sm:$0xff]
    %v387 = vld [vmem:[%s0 + $0x418] sm:$0xff]
    %v388 = vld [vmem:[%s0 + $0x420] sm:$0xff]
    %v389 = vld [vmem:[%s0 + $0x428] sm:$0xff]
    %v390 = vld [vmem:[%s0 + $0x430] sm:$0xff]
    %v391 = vld [vmem:[%s0 + $0x438] sm:$0xff]
    %v392 = vld [vmem:[%s0 + $0x440] sm:$0xff]
    %v393 = vld [vmem:[%s0 + $0x448] sm:$0xff]
    %v394 = vld [vmem:[%s0 + $0x450] sm:$0xff]
    %v395 = vld [vmem:[%s0 + $0x458] sm:$0xff]
    %v396 = vld [vmem:[%s0 + $0x460] sm:$0xff]
    %v397 = vld [vmem:[%s0 + $0x468] sm:$0xff]
    %v398 = vld [vmem:[%s0 + $0x470] sm:$0xff]
    %v399 = vld [vmem:[%s0 + $0x478] sm:$0xff]
    %v400 = vld [vmem:[%s0 + $0x480] sm:$0xff]
    %v401 = vld [vmem:[%s0 + $0x488] sm:$0xff]
    %v402 = vld [vmem:[%s0 + $0x490] sm:$0xff]
    %v403 = vld [vmem:[%s0 + $0x498] sm:$0xff]
    %v404 = vld [vmem:[%s0 + $0x4a0] sm:$0xff]
    %v405 = vld [vmem:[%s0 + $0x4a8] sm:$0xff]
    %v406 = vld [vmem:[%s0 + $0x4b0] sm:$0xff]
    %v407 = vld [vmem:[%s0 + $0x4b8] sm:$0xff]
    %v408 = vld [vmem:[%s0 + $0x4c0] sm:$0xff]
    %v409 = vld [vmem:[%s0 + $0x4c8] sm:$0xff]
    %v410 = vld [vmem:[%s0 + $0x4d0] sm:$0xff]
    %v411 = vld [vmem:[%s0 + $0x4d8] sm:$0xff]
    %v412 = vld [vmem:[%s0 + $0x4e0] sm:$0xff]
    %v413 = vld [vmem:[%s0 + $0x4e8] sm:$0xff]
    %v414 = vld [vmem:[%s0 + $0x4f0] sm:$0xff]
    %v415 = vld [vmem:[%s0 + $0x4f8] sm:$0xff]
    %v416 = vld [vmem:[%s0 + $0x500] sm:$0xff]
    %v417 = vld [vmem:[%s0 + $0x508] sm:$0xff]
    %v418 = vld [vmem:[%s0 + $0x510] sm:$0xff]
    %v419 = vld [vmem:[%s0 + $0x518] sm:$0xff]
    %v420 = vld [vmem:[%s0 + $0x520] sm:$0xff]
    %v421 = vld [vmem:[%s0 + $0x528] sm:$0xff]
    %v422 = vld [vmem:[%s0 + $0x530] sm:$0xff]
    %v423 = vld [vmem:[%s0 + $0x538] sm:$0xff]
    %v424 = vld [vmem:[%s0 + $0x540] sm:$0xff]
    %v425 = vld [vmem:[%s0 + $0x548] sm:$0xff]
    %v426 = vld [vmem:[%s0 + $0x550] sm:$0xff]
    %v427 = vld [vmem:[%s0 + $0x558] sm:$0xff]
    %v428 = vld [vmem:[%s0 + $0x560] sm:$0xff]
    %v429 = vld [vmem:[%s0 + $0x568] sm:$0xff]
    %v430 = vld [vmem:[%s0 + $0x570] sm:$0xff]
    %v431 = vld [vmem:[%s0 + $0x578] sm:$0xff]
    %v432 = vld [vmem:[%s0 + $0x580] sm:$0xff]
    %v433 = vld [vmem:[%s0 + $0x588] sm:$0xff]
    %v434 = vld [vmem:[%s0 + $0x590] sm:$0xff]
    %v435 = vld [vmem:[%s0 + $0x598] sm:$0xff]
    %v436 = vld [vmem:[%s0 + $0x5a0] sm:$0xff]
    %v437 = vld [vmem:[%s0 + $0x5a8] sm:$0xff]
    %v438 = vld [vmem:[%s0 + $0x5b0] sm:$0xff]
    %v439 = vld [vmem:[%s0 + $0x5b8] sm:$0xff]
    %v440 = vld [vmem:[%s0 + $0x5c0] sm:$0xff]
    %v441 = vld [vmem:[%s0 + $0x5c8] sm:$0xff]
    %v442 = vld [vmem:[%s0 + $0x5d0] sm:$0xff]
    %v443 = vld [vmem:[%s0 + $0x5d8] sm:$0xff]
    %v444 = vld [vmem:[%s0 + $0x5e0] sm:$0xff]
    %v445 = vld [vmem:[%s0 + $0x5e8] sm:$0xff]
    %v446 = vld [vmem:[%s0 + $0x5f0] sm:$0xff]
    %v447 = vld [vmem:[%s0 + $0x5f8] sm:$0xff]
    %v448 = vld [vmem:[%s0 + $0x600] sm:$0xff]
    %v449 = vld [vmem:[%s0 + $0x608] sm:$0xff]
    %v450 = vld [vmem:[%s0 + $0x610] sm:$0xff]
    %v451 = vld [vmem:[%s0 + $0x618] sm:$0xff]
    %v452 = vld [vmem:[%s0 + $0x620] sm:$0xff]
    %v453 = vld [vmem:[%s0 + $0x628] sm:$0xff]
    %v454 = vld [vmem:[%s0 + $0x630] sm:$0xff]
    %v455 = vld [vmem:[%s0 + $0x638] sm:$0xff]
    %v456 = vld [vmem:[%s1] sm:$0xff]
    %v457 = vld [vmem:[%s1 + $0x8] sm:$0xff]
    %v458 = vld [vmem:[%s1 + $0x10] sm:$0xff]
    %v459 = vld [vmem:[%s1 + $0x18] sm:$0xff]
    %v460 = vld [vmem:[%s1 + $0x20] sm:$0xff]
    %v461 = vld [vmem:[%s1 + $0x28] sm:$0xff]
    %v462 = vld [vmem:[%s1 + $0x30] sm:$0xff]
    %v463 = vld [vmem:[%s1 + $0x38] sm:$0xff]
    %v464 = vld [vmem:[%s1 + $0x40] sm:$0xff]
    %v465 = vld [vmem:[%s1 + $0x48] sm:$0xff]
    %v466 = vld [vmem:[%s1 + $0x50] sm:$0xff]
    %v467 = vld [vmem:[%s1 + $0x58] sm:$0xff]
    %v468 = vld [vmem:[%s1 + $0x60] sm:$0xff]
    %v469 = vld [vmem:[%s1 + $0x68] sm:$0xff]
    %v470 = vld [vmem:[%s1 + $0x70] sm:$0xff]
    %v471 = vld [vmem:[%s1 + $0x78] sm:$0xff]
    %v472 = vld [vmem:[%s1 + $0x80] sm:$0xff]
    %v473 = vld [vmem:[%s1 + $0x88] sm:$0xff]
    %v474 = vld [vmem:[%s1 + $0x90] sm:$0xff]
    %v475 = vld [vmem:[%s1 + $0x98] sm:$0xff]
    %v476 = vld [vmem:[%s1 + $0xa0] sm:$0xff]
    %v477 = vld [vmem:[%s1 + $0xa8] sm:$0xff]
    %v478 = vld [vmem:[%s1 + $0xb0] sm:$0xff]
    %v479 = vld [vmem:[%s1 + $0xb8] sm:$0xff]
    %v480 = vld [vmem:[%s1 + $0xc0] sm:$0xff]
    %v481 = vld [vmem:[%s1 + $0xc8] sm:$0xff]
    %v482 = vld [vmem:[%s1 + $0xd0] sm:$0xff]
    %v483 = vld [vmem:[%s1 + $0xd8] sm:$0xff]
    %v484 = vld [vmem:[%s1 + $0xe0] sm:$0xff]
    %v485 = vld [vmem:[%s1 + $0xe8] sm:$0xff]
    %v486 = vld [vmem:[%s1 + $0xf0] sm:$0xff]
    %v487 = vld [vmem:[%s1 + $0xf8] sm:$0xff]
    %v488 = vld [vmem:[%s1 + $0x100] sm:$0xff]
    %v489 = vld [vmem:[%s1 + $0x108] sm:$0xff]
    %v490 = vld [vmem:[%s1 + $0x110] sm:$0xff]
    %v491 = vld [vmem:[%s1 + $0x118] sm:$0xff]
    %v492 = vld [vmem:[%s1 + $0x120] sm:$0xff]
    %v493 = vld [vmem:[%s1 + $0x128] sm:$0xff]
    %v494 = vld [vmem:[%s1 + $0x130] sm:$0xff]
    %v495 = vld [vmem:[%s1 + $0x138] sm:$0xff]
    %v496 = vld [vmem:[%s1 + $0x140] sm:$0xff]
    %v497 = vld [vmem:[%s1 + $0x148] sm:$0xff]
    %v498 = vld [vmem:[%s1 + $0x150] sm:$0xff]
    %v499 = vld [vmem:[%s1 + $0x158] sm:$0xff]
    %v500 = vld [vmem:[%s1 + $0x160] sm:$0xff]
    %v501 = vld [vmem:[%s1 + $0x168] sm:$0xff]
    %v502 = vld [vmem:[%s1 + $0x170] sm:$0xff]
    %v503 = vld [vmem:[%s1 + $0x178] sm:$0xff]
    %v504 = vld [vmem:[%s1 + $0x180] sm:$0xff]
    %v505 = vld [vmem:[%s1 + $0x188] sm:$0xff]
    %v506 = vld [vmem:[%s1 + $0x190] sm:$0xff]
    %v507 = vld [vmem:[%s1 + $0x198] sm:$0xff]
    %v508 = vld [vmem:[%s1 + $0x1a0] sm:$0xff]
    %v509 = vld [vmem:[%s1 + $0x1a8] sm:$0xff]
    %v510 = vld [vmem:[%s1 + $0x1b0] sm:$0xff]
    %v511 = vld [vmem:[%s1 + $0x1b8] sm:$0xff]
    %v512 = vld [vmem:[%s1 + $0x1c0] sm:$0xff]
    %v513 = vld [vmem:[%s1 + $0x1c8] sm:$0xff]
    %v514 = vld [vmem:[%s1 + $0x1d0] sm:$0xff]
    %v515 = vld [vmem:[%s1 + $0x1d8] sm:$0xff]
    %v516 = vld [vmem:[%s1 + $0x1e0] sm:$0xff]
    %v517 = vld [vmem:[%s1 + $0x1e8] sm:$0xff]
    %v518 = vld [vmem:[%s1 + $0x1f0] sm:$0xff]
    %v519 = vld [vmem:[%s1 + $0x1f8] sm:$0xff]
    %v520 = vld [vmem:[%s1 + $0x200] sm:$0xff]
    %v521 = vld [vmem:[%s1 + $0x208] sm:$0xff]
    %v522 = vld [vmem:[%s1 + $0x210] sm:$0xff]
    %v523 = vld [vmem:[%s1 + $0x218] sm:$0xff]
    %v524 = vld [vmem:[%s1 + $0x220] sm:$0xff]
    %v525 = vld [vmem:[%s1 + $0x228] sm:$0xff]
    %v526 = vld [vmem:[%s1 + $0x230] sm:$0xff]
    %v527 = vld [vmem:[%s1 + $0x238] sm:$0xff]
    %v528 = vld [vmem:[%s1 + $0x240] sm:$0xff]
    %v529 = vld [vmem:[%s1 + $0x248] sm:$0xff]
    %v530 = vld [vmem:[%s1 + $0x250] sm:$0xff]
    %v531 = vld [vmem:[%s1 + $0x258] sm:$0xff]
    %v532 = vld [vmem:[%s1 + $0x260] sm:$0xff]
    %v533 = vld [vmem:[%s1 + $0x268] sm:$0xff]
    %v534 = vld [vmem:[%s1 + $0x270] sm:$0xff]
    %v535 = vld [vmem:[%s1 + $0x278] sm:$0xff]
    %v536 = vld [vmem:[%s1 + $0x280] sm:$0xff]
    %v537 = vld [vmem:[%s1 + $0x288] sm:$0xff]
    %v538 = vld [vmem:[%s1 + $0x290] sm:$0xff]
    %v539 = vld [vmem:[%s1 + $0x298] sm:$0xff]
    %v540 = vld [vmem:[%s1 + $0x2a0] sm:$0xff]
    %v541 = vld [vmem:[%s1 + $0x2a8] sm:$0xff]
    %v542 = vld [vmem:[%s1 + $0x2b0] sm:$0xff]
    %v543 = vld [vmem:[%s1 + $0x2b8] sm:$0xff]
    %v544 = vld [vmem:[%s1 + $0x2c0] sm:$0xff]
    %v545 = vld [vmem:[%s1 + $0x2c8] sm:$0xff]
    %v546 = vld [vmem:[%s1 + $0x2d0] sm:$0xff]
    %v547 = vld [vmem:[%s1 + $0x2d8] sm:$0xff]
    %v548 = vld [vmem:[%s1 + $0x2e0] sm:$0xff]
    %v549 = vld [vmem:[%s1 + $0x2e8] sm:$0xff]
    %v550 = vld [vmem:[%s1 + $0x2f0] sm:$0xff]
    %v551 = vld [vmem:[%s1 + $0x2f8] sm:$0xff]
    %v552 = vld [vmem:[%s1 + $0x300] sm:$0xff]
    %v553 = vld [vmem:[%s1 + $0x308] sm:$0xff]
    %v554 = vld [vmem:[%s1 + $0x310] sm:$0xff]
    %v555 = vld [vmem:[%s1 + $0x318] sm:$0xff]
    %v556 = vld [vmem:[%s1 + $0x320] sm:$0xff]
    %v557 = vld [vmem:[%s1 + $0x328] sm:$0xff]
    %v558 = vld [vmem:[%s1 + $0x330] sm:$0xff]
    %v559 = vld [vmem:[%s1 + $0x338] sm:$0xff]
    %v560 = vld [vmem:[%s1 + $0x340] sm:$0xff]
    %v561 = vld [vmem:[%s1 + $0x348] sm:$0xff]
    %v562 = vld [vmem:[%s1 + $0x350] sm:$0xff]
    %v563 = vld [vmem:[%s1 + $0x358] sm:$0xff]
    %v564 = vld [vmem:[%s1 + $0x360] sm:$0xff]
    %v565 = vld [vmem:[%s1 + $0x368] sm:$0xff]
    %v566 = vld [vmem:[%s1 + $0x370] sm:$0xff]
    %v567 = vld [vmem:[%s1 + $0x378] sm:$0xff]
    %v568 = vld [vmem:[%s1 + $0x380] sm:$0xff]
    %v569 = vld [vmem:[%s1 + $0x388] sm:$0xff]
    %v570 = vld [vmem:[%s1 + $0x390] sm:$0xff]
    %v571 = vld [vmem:[%s1 + $0x398] sm:$0xff]
    %v572 = vld [vmem:[%s1 + $0x3a0] sm:$0xff]
    %v573 = vld [vmem:[%s1 + $0x3a8] sm:$0xff]
    %v574 = vld [vmem:[%s1 + $0x3b0] sm:$0xff]
    %v575 = vld [vmem:[%s1 + $0x3b8] sm:$0xff]
    %v576 = vld [vmem:[%s1 + $0x3c0] sm:$0xff]
    %v577 = vld [vmem:[%s1 + $0x3c8] sm:$0xff]
    %v578 = vld [vmem:[%s1 + $0x3d0] sm:$0xff]
    %v579 = vld [vmem:[%s1 + $0x3d8] sm:$0xff]
    %v580 = vld [vmem:[%s1 + $0x3e0] sm:$0xff]
    %v581 = vld [vmem:[%s1 + $0x3e8] sm:$0xff]
    %v582 = vld [vmem:[%s1 + $0x3f0] sm:$0xff]
    %v583 = vld [vmem:[%s1 + $0x3f8] sm:$0xff]
    %v584 = vld [vmem:[%s1 + $0x400] sm:$0xff]
    %v585 = vld [vmem:[%s1 + $0x408] sm:$0xff]
    %v586 = vld [vmem:[%s1 + $0x410] sm:$0xff]
    %v587 = vld [vmem:[%s1 + $0x418] sm:$0xff]
    %v588 = vld [vmem:[%s1 + $0x420] sm:$0xff]
    %v589 = vld [vmem:[%s1 + $0x428] sm:$0xff]
    %v590 = vld [vmem:[%s1 + $0x430] sm:$0xff]
    %v591 = vld [vmem:[%s1 + $0x438] sm:$0xff]
    %v592 = vld [vmem:[%s1 + $0x440] sm:$0xff]
    %v593 = vld [vmem:[%s1 + $0x448] sm:$0xff]
    %v594 = vld [vmem:[%s1 + $0x450] sm:$0xff]
    %v595 = vld [vmem:[%s1 + $0x458] sm:$0xff]
    %v596 = vld [vmem:[%s1 + $0x460] sm:$0xff]
    %v597 = vld [vmem:[%s1 + $0x468] sm:$0xff]
    %v598 = vld [vmem:[%s1 + $0x470] sm:$0xff]
    %v599 = vld [vmem:[%s1 + $0x478] sm:$0xff]
    %v600 = vld [vmem:[%s1 + $0x480] sm:$0xff]
    %v601 = vld [vmem:[%s1 + $0x488] sm:$0xff]
    %v602 = vld [vmem:[%s1 + $0x490] sm:$0xff]
    %v603 = vld [vmem:[%s1 + $0x498] sm:$0xff]
    %v604 = vld [vmem:[%s1 + $0x4a0] sm:$0xff]
    %v605 = vld [vmem:[%s1 + $0x4a8] sm:$0xff]
    %v606 = vld [vmem:[%s1 + $0x4b0] sm:$0xff]
    %v607 = vld [vmem:[%s1 + $0x4b8] sm:$0xff]
    %v608 = vld [vmem:[%s1 + $0x4c0] sm:$0xff]
    %v609 = vld [vmem:[%s1 + $0x4c8] sm:$0xff]
    %v610 = vld [vmem:[%s1 + $0x4d0] sm:$0xff]
    %v611 = vld [vmem:[%s1 + $0x4d8] sm:$0xff]
    %v612 = vld [vmem:[%s1 + $0x4e0] sm:$0xff]
    %v613 = vld [vmem:[%s1 + $0x4e8] sm:$0xff]
    %v614 = vld [vmem:[%s1 + $0x4f0] sm:$0xff]
    %v615 = vld [vmem:[%s1 + $0x4f8] sm:$0xff]
    %v616 = vld [vmem:[%s1 + $0x500] sm:$0xff]
    %v617 = vld [vmem:[%s1 + $0x508] sm:$0xff]
    %v618 = vld [vmem:[%s1 + $0x510] sm:$0xff]
    %v619 = vld [vmem:[%s1 + $0x518] sm:$0xff]
    %v620 = vld [vmem:[%s1 + $0x520] sm:$0xff]
    %v621 = vld [vmem:[%s1 + $0x528] sm:$0xff]
    %v622 = vld [vmem:[%s1 + $0x530] sm:$0xff]
    %v623 = vld [vmem:[%s1 + $0x538] sm:$0xff]
    %v624 = vld [vmem:[%s1 + $0x540] sm:$0xff]
    %v625 = vld [vmem:[%s1 + $0x548] sm:$0xff]
    %v626 = vld [vmem:[%s1 + $0x550] sm:$0xff]
    %v627 = vld [vmem:[%s1 + $0x558] sm:$0xff]
    %v628 = vld [vmem:[%s1 + $0x560] sm:$0xff]
    %v629 = vld [vmem:[%s1 + $0x568] sm:$0xff]
    %v630 = vld [vmem:[%s1 + $0x570] sm:$0xff]
    %v631 = vld [vmem:[%s1 + $0x578] sm:$0xff]
    %v632 = vld [vmem:[%s1 + $0x580] sm:$0xff]
    %v633 = vld [vmem:[%s1 + $0x588] sm:$0xff]
    %v634 = vld [vmem:[%s1 + $0x590] sm:$0xff]
    %v635 = vld [vmem:[%s1 + $0x598] sm:$0xff]
    %v636 = vld [vmem:[%s1 + $0x5a0] sm:$0xff]
    %v637 = vld [vmem:[%s1 + $0x5a8] sm:$0xff]
    %v638 = vld [vmem:[%s1 + $0x5b0] sm:$0xff]
    %v639 = vld [vmem:[%s1 + $0x5b8] sm:$0xff]
    %v640 = vld [vmem:[%s1 + $0x5c0] sm:$0xff]
    %v641 = vld [vmem:[%s1 + $0x5c8] sm:$0xff]
    %v642 = vld [vmem:[%s1 + $0x5d0] sm:$0xff]
    %v643 = vld [vmem:[%s1 + $0x5d8] sm:$0xff]
    %v644 = vld [vmem:[%s1 + $0x5e0] sm:$0xff]
    %v645 = vld [vmem:[%s1 + $0x5e8] sm:$0xff]
    %v646 = vld [vmem:[%s1 + $0x5f0] sm:$0xff]
    %v647 = vld [vmem:[%s1 + $0x5f8] sm:$0xff]
    %v648 = vld [vmem:[%s1 + $0x600] sm:$0xff]
    %v649 = vld [vmem:[%s1 + $0x608] sm:$0xff]
    %v650 = vld [vmem:[%s1 + $0x610] sm:$0xff]
    %vm651 = vcmask 64512
    %v653 = vsel %vm651, %v260, 0
    %v656 = vsel %vm651, %v265, 0
    %v659 = vsel %vm651, %v270, 0
    %v662 = vsel %vm651, %v275, 0
    %v665 = vsel %vm651, %v280, 0
    %v668 = vsel %vm651, %v285, 0
    %v671 = vsel %vm651, %v290, 0
    %v674 = vsel %vm651, %v295, 0
    %v677 = vsel %vm651, %v300, 0
    %v680 = vsel %vm651, %v305, 0
    %v683 = vsel %vm651, %v310, 0
    %v686 = vsel %vm651, %v315, 0
    %v689 = vsel %vm651, %v320, 0
    %v692 = vsel %vm651, %v325, 0
    %v695 = vsel %vm651, %v330, 0
    %v698 = vsel %vm651, %v335, 0
    %v701 = vsel %vm651, %v340, 0
    %v704 = vsel %vm651, %v345, 0
    %v707 = vsel %vm651, %v350, 0
    %v710 = vsel %vm651, %v355, 0
    %v713 = vsel %vm651, %v360, 0
    %v716 = vsel %vm651, %v365, 0
    %v719 = vsel %vm651, %v370, 0
    %v722 = vsel %vm651, %v375, 0
    %v725 = vsel %vm651, %v380, 0
    %v728 = vsel %vm651, %v385, 0
    %v731 = vsel %vm651, %v390, 0
    %v734 = vsel %vm651, %v395, 0
    %v737 = vsel %vm651, %v400, 0
    %v740 = vsel %vm651, %v405, 0
    %v743 = vsel %vm651, %v410, 0
    %v746 = vsel %vm651, %v415, 0
    %v749 = vsel %vm651, %v420, 0
    %v752 = vsel %vm651, %v425, 0
    %v755 = vsel %vm651, %v430, 0
    %v758 = vsel %vm651, %v435, 0
    %v761 = vsel %vm651, %v440, 0
    %v764 = vsel %vm651, %v445, 0
    %v767 = vsel %vm651, %v450, 0
    %v770 = vsel %vm651, %v455, 0
    %772 = vmatpush.msra.mxu0 %v501
    %773 = vmatpush.msra.mxu0 %v498
    %774 = vmatpush.msra.mxu0 %v495
    %775 = vmatpush.msra.mxu0 %v492
    %776 = vmatpush.msra.mxu0 %v489
    %777 = vmatpush.msra.mxu0 %v486
    %778 = vmatpush.msra.mxu0 %v483
    %779 = vmatpush.msra.mxu0 %v480
    %780 = vmatpush.msra.mxu0 %v477
    %781 = vmatpush.msra.mxu0 %v474
    %782 = vmatpush.msra.mxu0 %v471
    %783 = vmatpush.msra.mxu0 %v468
    %784 = vmatpush.msra.mxu0 %v465
    %785 = vmatpush.msra.mxu0 %v462
    %786 = vmatpush.msra.mxu0 %v459
    %787 = vmatpush.msra.mxu0 %v456
    %788 = vmatmul.f32.gmra.mxu0 %v256
    %v789 = vpop.f32.mrf.mxu0
    %v790 = vadd.f32 0.0, %v789
    %791 = vmatmul.f32.gmra.mxu0 %v261
    %v792 = vpop.f32.mrf.mxu0
    %v793 = vadd.f32 0.0, %v792
    %794 = vmatmul.f32.gmra.mxu0 %v266
    %v795 = vpop.f32.mrf.mxu0
    %v796 = vadd.f32 0.0, %v795
    %797 = vmatmul.f32.gmra.mxu0 %v271
    %v798 = vpop.f32.mrf.mxu0
    %v799 = vadd.f32 0.0, %v798
    %800 = vmatmul.f32.gmra.mxu0 %v276
    %v801 = vpop.f32.mrf.mxu0
    %v802 = vadd.f32 0.0, %v801
    %803 = vmatmul.f32.gmra.mxu0 %v281
    %v804 = vpop.f32.mrf.mxu0
    %v805 = vadd.f32 0.0, %v804
    %806 = vmatmul.f32.gmra.mxu0 %v286
    %v807 = vpop.f32.mrf.mxu0
    %v808 = vadd.f32 0.0, %v807
    %809 = vmatmul.f32.gmra.mxu0 %v291
    %v810 = vpop.f32.mrf.mxu0
    %v811 = vadd.f32 0.0, %v810
    %812 = vmatmul.f32.gmra.mxu0 %v296
    %v813 = vpop.f32.mrf.mxu0
    %v814 = vadd.f32 0.0, %v813
    %815 = vmatmul.f32.gmra.mxu0 %v301
    %v816 = vpop.f32.mrf.mxu0
    %v817 = vadd.f32 0.0, %v816
    %818 = vmatmul.f32.gmra.mxu0 %v306
    %v819 = vpop.f32.mrf.mxu0
    %v820 = vadd.f32 0.0, %v819
    %821 = vmatmul.f32.gmra.mxu0 %v311
    %v822 = vpop.f32.mrf.mxu0
    %v823 = vadd.f32 0.0, %v822
    %824 = vmatmul.f32.gmra.mxu0 %v316
    %v825 = vpop.f32.mrf.mxu0
    %v826 = vadd.f32 0.0, %v825
    %827 = vmatmul.f32.gmra.mxu0 %v321
    %v828 = vpop.f32.mrf.mxu0
    %v829 = vadd.f32 0.0, %v828
    %830 = vmatmul.f32.gmra.mxu0 %v326
    %v831 = vpop.f32.mrf.mxu0
    %v832 = vadd.f32 0.0, %v831
    %833 = vmatmul.f32.gmra.mxu0 %v331
    %v834 = vpop.f32.mrf.mxu0
    %v835 = vadd.f32 0.0, %v834
    %836 = vmatmul.f32.gmra.mxu0 %v336
    %v837 = vpop.f32.mrf.mxu0
    %v838 = vadd.f32 0.0, %v837
    %839 = vmatmul.f32.gmra.mxu0 %v341
    %v840 = vpop.f32.mrf.mxu0
    %v841 = vadd.f32 0.0, %v840
    %842 = vmatmul.f32.gmra.mxu0 %v346
    %v843 = vpop.f32.mrf.mxu0
    %v844 = vadd.f32 0.0, %v843
    %845 = vmatmul.f32.gmra.mxu0 %v351
    %v846 = vpop.f32.mrf.mxu0
    %v847 = vadd.f32 0.0, %v846
    %848 = vmatmul.f32.gmra.mxu0 %v356
    %v849 = vpop.f32.mrf.mxu0
    %v850 = vadd.f32 0.0, %v849
    %851 = vmatmul.f32.gmra.mxu0 %v361
    %v852 = vpop.f32.mrf.mxu0
    %v853 = vadd.f32 0.0, %v852
    %854 = vmatmul.f32.gmra.mxu0 %v366
    %v855 = vpop.f32.mrf.mxu0
    %v856 = vadd.f32 0.0, %v855
    %857 = vmatmul.f32.gmra.mxu0 %v371
    %v858 = vpop.f32.mrf.mxu0
    %v859 = vadd.f32 0.0, %v858
    %860 = vmatmul.f32.gmra.mxu0 %v376
    %v861 = vpop.f32.mrf.mxu0
    %v862 = vadd.f32 0.0, %v861
    %863 = vmatmul.f32.gmra.mxu0 %v381
    %v864 = vpop.f32.mrf.mxu0
    %v865 = vadd.f32 0.0, %v864
    %866 = vmatmul.f32.gmra.mxu0 %v386
    %v867 = vpop.f32.mrf.mxu0
    %v868 = vadd.f32 0.0, %v867
    %869 = vmatmul.f32.gmra.mxu0 %v391
    %v870 = vpop.f32.mrf.mxu0
    %v871 = vadd.f32 0.0, %v870
    %872 = vmatmul.f32.gmra.mxu0 %v396
    %v873 = vpop.f32.mrf.mxu0
    %v874 = vadd.f32 0.0, %v873
    %875 = vmatmul.f32.gmra.mxu0 %v401
    %v876 = vpop.f32.mrf.mxu0
    %v877 = vadd.f32 0.0, %v876
    %878 = vmatmul.f32.gmra.mxu0 %v406
    %v879 = vpop.f32.mrf.mxu0
    %v880 = vadd.f32 0.0, %v879
    %881 = vmatmul.f32.gmra.mxu0 %v411
    %v882 = vpop.f32.mrf.mxu0
    %v883 = vadd.f32 0.0, %v882
    %884 = vmatmul.f32.gmra.mxu0 %v416
    %v885 = vpop.f32.mrf.mxu0
    %v886 = vadd.f32 0.0, %v885
    %887 = vmatmul.f32.gmra.mxu0 %v421
    %v888 = vpop.f32.mrf.mxu0
    %v889 = vadd.f32 0.0, %v888
    %890 = vmatmul.f32.gmra.mxu0 %v426
    %v891 = vpop.f32.mrf.mxu0
    %v892 = vadd.f32 0.0, %v891
    %893 = vmatmul.f32.gmra.mxu0 %v431
    %v894 = vpop.f32.mrf.mxu0
    %v895 = vadd.f32 0.0, %v894
    %896 = vmatmul.f32.gmra.mxu0 %v436
    %v897 = vpop.f32.mrf.mxu0
    %v898 = vadd.f32 0.0, %v897
    %899 = vmatmul.f32.gmra.mxu0 %v441
    %v900 = vpop.f32.mrf.mxu0
    %v901 = vadd.f32 0.0, %v900
    %902 = vmatmul.f32.gmra.mxu0 %v446
    %v903 = vpop.f32.mrf.mxu0
    %v904 = vadd.f32 0.0, %v903
    %905 = vmatmul.f32.gmra.mxu0 %v451
    %v906 = vpop.f32.mrf.mxu0
    %v907 = vadd.f32 0.0, %v906
    %908 = vdwg.mxu0
    %909 = vmatpush.msra.mxu0 %v549
    %910 = vmatpush.msra.mxu0 %v546
    %911 = vmatpush.msra.mxu0 %v543
    %912 = vmatpush.msra.mxu0 %v540
    %913 = vmatpush.msra.mxu0 %v537
    %914 = vmatpush.msra.mxu0 %v534
    %915 = vmatpush.msra.mxu0 %v531
    %916 = vmatpush.msra.mxu0 %v528
    %917 = vmatpush.msra.mxu0 %v525
    %918 = vmatpush.msra.mxu0 %v522
    %919 = vmatpush.msra.mxu0 %v519
    %920 = vmatpush.msra.mxu0 %v516
    %921 = vmatpush.msra.mxu0 %v513
    %922 = vmatpush.msra.mxu0 %v510
    %923 = vmatpush.msra.mxu0 %v507
    %924 = vmatpush.msra.mxu0 %v504
    %925 = vmatmul.f32.gmra.mxu0 %v257
    %v926 = vpop.f32.mrf.mxu0
    %v927 = vadd.f32 %v790, %v926
    %928 = vmatmul.f32.gmra.mxu0 %v262
    %v929 = vpop.f32.mrf.mxu0
    %v930 = vadd.f32 %v793, %v929
    %931 = vmatmul.f32.gmra.mxu0 %v267
    %v932 = vpop.f32.mrf.mxu0
    %v933 = vadd.f32 %v796, %v932
    %934 = vmatmul.f32.gmra.mxu0 %v272
    %v935 = vpop.f32.mrf.mxu0
    %v936 = vadd.f32 %v799, %v935
    %937 = vmatmul.f32.gmra.mxu0 %v277
    %v938 = vpop.f32.mrf.mxu0
    %v939 = vadd.f32 %v802, %v938
    %940 = vmatmul.f32.gmra.mxu0 %v282
    %v941 = vpop.f32.mrf.mxu0
    %v942 = vadd.f32 %v805, %v941
    %943 = vmatmul.f32.gmra.mxu0 %v287
    %v944 = vpop.f32.mrf.mxu0
    %v945 = vadd.f32 %v808, %v944
    %946 = vmatmul.f32.gmra.mxu0 %v292
    %v947 = vpop.f32.mrf.mxu0
    %v948 = vadd.f32 %v811, %v947
    %949 = vmatmul.f32.gmra.mxu0 %v297
    %v950 = vpop.f32.mrf.mxu0
    %v951 = vadd.f32 %v814, %v950
    %952 = vmatmul.f32.gmra.mxu0 %v302
    %v953 = vpop.f32.mrf.mxu0
    %v954 = vadd.f32 %v817, %v953
    %955 = vmatmul.f32.gmra.mxu0 %v307
    %v956 = vpop.f32.mrf.mxu0
    %v957 = vadd.f32 %v820, %v956
    %958 = vmatmul.f32.gmra.mxu0 %v312
    %v959 = vpop.f32.mrf.mxu0
    %v960 = vadd.f32 %v823, %v959
    %961 = vmatmul.f32.gmra.mxu0 %v317
    %v962 = vpop.f32.mrf.mxu0
    %v963 = vadd.f32 %v826, %v962
    %964 = vmatmul.f32.gmra.mxu0 %v322
    %v965 = vpop.f32.mrf.mxu0
    %v966 = vadd.f32 %v829, %v965
    %967 = vmatmul.f32.gmra.mxu0 %v327
    %v968 = vpop.f32.mrf.mxu0
    %v969 = vadd.f32 %v832, %v968
    %970 = vmatmul.f32.gmra.mxu0 %v332
    %v971 = vpop.f32.mrf.mxu0
    %v972 = vadd.f32 %v835, %v971
    %973 = vmatmul.f32.gmra.mxu0 %v337
    %v974 = vpop.f32.mrf.mxu0
    %v975 = vadd.f32 %v838, %v974
    %976 = vmatmul.f32.gmra.mxu0 %v342
    %v977 = vpop.f32.mrf.mxu0
    %v978 = vadd.f32 %v841, %v977
    %979 = vmatmul.f32.gmra.mxu0 %v347
    %v980 = vpop.f32.mrf.mxu0
    %v981 = vadd.f32 %v844, %v980
    %982 = vmatmul.f32.gmra.mxu0 %v352
    %v983 = vpop.f32.mrf.mxu0
    %v984 = vadd.f32 %v847, %v983
    %985 = vmatmul.f32.gmra.mxu0 %v357
    %v986 = vpop.f32.mrf.mxu0
    %v987 = vadd.f32 %v850, %v986
    %988 = vmatmul.f32.gmra.mxu0 %v362
    %v989 = vpop.f32.mrf.mxu0
    %v990 = vadd.f32 %v853, %v989
    %991 = vmatmul.f32.gmra.mxu0 %v367
    %v992 = vpop.f32.mrf.mxu0
    %v993 = vadd.f32 %v856, %v992
    %994 = vmatmul.f32.gmra.mxu0 %v372
    %v995 = vpop.f32.mrf.mxu0
    %v996 = vadd.f32 %v859, %v995
    %997 = vmatmul.f32.gmra.mxu0 %v377
    %v998 = vpop.f32.mrf.mxu0
    %v999 = vadd.f32 %v862, %v998
    %1000 = vmatmul.f32.gmra.mxu0 %v382
    %v1001 = vpop.f32.mrf.mxu0
    %v1002 = vadd.f32 %v865, %v1001
    %1003 = vmatmul.f32.gmra.mxu0 %v387
    %v1004 = vpop.f32.mrf.mxu0
    %v1005 = vadd.f32 %v868, %v1004
    %1006 = vmatmul.f32.gmra.mxu0 %v392
    %v1007 = vpop.f32.mrf.mxu0
    %v1008 = vadd.f32 %v871, %v1007
    %1009 = vmatmul.f32.gmra.mxu0 %v397
    %v1010 = vpop.f32.mrf.mxu0
    %v1011 = vadd.f32 %v874, %v1010
    %1012 = vmatmul.f32.gmra.mxu0 %v402
    %v1013 = vpop.f32.mrf.mxu0
    %v1014 = vadd.f32 %v877, %v1013
    %1015 = vmatmul.f32.gmra.mxu0 %v407
    %v1016 = vpop.f32.mrf.mxu0
    %v1017 = vadd.f32 %v880, %v1016
    %1018 = vmatmul.f32.gmra.mxu0 %v412
    %v1019 = vpop.f32.mrf.mxu0
    %v1020 = vadd.f32 %v883, %v1019
    %1021 = vmatmul.f32.gmra.mxu0 %v417
    %v1022 = vpop.f32.mrf.mxu0
    %v1023 = vadd.f32 %v886, %v1022
    %1024 = vmatmul.f32.gmra.mxu0 %v422
    %v1025 = vpop.f32.mrf.mxu0
    %v1026 = vadd.f32 %v889, %v1025
    %1027 = vmatmul.f32.gmra.mxu0 %v427
    %v1028 = vpop.f32.mrf.mxu0
    %v1029 = vadd.f32 %v892, %v1028
    %1030 = vmatmul.f32.gmra.mxu0 %v432
    %v1031 = vpop.f32.mrf.mxu0
    %v1032 = vadd.f32 %v895, %v1031
    %1033 = vmatmul.f32.gmra.mxu0 %v437
    %v1034 = vpop.f32.mrf.mxu0
    %v1035 = vadd.f32 %v898, %v1034
    %1036 = vmatmul.f32.gmra.mxu0 %v442
    %v1037 = vpop.f32.mrf.mxu0
    %v1038 = vadd.f32 %v901, %v1037
    %1039 = vmatmul.f32.gmra.mxu0 %v447
    %v1040 = vpop.f32.mrf.mxu0
    %v1041 = vadd.f32 %v904, %v1040
    %1042 = vmatmul.f32.gmra.mxu0 %v452
    %v1043 = vpop.f32.mrf.mxu0
    %v1044 = vadd.f32 %v907, %v1043
    %1045 = vdwg.mxu0
    %1046 = vmatpush.msra.mxu0 %v597
    %1047 = vmatpush.msra.mxu0 %v594
    %1048 = vmatpush.msra.mxu0 %v591
    %1049 = vmatpush.msra.mxu0 %v588
    %1050 = vmatpush.msra.mxu0 %v585
    %1051 = vmatpush.msra.mxu0 %v582
    %1052 = vmatpush.msra.mxu0 %v579
    %1053 = vmatpush.msra.mxu0 %v576
    %1054 = vmatpush.msra.mxu0 %v573
    %1055 = vmatpush.msra.mxu0 %v570
    %1056 = vmatpush.msra.mxu0 %v567
    %1057 = vmatpush.msra.mxu0 %v564
    %1058 = vmatpush.msra.mxu0 %v561
    %1059 = vmatpush.msra.mxu0 %v558
    %1060 = vmatpush.msra.mxu0 %v555
    %1061 = vmatpush.msra.mxu0 %v552
    %1062 = vmatmul.f32.gmra.mxu0 %v258
    %v1063 = vpop.f32.mrf.mxu0
    %v1064 = vadd.f32 %v927, %v1063
    %1065 = vmatmul.f32.gmra.mxu0 %v263
    %v1066 = vpop.f32.mrf.mxu0
    %v1067 = vadd.f32 %v930, %v1066
    %1068 = vmatmul.f32.gmra.mxu0 %v268
    %v1069 = vpop.f32.mrf.mxu0
    %v1070 = vadd.f32 %v933, %v1069
    %1071 = vmatmul.f32.gmra.mxu0 %v273
    %v1072 = vpop.f32.mrf.mxu0
    %v1073 = vadd.f32 %v936, %v1072
    %1074 = vmatmul.f32.gmra.mxu0 %v278
    %v1075 = vpop.f32.mrf.mxu0
    %v1076 = vadd.f32 %v939, %v1075
    %1077 = vmatmul.f32.gmra.mxu0 %v283
    %v1078 = vpop.f32.mrf.mxu0
    %v1079 = vadd.f32 %v942, %v1078
    %1080 = vmatmul.f32.gmra.mxu0 %v288
    %v1081 = vpop.f32.mrf.mxu0
    %v1082 = vadd.f32 %v945, %v1081
    %1083 = vmatmul.f32.gmra.mxu0 %v293
    %v1084 = vpop.f32.mrf.mxu0
    %v1085 = vadd.f32 %v948, %v1084
    %1086 = vmatmul.f32.gmra.mxu0 %v298
    %v1087 = vpop.f32.mrf.mxu0
    %v1088 = vadd.f32 %v951, %v1087
    %1089 = vmatmul.f32.gmra.mxu0 %v303
    %v1090 = vpop.f32.mrf.mxu0
    %v1091 = vadd.f32 %v954, %v1090
    %1092 = vmatmul.f32.gmra.mxu0 %v308
    %v1093 = vpop.f32.mrf.mxu0
    %v1094 = vadd.f32 %v957, %v1093
    %1095 = vmatmul.f32.gmra.mxu0 %v313
    %v1096 = vpop.f32.mrf.mxu0
    %v1097 = vadd.f32 %v960, %v1096
    %1098 = vmatmul.f32.gmra.mxu0 %v318
    %v1099 = vpop.f32.mrf.mxu0
    %v1100 = vadd.f32 %v963, %v1099
    %1101 = vmatmul.f32.gmra.mxu0 %v323
    %v1102 = vpop.f32.mrf.mxu0
    %v1103 = vadd.f32 %v966, %v1102
    %1104 = vmatmul.f32.gmra.mxu0 %v328
    %v1105 = vpop.f32.mrf.mxu0
    %v1106 = vadd.f32 %v969, %v1105
    %1107 = vmatmul.f32.gmra.mxu0 %v333
    %v1108 = vpop.f32.mrf.mxu0
    %v1109 = vadd.f32 %v972, %v1108
    %1110 = vmatmul.f32.gmra.mxu0 %v338
    %v1111 = vpop.f32.mrf.mxu0
    %v1112 = vadd.f32 %v975, %v1111
    %1113 = vmatmul.f32.gmra.mxu0 %v343
    %v1114 = vpop.f32.mrf.mxu0
    %v1115 = vadd.f32 %v978, %v1114
    %1116 = vmatmul.f32.gmra.mxu0 %v348
    %v1117 = vpop.f32.mrf.mxu0
    %v1118 = vadd.f32 %v981, %v1117
    %1119 = vmatmul.f32.gmra.mxu0 %v353
    %v1120 = vpop.f32.mrf.mxu0
    %v1121 = vadd.f32 %v984, %v1120
    %1122 = vmatmul.f32.gmra.mxu0 %v358
    %v1123 = vpop.f32.mrf.mxu0
    %v1124 = vadd.f32 %v987, %v1123
    %1125 = vmatmul.f32.gmra.mxu0 %v363
    %v1126 = vpop.f32.mrf.mxu0
    %v1127 = vadd.f32 %v990, %v1126
    %1128 = vmatmul.f32.gmra.mxu0 %v368
    %v1129 = vpop.f32.mrf.mxu0
    %v1130 = vadd.f32 %v993, %v1129
    %1131 = vmatmul.f32.gmra.mxu0 %v373
    %v1132 = vpop.f32.mrf.mxu0
    %v1133 = vadd.f32 %v996, %v1132
    %1134 = vmatmul.f32.gmra.mxu0 %v378
    %v1135 = vpop.f32.mrf.mxu0
    %v1136 = vadd.f32 %v999, %v1135
    %1137 = vmatmul.f32.gmra.mxu0 %v383
    %v1138 = vpop.f32.mrf.mxu0
    %v1139 = vadd.f32 %v1002, %v1138
    %1140 = vmatmul.f32.gmra.mxu0 %v388
    %v1141 = vpop.f32.mrf.mxu0
    %v1142 = vadd.f32 %v1005, %v1141
    %1143 = vmatmul.f32.gmra.mxu0 %v393
    %v1144 = vpop.f32.mrf.mxu0
    %v1145 = vadd.f32 %v1008, %v1144
    %1146 = vmatmul.f32.gmra.mxu0 %v398
    %v1147 = vpop.f32.mrf.mxu0
    %v1148 = vadd.f32 %v1011, %v1147
    %1149 = vmatmul.f32.gmra.mxu0 %v403
    %v1150 = vpop.f32.mrf.mxu0
    %v1151 = vadd.f32 %v1014, %v1150
    %1152 = vmatmul.f32.gmra.mxu0 %v408
    %v1153 = vpop.f32.mrf.mxu0
    %v1154 = vadd.f32 %v1017, %v1153
    %1155 = vmatmul.f32.gmra.mxu0 %v413
    %v1156 = vpop.f32.mrf.mxu0
    %v1157 = vadd.f32 %v1020, %v1156
    %1158 = vmatmul.f32.gmra.mxu0 %v418
    %v1159 = vpop.f32.mrf.mxu0
    %v1160 = vadd.f32 %v1023, %v1159
    %1161 = vmatmul.f32.gmra.mxu0 %v423
    %v1162 = vpop.f32.mrf.mxu0
    %v1163 = vadd.f32 %v1026, %v1162
    %1164 = vmatmul.f32.gmra.mxu0 %v428
    %v1165 = vpop.f32.mrf.mxu0
    %v1166 = vadd.f32 %v1029, %v1165
    %1167 = vmatmul.f32.gmra.mxu0 %v433
    %v1168 = vpop.f32.mrf.mxu0
    %v1169 = vadd.f32 %v1032, %v1168
    %1170 = vmatmul.f32.gmra.mxu0 %v438
    %v1171 = vpop.f32.mrf.mxu0
    %v1172 = vadd.f32 %v1035, %v1171
    %1173 = vmatmul.f32.gmra.mxu0 %v443
    %v1174 = vpop.f32.mrf.mxu0
    %v1175 = vadd.f32 %v1038, %v1174
    %1176 = vmatmul.f32.gmra.mxu0 %v448
    %v1177 = vpop.f32.mrf.mxu0
    %v1178 = vadd.f32 %v1041, %v1177
    %1179 = vmatmul.f32.gmra.mxu0 %v453
    %v1180 = vpop.f32.mrf.mxu0
    %v1181 = vadd.f32 %v1044, %v1180
    %1182 = vdwg.mxu0
    %1183 = vmatpush.msra.mxu0 %v645
    %1184 = vmatpush.msra.mxu0 %v642
    %1185 = vmatpush.msra.mxu0 %v639
    %1186 = vmatpush.msra.mxu0 %v636
    %1187 = vmatpush.msra.mxu0 %v633
    %1188 = vmatpush.msra.mxu0 %v630
    %1189 = vmatpush.msra.mxu0 %v627
    %1190 = vmatpush.msra.mxu0 %v624
    %1191 = vmatpush.msra.mxu0 %v621
    %1192 = vmatpush.msra.mxu0 %v618
    %1193 = vmatpush.msra.mxu0 %v615
    %1194 = vmatpush.msra.mxu0 %v612
    %1195 = vmatpush.msra.mxu0 %v609
    %1196 = vmatpush.msra.mxu0 %v606
    %1197 = vmatpush.msra.mxu0 %v603
    %1198 = vmatpush.msra.mxu0 %v600
    %1199 = vmatmul.f32.gmra.mxu0 %v259
    %v1200 = vpop.f32.mrf.mxu0
    %v1201 = vadd.f32 %v1064, %v1200
    %1202 = vmatmul.f32.gmra.mxu0 %v264
    %v1203 = vpop.f32.mrf.mxu0
    %v1204 = vadd.f32 %v1067, %v1203
    %1205 = vmatmul.f32.gmra.mxu0 %v269
    %v1206 = vpop.f32.mrf.mxu0
    %v1207 = vadd.f32 %v1070, %v1206
    %1208 = vmatmul.f32.gmra.mxu0 %v274
    %v1209 = vpop.f32.mrf.mxu0
    %v1210 = vadd.f32 %v1073, %v1209
    %1211 = vmatmul.f32.gmra.mxu0 %v279
    %v1212 = vpop.f32.mrf.mxu0
    %v1213 = vadd.f32 %v1076, %v1212
    %1214 = vmatmul.f32.gmra.mxu0 %v284
    %v1215 = vpop.f32.mrf.mxu0
    %v1216 = vadd.f32 %v1079, %v1215
    %1217 = vmatmul.f32.gmra.mxu0 %v289
    %v1218 = vpop.f32.mrf.mxu0
    %v1219 = vadd.f32 %v1082, %v1218
    %1220 = vmatmul.f32.gmra.mxu0 %v294
    %v1221 = vpop.f32.mrf.mxu0
    %v1222 = vadd.f32 %v1085, %v1221
    %1223 = vmatmul.f32.gmra.mxu0 %v299
    %v1224 = vpop.f32.mrf.mxu0
    %v1225 = vadd.f32 %v1088, %v1224
    %1226 = vmatmul.f32.gmra.mxu0 %v304
    %v1227 = vpop.f32.mrf.mxu0
    %v1228 = vadd.f32 %v1091, %v1227
    %1229 = vmatmul.f32.gmra.mxu0 %v309
    %v1230 = vpop.f32.mrf.mxu0
    %v1231 = vadd.f32 %v1094, %v1230
    %1232 = vmatmul.f32.gmra.mxu0 %v314
    %v1233 = vpop.f32.mrf.mxu0
    %v1234 = vadd.f32 %v1097, %v1233
    %1235 = vmatmul.f32.gmra.mxu0 %v319
    %v1236 = vpop.f32.mrf.mxu0
    %v1237 = vadd.f32 %v1100, %v1236
    %1238 = vmatmul.f32.gmra.mxu0 %v324
    %v1239 = vpop.f32.mrf.mxu0
    %v1240 = vadd.f32 %v1103, %v1239
    %1241 = vmatmul.f32.gmra.mxu0 %v329
    %v1242 = vpop.f32.mrf.mxu0
    %v1243 = vadd.f32 %v1106, %v1242
    %1244 = vmatmul.f32.gmra.mxu0 %v334
    %v1245 = vpop.f32.mrf.mxu0
    %v1246 = vadd.f32 %v1109, %v1245
    %1247 = vmatmul.f32.gmra.mxu0 %v339
    %v1248 = vpop.f32.mrf.mxu0
    %v1249 = vadd.f32 %v1112, %v1248
    %1250 = vmatmul.f32.gmra.mxu0 %v344
    %v1251 = vpop.f32.mrf.mxu0
    %v1252 = vadd.f32 %v1115, %v1251
    %1253 = vmatmul.f32.gmra.mxu0 %v349
    %v1254 = vpop.f32.mrf.mxu0
    %v1255 = vadd.f32 %v1118, %v1254
    %1256 = vmatmul.f32.gmra.mxu0 %v354
    %v1257 = vpop.f32.mrf.mxu0
    %v1258 = vadd.f32 %v1121, %v1257
    %1259 = vmatmul.f32.gmra.mxu0 %v359
    %v1260 = vpop.f32.mrf.mxu0
    %v1261 = vadd.f32 %v1124, %v1260
    %1262 = vmatmul.f32.gmra.mxu0 %v364
    %v1263 = vpop.f32.mrf.mxu0
    %v1264 = vadd.f32 %v1127, %v1263
    %1265 = vmatmul.f32.gmra.mxu0 %v369
    %v1266 = vpop.f32.mrf.mxu0
    %v1267 = vadd.f32 %v1130, %v1266
    %1268 = vmatmul.f32.gmra.mxu0 %v374
    %v1269 = vpop.f32.mrf.mxu0
    %v1270 = vadd.f32 %v1133, %v1269
    %1271 = vmatmul.f32.gmra.mxu0 %v379
    %v1272 = vpop.f32.mrf.mxu0
    %v1273 = vadd.f32 %v1136, %v1272
    %1274 = vmatmul.f32.gmra.mxu0 %v384
    %v1275 = vpop.f32.mrf.mxu0
    %v1276 = vadd.f32 %v1139, %v1275
    %1277 = vmatmul.f32.gmra.mxu0 %v389
    %v1278 = vpop.f32.mrf.mxu0
    %v1279 = vadd.f32 %v1142, %v1278
    %1280 = vmatmul.f32.gmra.mxu0 %v394
    %v1281 = vpop.f32.mrf.mxu0
    %v1282 = vadd.f32 %v1145, %v1281
    %1283 = vmatmul.f32.gmra.mxu0 %v399
    %v1284 = vpop.f32.mrf.mxu0
    %v1285 = vadd.f32 %v1148, %v1284
    %1286 = vmatmul.f32.gmra.mxu0 %v404
    %v1287 = vpop.f32.mrf.mxu0
    %v1288 = vadd.f32 %v1151, %v1287
    %1289 = vmatmul.f32.gmra.mxu0 %v409
    %v1290 = vpop.f32.mrf.mxu0
    %v1291 = vadd.f32 %v1154, %v1290
    %1292 = vmatmul.f32.gmra.mxu0 %v414
    %v1293 = vpop.f32.mrf.mxu0
    %v1294 = vadd.f32 %v1157, %v1293
    %1295 = vmatmul.f32.gmra.mxu0 %v419
    %v1296 = vpop.f32.mrf.mxu0
    %v1297 = vadd.f32 %v1160, %v1296
    %1298 = vmatmul.f32.gmra.mxu0 %v424
    %v1299 = vpop.f32.mrf.mxu0
    %v1300 = vadd.f32 %v1163, %v1299
    %1301 = vmatmul.f32.gmra.mxu0 %v429
    %v1302 = vpop.f32.mrf.mxu0
    %v1303 = vadd.f32 %v1166, %v1302
    %1304 = vmatmul.f32.gmra.mxu0 %v434
    %v1305 = vpop.f32.mrf.mxu0
    %v1306 = vadd.f32 %v1169, %v1305
    %1307 = vmatmul.f32.gmra.mxu0 %v439
    %v1308 = vpop.f32.mrf.mxu0
    %v1309 = vadd.f32 %v1172, %v1308
    %1310 = vmatmul.f32.gmra.mxu0 %v444
    %v1311 = vpop.f32.mrf.mxu0
    %v1312 = vadd.f32 %v1175, %v1311
    %1313 = vmatmul.f32.gmra.mxu0 %v449
    %v1314 = vpop.f32.mrf.mxu0
    %v1315 = vadd.f32 %v1178, %v1314
    %1316 = vmatmul.f32.gmra.mxu0 %v454
    %v1317 = vpop.f32.mrf.mxu0
    %v1318 = vadd.f32 %v1181, %v1317
    %1319 = vdwg.mxu0
    %1320 = vmatpush.msra.mxu0 0.0
    %1321 = vmatpush.msra.mxu0 0.0
    %1322 = vmatpush.msra.mxu0 0.0
    %1323 = vmatpush.msra.mxu0 0.0
    %1324 = vmatpush.msra.mxu0 0.0
    %1325 = vmatpush.msra.mxu0 0.0
    %1326 = vmatpush.msra.mxu0 0.0
    %1327 = vmatpush.msra.mxu0 0.0
    %1328 = vmatpush.msra.mxu0 0.0
    %1329 = vmatpush.msra.mxu0 0.0
    %1330 = vmatpush.msra.mxu0 0.0
    %1331 = vmatpush.msra.mxu0 0.0
    %1332 = vmatpush.msra.mxu0 0.0
    %1333 = vmatpush.msra.mxu0 0.0
    %1334 = vmatpush.msra.mxu0 0.0
    %1335 = vmatpush.msra.mxu0 %v648
    %1336 = vmatmul.f32.gmra.mxu0 %v653
    %v1337 = vpop.f32.mrf.mxu0
    %v1338 = vadd.f32 %v1201, %v1337
    %1339 = vmatmul.f32.gmra.mxu0 %v656
    %v1340 = vpop.f32.mrf.mxu0
    %v1341 = vadd.f32 %v1204, %v1340
    %1342 = vmatmul.f32.gmra.mxu0 %v659
    %v1343 = vpop.f32.mrf.mxu0
    %v1344 = vadd.f32 %v1207, %v1343
    %1345 = vmatmul.f32.gmra.mxu0 %v662
    %v1346 = vpop.f32.mrf.mxu0
    %v1347 = vadd.f32 %v1210, %v1346
    %1348 = vmatmul.f32.gmra.mxu0 %v665
    %v1349 = vpop.f32.mrf.mxu0
    %v1350 = vadd.f32 %v1213, %v1349
    %1351 = vmatmul.f32.gmra.mxu0 %v668
    %v1352 = vpop.f32.mrf.mxu0
    %v1353 = vadd.f32 %v1216, %v1352
    %1354 = vmatmul.f32.gmra.mxu0 %v671
    %v1355 = vpop.f32.mrf.mxu0
    %v1356 = vadd.f32 %v1219, %v1355
    %1357 = vmatmul.f32.gmra.mxu0 %v674
    %v1358 = vpop.f32.mrf.mxu0
    %v1359 = vadd.f32 %v1222, %v1358
    %1360 = vmatmul.f32.gmra.mxu0 %v677
    %v1361 = vpop.f32.mrf.mxu0
    %v1362 = vadd.f32 %v1225, %v1361
    %1363 = vmatmul.f32.gmra.mxu0 %v680
    %v1364 = vpop.f32.mrf.mxu0
    %v1365 = vadd.f32 %v1228, %v1364
    %1366 = vmatmul.f32.gmra.mxu0 %v683
    %v1367 = vpop.f32.mrf.mxu0
    %v1368 = vadd.f32 %v1231, %v1367
    %1369 = vmatmul.f32.gmra.mxu0 %v686
    %v1370 = vpop.f32.mrf.mxu0
    %v1371 = vadd.f32 %v1234, %v1370
    %1372 = vmatmul.f32.gmra.mxu0 %v689
    %v1373 = vpop.f32.mrf.mxu0
    %v1374 = vadd.f32 %v1237, %v1373
    %1375 = vmatmul.f32.gmra.mxu0 %v692
    %v1376 = vpop.f32.mrf.mxu0
    %v1377 = vadd.f32 %v1240, %v1376
    %1378 = vmatmul.f32.gmra.mxu0 %v695
    %v1379 = vpop.f32.mrf.mxu0
    %v1380 = vadd.f32 %v1243, %v1379
    %1381 = vmatmul.f32.gmra.mxu0 %v698
    %v1382 = vpop.f32.mrf.mxu0
    %v1383 = vadd.f32 %v1246, %v1382
    %1384 = vmatmul.f32.gmra.mxu0 %v701
    %v1385 = vpop.f32.mrf.mxu0
    %v1386 = vadd.f32 %v1249, %v1385
    %1387 = vmatmul.f32.gmra.mxu0 %v704
    %v1388 = vpop.f32.mrf.mxu0
    %v1389 = vadd.f32 %v1252, %v1388
    %1390 = vmatmul.f32.gmra.mxu0 %v707
    %v1391 = vpop.f32.mrf.mxu0
    %v1392 = vadd.f32 %v1255, %v1391
    %1393 = vmatmul.f32.gmra.mxu0 %v710
    %v1394 = vpop.f32.mrf.mxu0
    %v1395 = vadd.f32 %v1258, %v1394
    %1396 = vmatmul.f32.gmra.mxu0 %v713
    %v1397 = vpop.f32.mrf.mxu0
    %v1398 = vadd.f32 %v1261, %v1397
    %1399 = vmatmul.f32.gmra.mxu0 %v716
    %v1400 = vpop.f32.mrf.mxu0
    %v1401 = vadd.f32 %v1264, %v1400
    %1402 = vmatmul.f32.gmra.mxu0 %v719
    %v1403 = vpop.f32.mrf.mxu0
    %v1404 = vadd.f32 %v1267, %v1403
    %1405 = vmatmul.f32.gmra.mxu0 %v722
    %v1406 = vpop.f32.mrf.mxu0
    %v1407 = vadd.f32 %v1270, %v1406
    %1408 = vmatmul.f32.gmra.mxu0 %v725
    %v1409 = vpop.f32.mrf.mxu0
    %v1410 = vadd.f32 %v1273, %v1409
    %1411 = vmatmul.f32.gmra.mxu0 %v728
    %v1412 = vpop.f32.mrf.mxu0
    %v1413 = vadd.f32 %v1276, %v1412
    %1414 = vmatmul.f32.gmra.mxu0 %v731
    %v1415 = vpop.f32.mrf.mxu0
    %v1416 = vadd.f32 %v1279, %v1415
    %1417 = vmatmul.f32.gmra.mxu0 %v734
    %v1418 = vpop.f32.mrf.mxu0
    %v1419 = vadd.f32 %v1282, %v1418
    %1420 = vmatmul.f32.gmra.mxu0 %v737
    %v1421 = vpop.f32.mrf.mxu0
    %v1422 = vadd.f32 %v1285, %v1421
    %1423 = vmatmul.f32.gmra.mxu0 %v740
    %v1424 = vpop.f32.mrf.mxu0
    %v1425 = vadd.f32 %v1288, %v1424
    %1426 = vmatmul.f32.gmra.mxu0 %v743
    %v1427 = vpop.f32.mrf.mxu0
    %v1428 = vadd.f32 %v1291, %v1427
    %1429 = vmatmul.f32.gmra.mxu0 %v746
    %v1430 = vpop.f32.mrf.mxu0
    %v1431 = vadd.f32 %v1294, %v1430
    %1432 = vmatmul.f32.gmra.mxu0 %v749
    %v1433 = vpop.f32.mrf.mxu0
    %v1434 = vadd.f32 %v1297, %v1433
    %1435 = vmatmul.f32.gmra.mxu0 %v752
    %v1436 = vpop.f32.mrf.mxu0
    %v1437 = vadd.f32 %v1300, %v1436
    %1438 = vmatmul.f32.gmra.mxu0 %v755
    %v1439 = vpop.f32.mrf.mxu0
    %v1440 = vadd.f32 %v1303, %v1439
    %1441 = vmatmul.f32.gmra.mxu0 %v758
    %v1442 = vpop.f32.mrf.mxu0
    %v1443 = vadd.f32 %v1306, %v1442
    %1444 = vmatmul.f32.gmra.mxu0 %v761
    %v1445 = vpop.f32.mrf.mxu0
    %v1446 = vadd.f32 %v1309, %v1445
    %1447 = vmatmul.f32.gmra.mxu0 %v764
    %v1448 = vpop.f32.mrf.mxu0
    %v1449 = vadd.f32 %v1312, %v1448
    %1450 = vmatmul.f32.gmra.mxu0 %v767
    %v1451 = vpop.f32.mrf.mxu0
    %v1452 = vadd.f32 %v1315, %v1451
    %1453 = vmatmul.f32.gmra.mxu0 %v770
    %v1454 = vpop.f32.mrf.mxu0
    %v1455 = vadd.f32 %v1318, %v1454
    %1456 = vdwg.mxu0
    %1457 = vmatpush.msra.mxu0 %v502
    %1458 = vmatpush.msra.mxu0 %v499
    %1459 = vmatpush.msra.mxu0 %v496
    %1460 = vmatpush.msra.mxu0 %v493
    %1461 = vmatpush.msra.mxu0 %v490
    %1462 = vmatpush.msra.mxu0 %v487
    %1463 = vmatpush.msra.mxu0 %v484
    %1464 = vmatpush.msra.mxu0 %v481
    %1465 = vmatpush.msra.mxu0 %v478
    %1466 = vmatpush.msra.mxu0 %v475
    %1467 = vmatpush.msra.mxu0 %v472
    %1468 = vmatpush.msra.mxu0 %v469
    %1469 = vmatpush.msra.mxu0 %v466
    %1470 = vmatpush.msra.mxu0 %v463
    %1471 = vmatpush.msra.mxu0 %v460
    %1472 = vmatpush.msra.mxu0 %v457
    %1473 = vmatmul.f32.gmra.mxu0 %v256
    %v1474 = vpop.f32.mrf.mxu0
    %v1475 = vadd.f32 0.0, %v1474
    %1476 = vmatmul.f32.gmra.mxu0 %v261
    %v1477 = vpop.f32.mrf.mxu0
    %v1478 = vadd.f32 0.0, %v1477
    %1479 = vmatmul.f32.gmra.mxu0 %v266
    %v1480 = vpop.f32.mrf.mxu0
    %v1481 = vadd.f32 0.0, %v1480
    %1482 = vmatmul.f32.gmra.mxu0 %v271
    %v1483 = vpop.f32.mrf.mxu0
    %v1484 = vadd.f32 0.0, %v1483
    %1485 = vmatmul.f32.gmra.mxu0 %v276
    %v1486 = vpop.f32.mrf.mxu0
    %v1487 = vadd.f32 0.0, %v1486
    %1488 = vmatmul.f32.gmra.mxu0 %v281
    %v1489 = vpop.f32.mrf.mxu0
    %v1490 = vadd.f32 0.0, %v1489
    %1491 = vmatmul.f32.gmra.mxu0 %v286
    %v1492 = vpop.f32.mrf.mxu0
    %v1493 = vadd.f32 0.0, %v1492
    %1494 = vmatmul.f32.gmra.mxu0 %v291
    %v1495 = vpop.f32.mrf.mxu0
    %v1496 = vadd.f32 0.0, %v1495
    %1497 = vmatmul.f32.gmra.mxu0 %v296
    %v1498 = vpop.f32.mrf.mxu0
    %v1499 = vadd.f32 0.0, %v1498
    %1500 = vmatmul.f32.gmra.mxu0 %v301
    %v1501 = vpop.f32.mrf.mxu0
    %v1502 = vadd.f32 0.0, %v1501
    %1503 = vmatmul.f32.gmra.mxu0 %v306
    %v1504 = vpop.f32.mrf.mxu0
    %v1505 = vadd.f32 0.0, %v1504
    %1506 = vmatmul.f32.gmra.mxu0 %v311
    %v1507 = vpop.f32.mrf.mxu0
    %v1508 = vadd.f32 0.0, %v1507
    %1509 = vmatmul.f32.gmra.mxu0 %v316
    %v1510 = vpop.f32.mrf.mxu0
    %v1511 = vadd.f32 0.0, %v1510
    %1512 = vmatmul.f32.gmra.mxu0 %v321
    %v1513 = vpop.f32.mrf.mxu0
    %v1514 = vadd.f32 0.0, %v1513
    %1515 = vmatmul.f32.gmra.mxu0 %v326
    %v1516 = vpop.f32.mrf.mxu0
    %v1517 = vadd.f32 0.0, %v1516
    %1518 = vmatmul.f32.gmra.mxu0 %v331
    %v1519 = vpop.f32.mrf.mxu0
    %v1520 = vadd.f32 0.0, %v1519
    %1521 = vmatmul.f32.gmra.mxu0 %v336
    %v1522 = vpop.f32.mrf.mxu0
    %v1523 = vadd.f32 0.0, %v1522
    %1524 = vmatmul.f32.gmra.mxu0 %v341
    %v1525 = vpop.f32.mrf.mxu0
    %v1526 = vadd.f32 0.0, %v1525
    %1527 = vmatmul.f32.gmra.mxu0 %v346
    %v1528 = vpop.f32.mrf.mxu0
    %v1529 = vadd.f32 0.0, %v1528
    %1530 = vmatmul.f32.gmra.mxu0 %v351
    %v1531 = vpop.f32.mrf.mxu0
    %v1532 = vadd.f32 0.0, %v1531
    %1533 = vmatmul.f32.gmra.mxu0 %v356
    %v1534 = vpop.f32.mrf.mxu0
    %v1535 = vadd.f32 0.0, %v1534
    %1536 = vmatmul.f32.gmra.mxu0 %v361
    %v1537 = vpop.f32.mrf.mxu0
    %v1538 = vadd.f32 0.0, %v1537
    %1539 = vmatmul.f32.gmra.mxu0 %v366
    %v1540 = vpop.f32.mrf.mxu0
    %v1541 = vadd.f32 0.0, %v1540
    %1542 = vmatmul.f32.gmra.mxu0 %v371
    %v1543 = vpop.f32.mrf.mxu0
    %v1544 = vadd.f32 0.0, %v1543
    %1545 = vmatmul.f32.gmra.mxu0 %v376
    %v1546 = vpop.f32.mrf.mxu0
    %v1547 = vadd.f32 0.0, %v1546
    %1548 = vmatmul.f32.gmra.mxu0 %v381
    %v1549 = vpop.f32.mrf.mxu0
    %v1550 = vadd.f32 0.0, %v1549
    %1551 = vmatmul.f32.gmra.mxu0 %v386
    %v1552 = vpop.f32.mrf.mxu0
    %v1553 = vadd.f32 0.0, %v1552
    %1554 = vmatmul.f32.gmra.mxu0 %v391
    %v1555 = vpop.f32.mrf.mxu0
    %v1556 = vadd.f32 0.0, %v1555
    %1557 = vmatmul.f32.gmra.mxu0 %v396
    %v1558 = vpop.f32.mrf.mxu0
    %v1559 = vadd.f32 0.0, %v1558
    %1560 = vmatmul.f32.gmra.mxu0 %v401
    %v1561 = vpop.f32.mrf.mxu0
    %v1562 = vadd.f32 0.0, %v1561
    %1563 = vmatmul.f32.gmra.mxu0 %v406
    %v1564 = vpop.f32.mrf.mxu0
    %v1565 = vadd.f32 0.0, %v1564
    %1566 = vmatmul.f32.gmra.mxu0 %v411
    %v1567 = vpop.f32.mrf.mxu0
    %v1568 = vadd.f32 0.0, %v1567
    %1569 = vmatmul.f32.gmra.mxu0 %v416
    %v1570 = vpop.f32.mrf.mxu0
    %v1571 = vadd.f32 0.0, %v1570
    %1572 = vmatmul.f32.gmra.mxu0 %v421
    %v1573 = vpop.f32.mrf.mxu0
    %v1574 = vadd.f32 0.0, %v1573
    %1575 = vmatmul.f32.gmra.mxu0 %v426
    %v1576 = vpop.f32.mrf.mxu0
    %v1577 = vadd.f32 0.0, %v1576
    %1578 = vmatmul.f32.gmra.mxu0 %v431
    %v1579 = vpop.f32.mrf.mxu0
    %v1580 = vadd.f32 0.0, %v1579
    %1581 = vmatmul.f32.gmra.mxu0 %v436
    %v1582 = vpop.f32.mrf.mxu0
    %v1583 = vadd.f32 0.0, %v1582
    %1584 = vmatmul.f32.gmra.mxu0 %v441
    %v1585 = vpop.f32.mrf.mxu0
    %v1586 = vadd.f32 0.0, %v1585
    %1587 = vmatmul.f32.gmra.mxu0 %v446
    %v1588 = vpop.f32.mrf.mxu0
    %v1589 = vadd.f32 0.0, %v1588
    %1590 = vmatmul.f32.gmra.mxu0 %v451
    %v1591 = vpop.f32.mrf.mxu0
    %v1592 = vadd.f32 0.0, %v1591
    %1593 = vdwg.mxu0
    %1594 = vmatpush.msra.mxu0 %v550
    %1595 = vmatpush.msra.mxu0 %v547
    %1596 = vmatpush.msra.mxu0 %v544
    %1597 = vmatpush.msra.mxu0 %v541
    %1598 = vmatpush.msra.mxu0 %v538
    %1599 = vmatpush.msra.mxu0 %v535
    %1600 = vmatpush.msra.mxu0 %v532
    %1601 = vmatpush.msra.mxu0 %v529
    %1602 = vmatpush.msra.mxu0 %v526
    %1603 = vmatpush.msra.mxu0 %v523
    %1604 = vmatpush.msra.mxu0 %v520
    %1605 = vmatpush.msra.mxu0 %v517
    %1606 = vmatpush.msra.mxu0 %v514
    %1607 = vmatpush.msra.mxu0 %v511
    %1608 = vmatpush.msra.mxu0 %v508
    %1609 = vmatpush.msra.mxu0 %v505
    %1610 = vmatmul.f32.gmra.mxu0 %v257
    %v1611 = vpop.f32.mrf.mxu0
    %v1612 = vadd.f32 %v1475, %v1611
    %1613 = vmatmul.f32.gmra.mxu0 %v262
    %v1614 = vpop.f32.mrf.mxu0
    %v1615 = vadd.f32 %v1478, %v1614
    %1616 = vmatmul.f32.gmra.mxu0 %v267
    %v1617 = vpop.f32.mrf.mxu0
    %v1618 = vadd.f32 %v1481, %v1617
    %1619 = vmatmul.f32.gmra.mxu0 %v272
    %v1620 = vpop.f32.mrf.mxu0
    %v1621 = vadd.f32 %v1484, %v1620
    %1622 = vmatmul.f32.gmra.mxu0 %v277
    %v1623 = vpop.f32.mrf.mxu0
    %v1624 = vadd.f32 %v1487, %v1623
    %1625 = vmatmul.f32.gmra.mxu0 %v282
    %v1626 = vpop.f32.mrf.mxu0
    %v1627 = vadd.f32 %v1490, %v1626
    %1628 = vmatmul.f32.gmra.mxu0 %v287
    %v1629 = vpop.f32.mrf.mxu0
    %v1630 = vadd.f32 %v1493, %v1629
    %1631 = vmatmul.f32.gmra.mxu0 %v292
    %v1632 = vpop.f32.mrf.mxu0
    %v1633 = vadd.f32 %v1496, %v1632
    %1634 = vmatmul.f32.gmra.mxu0 %v297
    %v1635 = vpop.f32.mrf.mxu0
    %v1636 = vadd.f32 %v1499, %v1635
    %1637 = vmatmul.f32.gmra.mxu0 %v302
    %v1638 = vpop.f32.mrf.mxu0
    %v1639 = vadd.f32 %v1502, %v1638
    %1640 = vmatmul.f32.gmra.mxu0 %v307
    %v1641 = vpop.f32.mrf.mxu0
    %v1642 = vadd.f32 %v1505, %v1641
    %1643 = vmatmul.f32.gmra.mxu0 %v312
    %v1644 = vpop.f32.mrf.mxu0
    %v1645 = vadd.f32 %v1508, %v1644
    %1646 = vmatmul.f32.gmra.mxu0 %v317
    %v1647 = vpop.f32.mrf.mxu0
    %v1648 = vadd.f32 %v1511, %v1647
    %1649 = vmatmul.f32.gmra.mxu0 %v322
    %v1650 = vpop.f32.mrf.mxu0
    %v1651 = vadd.f32 %v1514, %v1650
    %1652 = vmatmul.f32.gmra.mxu0 %v327
    %v1653 = vpop.f32.mrf.mxu0
    %v1654 = vadd.f32 %v1517, %v1653
    %1655 = vmatmul.f32.gmra.mxu0 %v332
    %v1656 = vpop.f32.mrf.mxu0
    %v1657 = vadd.f32 %v1520, %v1656
    %1658 = vmatmul.f32.gmra.mxu0 %v337
    %v1659 = vpop.f32.mrf.mxu0
    %v1660 = vadd.f32 %v1523, %v1659
    %1661 = vmatmul.f32.gmra.mxu0 %v342
    %v1662 = vpop.f32.mrf.mxu0
    %v1663 = vadd.f32 %v1526, %v1662
    %1664 = vmatmul.f32.gmra.mxu0 %v347
    %v1665 = vpop.f32.mrf.mxu0
    %v1666 = vadd.f32 %v1529, %v1665
    %1667 = vmatmul.f32.gmra.mxu0 %v352
    %v1668 = vpop.f32.mrf.mxu0
    %v1669 = vadd.f32 %v1532, %v1668
    %1670 = vmatmul.f32.gmra.mxu0 %v357
    %v1671 = vpop.f32.mrf.mxu0
    %v1672 = vadd.f32 %v1535, %v1671
    %1673 = vmatmul.f32.gmra.mxu0 %v362
    %v1674 = vpop.f32.mrf.mxu0
    %v1675 = vadd.f32 %v1538, %v1674
    %1676 = vmatmul.f32.gmra.mxu0 %v367
    %v1677 = vpop.f32.mrf.mxu0
    %v1678 = vadd.f32 %v1541, %v1677
    %1679 = vmatmul.f32.gmra.mxu0 %v372
    %v1680 = vpop.f32.mrf.mxu0
    %v1681 = vadd.f32 %v1544, %v1680
    %1682 = vmatmul.f32.gmra.mxu0 %v377
    %v1683 = vpop.f32.mrf.mxu0
    %v1684 = vadd.f32 %v1547, %v1683
    %1685 = vmatmul.f32.gmra.mxu0 %v382
    %v1686 = vpop.f32.mrf.mxu0
    %v1687 = vadd.f32 %v1550, %v1686
    %1688 = vmatmul.f32.gmra.mxu0 %v387
    %v1689 = vpop.f32.mrf.mxu0
    %v1690 = vadd.f32 %v1553, %v1689
    %1691 = vmatmul.f32.gmra.mxu0 %v392
    %v1692 = vpop.f32.mrf.mxu0
    %v1693 = vadd.f32 %v1556, %v1692
    %1694 = vmatmul.f32.gmra.mxu0 %v397
    %v1695 = vpop.f32.mrf.mxu0
    %v1696 = vadd.f32 %v1559, %v1695
    %1697 = vmatmul.f32.gmra.mxu0 %v402
    %v1698 = vpop.f32.mrf.mxu0
    %v1699 = vadd.f32 %v1562, %v1698
    %1700 = vmatmul.f32.gmra.mxu0 %v407
    %v1701 = vpop.f32.mrf.mxu0
    %v1702 = vadd.f32 %v1565, %v1701
    %1703 = vmatmul.f32.gmra.mxu0 %v412
    %v1704 = vpop.f32.mrf.mxu0
    %v1705 = vadd.f32 %v1568, %v1704
    %1706 = vmatmul.f32.gmra.mxu0 %v417
    %v1707 = vpop.f32.mrf.mxu0
    %v1708 = vadd.f32 %v1571, %v1707
    %1709 = vmatmul.f32.gmra.mxu0 %v422
    %v1710 = vpop.f32.mrf.mxu0
    %v1711 = vadd.f32 %v1574, %v1710
    %1712 = vmatmul.f32.gmra.mxu0 %v427
    %v1713 = vpop.f32.mrf.mxu0
    %v1714 = vadd.f32 %v1577, %v1713
    %1715 = vmatmul.f32.gmra.mxu0 %v432
    %v1716 = vpop.f32.mrf.mxu0
    %v1717 = vadd.f32 %v1580, %v1716
    %1718 = vmatmul.f32.gmra.mxu0 %v437
    %v1719 = vpop.f32.mrf.mxu0
    %v1720 = vadd.f32 %v1583, %v1719
    %1721 = vmatmul.f32.gmra.mxu0 %v442
    %v1722 = vpop.f32.mrf.mxu0
    %v1723 = vadd.f32 %v1586, %v1722
    %1724 = vmatmul.f32.gmra.mxu0 %v447
    %v1725 = vpop.f32.mrf.mxu0
    %v1726 = vadd.f32 %v1589, %v1725
    %1727 = vmatmul.f32.gmra.mxu0 %v452
    %v1728 = vpop.f32.mrf.mxu0
    %v1729 = vadd.f32 %v1592, %v1728
    %1730 = vdwg.mxu0
    %1731 = vmatpush.msra.mxu0 %v598
    %1732 = vmatpush.msra.mxu0 %v595
    %1733 = vmatpush.msra.mxu0 %v592
    %1734 = vmatpush.msra.mxu0 %v589
    %1735 = vmatpush.msra.mxu0 %v586
    %1736 = vmatpush.msra.mxu0 %v583
    %1737 = vmatpush.msra.mxu0 %v580
    %1738 = vmatpush.msra.mxu0 %v577
    %1739 = vmatpush.msra.mxu0 %v574
    %1740 = vmatpush.msra.mxu0 %v571
    %1741 = vmatpush.msra.mxu0 %v568
    %1742 = vmatpush.msra.mxu0 %v565
    %1743 = vmatpush.msra.mxu0 %v562
    %1744 = vmatpush.msra.mxu0 %v559
    %1745 = vmatpush.msra.mxu0 %v556
    %1746 = vmatpush.msra.mxu0 %v553
    %1747 = vmatmul.f32.gmra.mxu0 %v258
    %v1748 = vpop.f32.mrf.mxu0
    %v1749 = vadd.f32 %v1612, %v1748
    %1750 = vmatmul.f32.gmra.mxu0 %v263
    %v1751 = vpop.f32.mrf.mxu0
    %v1752 = vadd.f32 %v1615, %v1751
    %1753 = vmatmul.f32.gmra.mxu0 %v268
    %v1754 = vpop.f32.mrf.mxu0
    %v1755 = vadd.f32 %v1618, %v1754
    %1756 = vmatmul.f32.gmra.mxu0 %v273
    %v1757 = vpop.f32.mrf.mxu0
    %v1758 = vadd.f32 %v1621, %v1757
    %1759 = vmatmul.f32.gmra.mxu0 %v278
    %v1760 = vpop.f32.mrf.mxu0
    %v1761 = vadd.f32 %v1624, %v1760
    %1762 = vmatmul.f32.gmra.mxu0 %v283
    %v1763 = vpop.f32.mrf.mxu0
    %v1764 = vadd.f32 %v1627, %v1763
    %1765 = vmatmul.f32.gmra.mxu0 %v288
    %v1766 = vpop.f32.mrf.mxu0
    %v1767 = vadd.f32 %v1630, %v1766
    %1768 = vmatmul.f32.gmra.mxu0 %v293
    %v1769 = vpop.f32.mrf.mxu0
    %v1770 = vadd.f32 %v1633, %v1769
    %1771 = vmatmul.f32.gmra.mxu0 %v298
    %v1772 = vpop.f32.mrf.mxu0
    %v1773 = vadd.f32 %v1636, %v1772
    %1774 = vmatmul.f32.gmra.mxu0 %v303
    %v1775 = vpop.f32.mrf.mxu0
    %v1776 = vadd.f32 %v1639, %v1775
    %1777 = vmatmul.f32.gmra.mxu0 %v308
    %v1778 = vpop.f32.mrf.mxu0
    %v1779 = vadd.f32 %v1642, %v1778
    %1780 = vmatmul.f32.gmra.mxu0 %v313
    %v1781 = vpop.f32.mrf.mxu0
    %v1782 = vadd.f32 %v1645, %v1781
    %1783 = vmatmul.f32.gmra.mxu0 %v318
    %v1784 = vpop.f32.mrf.mxu0
    %v1785 = vadd.f32 %v1648, %v1784
    %1786 = vmatmul.f32.gmra.mxu0 %v323
    %v1787 = vpop.f32.mrf.mxu0
    %v1788 = vadd.f32 %v1651, %v1787
    %1789 = vmatmul.f32.gmra.mxu0 %v328
    %v1790 = vpop.f32.mrf.mxu0
    %v1791 = vadd.f32 %v1654, %v1790
    %1792 = vmatmul.f32.gmra.mxu0 %v333
    %v1793 = vpop.f32.mrf.mxu0
    %v1794 = vadd.f32 %v1657, %v1793
    %1795 = vmatmul.f32.gmra.mxu0 %v338
    %v1796 = vpop.f32.mrf.mxu0
    %v1797 = vadd.f32 %v1660, %v1796
    %1798 = vmatmul.f32.gmra.mxu0 %v343
    %v1799 = vpop.f32.mrf.mxu0
    %v1800 = vadd.f32 %v1663, %v1799
    %1801 = vmatmul.f32.gmra.mxu0 %v348
    %v1802 = vpop.f32.mrf.mxu0
    %v1803 = vadd.f32 %v1666, %v1802
    %1804 = vmatmul.f32.gmra.mxu0 %v353
    %v1805 = vpop.f32.mrf.mxu0
    %v1806 = vadd.f32 %v1669, %v1805
    %1807 = vmatmul.f32.gmra.mxu0 %v358
    %v1808 = vpop.f32.mrf.mxu0
    %v1809 = vadd.f32 %v1672, %v1808
    %1810 = vmatmul.f32.gmra.mxu0 %v363
    %v1811 = vpop.f32.mrf.mxu0
    %v1812 = vadd.f32 %v1675, %v1811
    %1813 = vmatmul.f32.gmra.mxu0 %v368
    %v1814 = vpop.f32.mrf.mxu0
    %v1815 = vadd.f32 %v1678, %v1814
    %1816 = vmatmul.f32.gmra.mxu0 %v373
    %v1817 = vpop.f32.mrf.mxu0
    %v1818 = vadd.f32 %v1681, %v1817
    %1819 = vmatmul.f32.gmra.mxu0 %v378
    %v1820 = vpop.f32.mrf.mxu0
    %v1821 = vadd.f32 %v1684, %v1820
    %1822 = vmatmul.f32.gmra.mxu0 %v383
    %v1823 = vpop.f32.mrf.mxu0
    %v1824 = vadd.f32 %v1687, %v1823
    %1825 = vmatmul.f32.gmra.mxu0 %v388
    %v1826 = vpop.f32.mrf.mxu0
    %v1827 = vadd.f32 %v1690, %v1826
    %1828 = vmatmul.f32.gmra.mxu0 %v393
    %v1829 = vpop.f32.mrf.mxu0
    %v1830 = vadd.f32 %v1693, %v1829
    %1831 = vmatmul.f32.gmra.mxu0 %v398
    %v1832 = vpop.f32.mrf.mxu0
    %v1833 = vadd.f32 %v1696, %v1832
    %1834 = vmatmul.f32.gmra.mxu0 %v403
    %v1835 = vpop.f32.mrf.mxu0
    %v1836 = vadd.f32 %v1699, %v1835
    %1837 = vmatmul.f32.gmra.mxu0 %v408
    %v1838 = vpop.f32.mrf.mxu0
    %v1839 = vadd.f32 %v1702, %v1838
    %1840 = vmatmul.f32.gmra.mxu0 %v413
    %v1841 = vpop.f32.mrf.mxu0
    %v1842 = vadd.f32 %v1705, %v1841
    %1843 = vmatmul.f32.gmra.mxu0 %v418
    %v1844 = vpop.f32.mrf.mxu0
    %v1845 = vadd.f32 %v1708, %v1844
    %1846 = vmatmul.f32.gmra.mxu0 %v423
    %v1847 = vpop.f32.mrf.mxu0
    %v1848 = vadd.f32 %v1711, %v1847
    %1849 = vmatmul.f32.gmra.mxu0 %v428
    %v1850 = vpop.f32.mrf.mxu0
    %v1851 = vadd.f32 %v1714, %v1850
    %1852 = vmatmul.f32.gmra.mxu0 %v433
    %v1853 = vpop.f32.mrf.mxu0
    %v1854 = vadd.f32 %v1717, %v1853
    %1855 = vmatmul.f32.gmra.mxu0 %v438
    %v1856 = vpop.f32.mrf.mxu0
    %v1857 = vadd.f32 %v1720, %v1856
    %1858 = vmatmul.f32.gmra.mxu0 %v443
    %v1859 = vpop.f32.mrf.mxu0
    %v1860 = vadd.f32 %v1723, %v1859
    %1861 = vmatmul.f32.gmra.mxu0 %v448
    %v1862 = vpop.f32.mrf.mxu0
    %v1863 = vadd.f32 %v1726, %v1862
    %1864 = vmatmul.f32.gmra.mxu0 %v453
    %v1865 = vpop.f32.mrf.mxu0
    %v1866 = vadd.f32 %v1729, %v1865
    %1867 = vdwg.mxu0
    %1868 = vmatpush.msra.mxu0 %v646
    %1869 = vmatpush.msra.mxu0 %v643
    %1870 = vmatpush.msra.mxu0 %v640
    %1871 = vmatpush.msra.mxu0 %v637
    %1872 = vmatpush.msra.mxu0 %v634
    %1873 = vmatpush.msra.mxu0 %v631
    %1874 = vmatpush.msra.mxu0 %v628
    %1875 = vmatpush.msra.mxu0 %v625
    %1876 = vmatpush.msra.mxu0 %v622
    %1877 = vmatpush.msra.mxu0 %v619
    %1878 = vmatpush.msra.mxu0 %v616
    %1879 = vmatpush.msra.mxu0 %v613
    %1880 = vmatpush.msra.mxu0 %v610
    %1881 = vmatpush.msra.mxu0 %v607
    %1882 = vmatpush.msra.mxu0 %v604
    %1883 = vmatpush.msra.mxu0 %v601
    %1884 = vmatmul.f32.gmra.mxu0 %v259
    %v1885 = vpop.f32.mrf.mxu0
    %v1886 = vadd.f32 %v1749, %v1885
    %1887 = vmatmul.f32.gmra.mxu0 %v264
    %v1888 = vpop.f32.mrf.mxu0
    %v1889 = vadd.f32 %v1752, %v1888
    %1890 = vmatmul.f32.gmra.mxu0 %v269
    %v1891 = vpop.f32.mrf.mxu0
    %v1892 = vadd.f32 %v1755, %v1891
    %1893 = vmatmul.f32.gmra.mxu0 %v274
    %v1894 = vpop.f32.mrf.mxu0
    %v1895 = vadd.f32 %v1758, %v1894
    %1896 = vmatmul.f32.gmra.mxu0 %v279
    %v1897 = vpop.f32.mrf.mxu0
    %v1898 = vadd.f32 %v1761, %v1897
    %1899 = vmatmul.f32.gmra.mxu0 %v284
    %v1900 = vpop.f32.mrf.mxu0
    %v1901 = vadd.f32 %v1764, %v1900
    %1902 = vmatmul.f32.gmra.mxu0 %v289
    %v1903 = vpop.f32.mrf.mxu0
    %v1904 = vadd.f32 %v1767, %v1903
    %1905 = vmatmul.f32.gmra.mxu0 %v294
    %v1906 = vpop.f32.mrf.mxu0
    %v1907 = vadd.f32 %v1770, %v1906
    %1908 = vmatmul.f32.gmra.mxu0 %v299
    %v1909 = vpop.f32.mrf.mxu0
    %v1910 = vadd.f32 %v1773, %v1909
    %1911 = vmatmul.f32.gmra.mxu0 %v304
    %v1912 = vpop.f32.mrf.mxu0
    %v1913 = vadd.f32 %v1776, %v1912
    %1914 = vmatmul.f32.gmra.mxu0 %v309
    %v1915 = vpop.f32.mrf.mxu0
    %v1916 = vadd.f32 %v1779, %v1915
    %1917 = vmatmul.f32.gmra.mxu0 %v314
    %v1918 = vpop.f32.mrf.mxu0
    %v1919 = vadd.f32 %v1782, %v1918
    %1920 = vmatmul.f32.gmra.mxu0 %v319
    %v1921 = vpop.f32.mrf.mxu0
    %v1922 = vadd.f32 %v1785, %v1921
    %1923 = vmatmul.f32.gmra.mxu0 %v324
    %v1924 = vpop.f32.mrf.mxu0
    %v1925 = vadd.f32 %v1788, %v1924
    %1926 = vmatmul.f32.gmra.mxu0 %v329
    %v1927 = vpop.f32.mrf.mxu0
    %v1928 = vadd.f32 %v1791, %v1927
    %1929 = vmatmul.f32.gmra.mxu0 %v334
    %v1930 = vpop.f32.mrf.mxu0
    %v1931 = vadd.f32 %v1794, %v1930
    %1932 = vmatmul.f32.gmra.mxu0 %v339
    %v1933 = vpop.f32.mrf.mxu0
    %v1934 = vadd.f32 %v1797, %v1933
    %1935 = vmatmul.f32.gmra.mxu0 %v344
    %v1936 = vpop.f32.mrf.mxu0
    %v1937 = vadd.f32 %v1800, %v1936
    %1938 = vmatmul.f32.gmra.mxu0 %v349
    %v1939 = vpop.f32.mrf.mxu0
    %v1940 = vadd.f32 %v1803, %v1939
    %1941 = vmatmul.f32.gmra.mxu0 %v354
    %v1942 = vpop.f32.mrf.mxu0
    %v1943 = vadd.f32 %v1806, %v1942
    %1944 = vmatmul.f32.gmra.mxu0 %v359
    %v1945 = vpop.f32.mrf.mxu0
    %v1946 = vadd.f32 %v1809, %v1945
    %1947 = vmatmul.f32.gmra.mxu0 %v364
    %v1948 = vpop.f32.mrf.mxu0
    %v1949 = vadd.f32 %v1812, %v1948
    %1950 = vmatmul.f32.gmra.mxu0 %v369
    %v1951 = vpop.f32.mrf.mxu0
    %v1952 = vadd.f32 %v1815, %v1951
    %1953 = vmatmul.f32.gmra.mxu0 %v374
    %v1954 = vpop.f32.mrf.mxu0
    %v1955 = vadd.f32 %v1818, %v1954
    %1956 = vmatmul.f32.gmra.mxu0 %v379
    %v1957 = vpop.f32.mrf.mxu0
    %v1958 = vadd.f32 %v1821, %v1957
    %1959 = vmatmul.f32.gmra.mxu0 %v384
    %v1960 = vpop.f32.mrf.mxu0
    %v1961 = vadd.f32 %v1824, %v1960
    %1962 = vmatmul.f32.gmra.mxu0 %v389
    %v1963 = vpop.f32.mrf.mxu0
    %v1964 = vadd.f32 %v1827, %v1963
    %1965 = vmatmul.f32.gmra.mxu0 %v394
    %v1966 = vpop.f32.mrf.mxu0
    %v1967 = vadd.f32 %v1830, %v1966
    %1968 = vmatmul.f32.gmra.mxu0 %v399
    %v1969 = vpop.f32.mrf.mxu0
    %v1970 = vadd.f32 %v1833, %v1969
    %1971 = vmatmul.f32.gmra.mxu0 %v404
    %v1972 = vpop.f32.mrf.mxu0
    %v1973 = vadd.f32 %v1836, %v1972
    %1974 = vmatmul.f32.gmra.mxu0 %v409
    %v1975 = vpop.f32.mrf.mxu0
    %v1976 = vadd.f32 %v1839, %v1975
    %1977 = vmatmul.f32.gmra.mxu0 %v414
    %v1978 = vpop.f32.mrf.mxu0
    %v1979 = vadd.f32 %v1842, %v1978
    %1980 = vmatmul.f32.gmra.mxu0 %v419
    %v1981 = vpop.f32.mrf.mxu0
    %v1982 = vadd.f32 %v1845, %v1981
    %1983 = vmatmul.f32.gmra.mxu0 %v424
    %v1984 = vpop.f32.mrf.mxu0
    %v1985 = vadd.f32 %v1848, %v1984
    %1986 = vmatmul.f32.gmra.mxu0 %v429
    %v1987 = vpop.f32.mrf.mxu0
    %v1988 = vadd.f32 %v1851, %v1987
    %1989 = vmatmul.f32.gmra.mxu0 %v434
    %v1990 = vpop.f32.mrf.mxu0
    %v1991 = vadd.f32 %v1854, %v1990
    %1992 = vmatmul.f32.gmra.mxu0 %v439
    %v1993 = vpop.f32.mrf.mxu0
    %v1994 = vadd.f32 %v1857, %v1993
    %1995 = vmatmul.f32.gmra.mxu0 %v444
    %v1996 = vpop.f32.mrf.mxu0
    %v1997 = vadd.f32 %v1860, %v1996
    %1998 = vmatmul.f32.gmra.mxu0 %v449
    %v1999 = vpop.f32.mrf.mxu0
    %v2000 = vadd.f32 %v1863, %v1999
    %2001 = vmatmul.f32.gmra.mxu0 %v454
    %v2002 = vpop.f32.mrf.mxu0
    %v2003 = vadd.f32 %v1866, %v2002
    %2004 = vdwg.mxu0
    %2005 = vmatpush.msra.mxu0 0.0
    %2006 = vmatpush.msra.mxu0 0.0
    %2007 = vmatpush.msra.mxu0 0.0
    %2008 = vmatpush.msra.mxu0 0.0
    %2009 = vmatpush.msra.mxu0 0.0
    %2010 = vmatpush.msra.mxu0 0.0
    %2011 = vmatpush.msra.mxu0 0.0
    %2012 = vmatpush.msra.mxu0 0.0
    %2013 = vmatpush.msra.mxu0 0.0
    %2014 = vmatpush.msra.mxu0 0.0
    %2015 = vmatpush.msra.mxu0 0.0
    %2016 = vmatpush.msra.mxu0 0.0
    %2017 = vmatpush.msra.mxu0 0.0
    %2018 = vmatpush.msra.mxu0 0.0
    %2019 = vmatpush.msra.mxu0 0.0
    %2020 = vmatpush.msra.mxu0 %v649
    %2021 = vmatmul.f32.gmra.mxu0 %v653
    %v2022 = vpop.f32.mrf.mxu0
    %v2023 = vadd.f32 %v1886, %v2022
    %2024 = vmatmul.f32.gmra.mxu0 %v656
    %v2025 = vpop.f32.mrf.mxu0
    %v2026 = vadd.f32 %v1889, %v2025
    %2027 = vmatmul.f32.gmra.mxu0 %v659
    %v2028 = vpop.f32.mrf.mxu0
    %v2029 = vadd.f32 %v1892, %v2028
    %2030 = vmatmul.f32.gmra.mxu0 %v662
    %v2031 = vpop.f32.mrf.mxu0
    %v2032 = vadd.f32 %v1895, %v2031
    %2033 = vmatmul.f32.gmra.mxu0 %v665
    %v2034 = vpop.f32.mrf.mxu0
    %v2035 = vadd.f32 %v1898, %v2034
    %2036 = vmatmul.f32.gmra.mxu0 %v668
    %v2037 = vpop.f32.mrf.mxu0
    %v2038 = vadd.f32 %v1901, %v2037
    %2039 = vmatmul.f32.gmra.mxu0 %v671
    %v2040 = vpop.f32.mrf.mxu0
    %v2041 = vadd.f32 %v1904, %v2040
    %2042 = vmatmul.f32.gmra.mxu0 %v674
    %v2043 = vpop.f32.mrf.mxu0
    %v2044 = vadd.f32 %v1907, %v2043
    %2045 = vmatmul.f32.gmra.mxu0 %v677
    %v2046 = vpop.f32.mrf.mxu0
    %v2047 = vadd.f32 %v1910, %v2046
    %2048 = vmatmul.f32.gmra.mxu0 %v680
    %v2049 = vpop.f32.mrf.mxu0
    %v2050 = vadd.f32 %v1913, %v2049
    %2051 = vmatmul.f32.gmra.mxu0 %v683
    %v2052 = vpop.f32.mrf.mxu0
    %v2053 = vadd.f32 %v1916, %v2052
    %2054 = vmatmul.f32.gmra.mxu0 %v686
    %v2055 = vpop.f32.mrf.mxu0
    %v2056 = vadd.f32 %v1919, %v2055
    %2057 = vmatmul.f32.gmra.mxu0 %v689
    %v2058 = vpop.f32.mrf.mxu0
    %v2059 = vadd.f32 %v1922, %v2058
    %2060 = vmatmul.f32.gmra.mxu0 %v692
    %v2061 = vpop.f32.mrf.mxu0
    %v2062 = vadd.f32 %v1925, %v2061
    %2063 = vmatmul.f32.gmra.mxu0 %v695
    %v2064 = vpop.f32.mrf.mxu0
    %v2065 = vadd.f32 %v1928, %v2064
    %2066 = vmatmul.f32.gmra.mxu0 %v698
    %v2067 = vpop.f32.mrf.mxu0
    %v2068 = vadd.f32 %v1931, %v2067
    %2069 = vmatmul.f32.gmra.mxu0 %v701
    %v2070 = vpop.f32.mrf.mxu0
    %v2071 = vadd.f32 %v1934, %v2070
    %2072 = vmatmul.f32.gmra.mxu0 %v704
    %v2073 = vpop.f32.mrf.mxu0
    %v2074 = vadd.f32 %v1937, %v2073
    %2075 = vmatmul.f32.gmra.mxu0 %v707
    %v2076 = vpop.f32.mrf.mxu0
    %v2077 = vadd.f32 %v1940, %v2076
    %2078 = vmatmul.f32.gmra.mxu0 %v710
    %v2079 = vpop.f32.mrf.mxu0
    %v2080 = vadd.f32 %v1943, %v2079
    %2081 = vmatmul.f32.gmra.mxu0 %v713
    %v2082 = vpop.f32.mrf.mxu0
    %v2083 = vadd.f32 %v1946, %v2082
    %2084 = vmatmul.f32.gmra.mxu0 %v716
    %v2085 = vpop.f32.mrf.mxu0
    %v2086 = vadd.f32 %v1949, %v2085
    %2087 = vmatmul.f32.gmra.mxu0 %v719
    %v2088 = vpop.f32.mrf.mxu0
    %v2089 = vadd.f32 %v1952, %v2088
    %2090 = vmatmul.f32.gmra.mxu0 %v722
    %v2091 = vpop.f32.mrf.mxu0
    %v2092 = vadd.f32 %v1955, %v2091
    %2093 = vmatmul.f32.gmra.mxu0 %v725
    %v2094 = vpop.f32.mrf.mxu0
    %v2095 = vadd.f32 %v1958, %v2094
    %2096 = vmatmul.f32.gmra.mxu0 %v728
    %v2097 = vpop.f32.mrf.mxu0
    %v2098 = vadd.f32 %v1961, %v2097
    %2099 = vmatmul.f32.gmra.mxu0 %v731
    %v2100 = vpop.f32.mrf.mxu0
    %v2101 = vadd.f32 %v1964, %v2100
    %2102 = vmatmul.f32.gmra.mxu0 %v734
    %v2103 = vpop.f32.mrf.mxu0
    %v2104 = vadd.f32 %v1967, %v2103
    %2105 = vmatmul.f32.gmra.mxu0 %v737
    %v2106 = vpop.f32.mrf.mxu0
    %v2107 = vadd.f32 %v1970, %v2106
    %2108 = vmatmul.f32.gmra.mxu0 %v740
    %v2109 = vpop.f32.mrf.mxu0
    %v2110 = vadd.f32 %v1973, %v2109
    %2111 = vmatmul.f32.gmra.mxu0 %v743
    %v2112 = vpop.f32.mrf.mxu0
    %v2113 = vadd.f32 %v1976, %v2112
    %2114 = vmatmul.f32.gmra.mxu0 %v746
    %v2115 = vpop.f32.mrf.mxu0
    %v2116 = vadd.f32 %v1979, %v2115
    %2117 = vmatmul.f32.gmra.mxu0 %v749
    %v2118 = vpop.f32.mrf.mxu0
    %v2119 = vadd.f32 %v1982, %v2118
    %2120 = vmatmul.f32.gmra.mxu0 %v752
    %v2121 = vpop.f32.mrf.mxu0
    %v2122 = vadd.f32 %v1985, %v2121
    %2123 = vmatmul.f32.gmra.mxu0 %v755
    %v2124 = vpop.f32.mrf.mxu0
    %v2125 = vadd.f32 %v1988, %v2124
    %2126 = vmatmul.f32.gmra.mxu0 %v758
    %v2127 = vpop.f32.mrf.mxu0
    %v2128 = vadd.f32 %v1991, %v2127
    %2129 = vmatmul.f32.gmra.mxu0 %v761
    %v2130 = vpop.f32.mrf.mxu0
    %v2131 = vadd.f32 %v1994, %v2130
    %2132 = vmatmul.f32.gmra.mxu0 %v764
    %v2133 = vpop.f32.mrf.mxu0
    %v2134 = vadd.f32 %v1997, %v2133
    %2135 = vmatmul.f32.gmra.mxu0 %v767
    %v2136 = vpop.f32.mrf.mxu0
    %v2137 = vadd.f32 %v2000, %v2136
    %2138 = vmatmul.f32.gmra.mxu0 %v770
    %v2139 = vpop.f32.mrf.mxu0
    %v2140 = vadd.f32 %v2003, %v2139
    %2141 = vdwg.mxu0
    %2142 = vmatpush.msra.mxu0 %v503
    %2143 = vmatpush.msra.mxu0 %v500
    %2144 = vmatpush.msra.mxu0 %v497
    %2145 = vmatpush.msra.mxu0 %v494
    %2146 = vmatpush.msra.mxu0 %v491
    %2147 = vmatpush.msra.mxu0 %v488
    %2148 = vmatpush.msra.mxu0 %v485
    %2149 = vmatpush.msra.mxu0 %v482
    %2150 = vmatpush.msra.mxu0 %v479
    %2151 = vmatpush.msra.mxu0 %v476
    %2152 = vmatpush.msra.mxu0 %v473
    %2153 = vmatpush.msra.mxu0 %v470
    %2154 = vmatpush.msra.mxu0 %v467
    %2155 = vmatpush.msra.mxu0 %v464
    %2156 = vmatpush.msra.mxu0 %v461
    %2157 = vmatpush.msra.mxu0 %v458
    %2158 = vmatmul.f32.gmra.mxu0 %v256
    %v2159 = vpop.f32.mrf.mxu0
    %v2160 = vadd.f32 0.0, %v2159
    %2161 = vmatmul.f32.gmra.mxu0 %v261
    %v2162 = vpop.f32.mrf.mxu0
    %v2163 = vadd.f32 0.0, %v2162
    %2164 = vmatmul.f32.gmra.mxu0 %v266
    %v2165 = vpop.f32.mrf.mxu0
    %v2166 = vadd.f32 0.0, %v2165
    %2167 = vmatmul.f32.gmra.mxu0 %v271
    %v2168 = vpop.f32.mrf.mxu0
    %v2169 = vadd.f32 0.0, %v2168
    %2170 = vmatmul.f32.gmra.mxu0 %v276
    %v2171 = vpop.f32.mrf.mxu0
    %v2172 = vadd.f32 0.0, %v2171
    %2173 = vmatmul.f32.gmra.mxu0 %v281
    %v2174 = vpop.f32.mrf.mxu0
    %v2175 = vadd.f32 0.0, %v2174
    %2176 = vmatmul.f32.gmra.mxu0 %v286
    %v2177 = vpop.f32.mrf.mxu0
    %v2178 = vadd.f32 0.0, %v2177
    %2179 = vmatmul.f32.gmra.mxu0 %v291
    %v2180 = vpop.f32.mrf.mxu0
    %v2181 = vadd.f32 0.0, %v2180
    %2182 = vmatmul.f32.gmra.mxu0 %v296
    %v2183 = vpop.f32.mrf.mxu0
    %v2184 = vadd.f32 0.0, %v2183
    %2185 = vmatmul.f32.gmra.mxu0 %v301
    %v2186 = vpop.f32.mrf.mxu0
    %v2187 = vadd.f32 0.0, %v2186
    %2188 = vmatmul.f32.gmra.mxu0 %v306
    %v2189 = vpop.f32.mrf.mxu0
    %v2190 = vadd.f32 0.0, %v2189
    %2191 = vmatmul.f32.gmra.mxu0 %v311
    %v2192 = vpop.f32.mrf.mxu0
    %v2193 = vadd.f32 0.0, %v2192
    %2194 = vmatmul.f32.gmra.mxu0 %v316
    %v2195 = vpop.f32.mrf.mxu0
    %v2196 = vadd.f32 0.0, %v2195
    %2197 = vmatmul.f32.gmra.mxu0 %v321
    %v2198 = vpop.f32.mrf.mxu0
    %v2199 = vadd.f32 0.0, %v2198
    %2200 = vmatmul.f32.gmra.mxu0 %v326
    %v2201 = vpop.f32.mrf.mxu0
    %v2202 = vadd.f32 0.0, %v2201
    %2203 = vmatmul.f32.gmra.mxu0 %v331
    %v2204 = vpop.f32.mrf.mxu0
    %v2205 = vadd.f32 0.0, %v2204
    %2206 = vmatmul.f32.gmra.mxu0 %v336
    %v2207 = vpop.f32.mrf.mxu0
    %v2208 = vadd.f32 0.0, %v2207
    %2209 = vmatmul.f32.gmra.mxu0 %v341
    %v2210 = vpop.f32.mrf.mxu0
    %v2211 = vadd.f32 0.0, %v2210
    %2212 = vmatmul.f32.gmra.mxu0 %v346
    %v2213 = vpop.f32.mrf.mxu0
    %v2214 = vadd.f32 0.0, %v2213
    %2215 = vmatmul.f32.gmra.mxu0 %v351
    %v2216 = vpop.f32.mrf.mxu0
    %v2217 = vadd.f32 0.0, %v2216
    %2218 = vmatmul.f32.gmra.mxu0 %v356
    %v2219 = vpop.f32.mrf.mxu0
    %v2220 = vadd.f32 0.0, %v2219
    %2221 = vmatmul.f32.gmra.mxu0 %v361
    %v2222 = vpop.f32.mrf.mxu0
    %v2223 = vadd.f32 0.0, %v2222
    %2224 = vmatmul.f32.gmra.mxu0 %v366
    %v2225 = vpop.f32.mrf.mxu0
    %v2226 = vadd.f32 0.0, %v2225
    %2227 = vmatmul.f32.gmra.mxu0 %v371
    %v2228 = vpop.f32.mrf.mxu0
    %v2229 = vadd.f32 0.0, %v2228
    %2230 = vmatmul.f32.gmra.mxu0 %v376
    %v2231 = vpop.f32.mrf.mxu0
    %v2232 = vadd.f32 0.0, %v2231
    %2233 = vmatmul.f32.gmra.mxu0 %v381
    %v2234 = vpop.f32.mrf.mxu0
    %v2235 = vadd.f32 0.0, %v2234
    %2236 = vmatmul.f32.gmra.mxu0 %v386
    %v2237 = vpop.f32.mrf.mxu0
    %v2238 = vadd.f32 0.0, %v2237
    %2239 = vmatmul.f32.gmra.mxu0 %v391
    %v2240 = vpop.f32.mrf.mxu0
    %v2241 = vadd.f32 0.0, %v2240
    %2242 = vmatmul.f32.gmra.mxu0 %v396
    %v2243 = vpop.f32.mrf.mxu0
    %v2244 = vadd.f32 0.0, %v2243
    %2245 = vmatmul.f32.gmra.mxu0 %v401
    %v2246 = vpop.f32.mrf.mxu0
    %v2247 = vadd.f32 0.0, %v2246
    %2248 = vmatmul.f32.gmra.mxu0 %v406
    %v2249 = vpop.f32.mrf.mxu0
    %v2250 = vadd.f32 0.0, %v2249
    %2251 = vmatmul.f32.gmra.mxu0 %v411
    %v2252 = vpop.f32.mrf.mxu0
    %v2253 = vadd.f32 0.0, %v2252
    %2254 = vmatmul.f32.gmra.mxu0 %v416
    %v2255 = vpop.f32.mrf.mxu0
    %v2256 = vadd.f32 0.0, %v2255
    %2257 = vmatmul.f32.gmra.mxu0 %v421
    %v2258 = vpop.f32.mrf.mxu0
    %v2259 = vadd.f32 0.0, %v2258
    %2260 = vmatmul.f32.gmra.mxu0 %v426
    %v2261 = vpop.f32.mrf.mxu0
    %v2262 = vadd.f32 0.0, %v2261
    %2263 = vmatmul.f32.gmra.mxu0 %v431
    %v2264 = vpop.f32.mrf.mxu0
    %v2265 = vadd.f32 0.0, %v2264
    %2266 = vmatmul.f32.gmra.mxu0 %v436
    %v2267 = vpop.f32.mrf.mxu0
    %v2268 = vadd.f32 0.0, %v2267
    %2269 = vmatmul.f32.gmra.mxu0 %v441
    %v2270 = vpop.f32.mrf.mxu0
    %v2271 = vadd.f32 0.0, %v2270
    %2272 = vmatmul.f32.gmra.mxu0 %v446
    %v2273 = vpop.f32.mrf.mxu0
    %v2274 = vadd.f32 0.0, %v2273
    %2275 = vmatmul.f32.gmra.mxu0 %v451
    %v2276 = vpop.f32.mrf.mxu0
    %v2277 = vadd.f32 0.0, %v2276
    %2278 = vdwg.mxu0
    %2279 = vmatpush.msra.mxu0 %v551
    %2280 = vmatpush.msra.mxu0 %v548
    %2281 = vmatpush.msra.mxu0 %v545
    %2282 = vmatpush.msra.mxu0 %v542
    %2283 = vmatpush.msra.mxu0 %v539
    %2284 = vmatpush.msra.mxu0 %v536
    %2285 = vmatpush.msra.mxu0 %v533
    %2286 = vmatpush.msra.mxu0 %v530
    %2287 = vmatpush.msra.mxu0 %v527
    %2288 = vmatpush.msra.mxu0 %v524
    %2289 = vmatpush.msra.mxu0 %v521
    %2290 = vmatpush.msra.mxu0 %v518
    %2291 = vmatpush.msra.mxu0 %v515
    %2292 = vmatpush.msra.mxu0 %v512
    %2293 = vmatpush.msra.mxu0 %v509
    %2294 = vmatpush.msra.mxu0 %v506
    %2295 = vmatmul.f32.gmra.mxu0 %v257
    %v2296 = vpop.f32.mrf.mxu0
    %v2297 = vadd.f32 %v2160, %v2296
    %2298 = vmatmul.f32.gmra.mxu0 %v262
    %v2299 = vpop.f32.mrf.mxu0
    %v2300 = vadd.f32 %v2163, %v2299
    %2301 = vmatmul.f32.gmra.mxu0 %v267
    %v2302 = vpop.f32.mrf.mxu0
    %v2303 = vadd.f32 %v2166, %v2302
    %2304 = vmatmul.f32.gmra.mxu0 %v272
    %v2305 = vpop.f32.mrf.mxu0
    %v2306 = vadd.f32 %v2169, %v2305
    %2307 = vmatmul.f32.gmra.mxu0 %v277
    %v2308 = vpop.f32.mrf.mxu0
    %v2309 = vadd.f32 %v2172, %v2308
    %2310 = vmatmul.f32.gmra.mxu0 %v282
    %v2311 = vpop.f32.mrf.mxu0
    %v2312 = vadd.f32 %v2175, %v2311
    %2313 = vmatmul.f32.gmra.mxu0 %v287
    %v2314 = vpop.f32.mrf.mxu0
    %v2315 = vadd.f32 %v2178, %v2314
    %2316 = vmatmul.f32.gmra.mxu0 %v292
    %v2317 = vpop.f32.mrf.mxu0
    %v2318 = vadd.f32 %v2181, %v2317
    %2319 = vmatmul.f32.gmra.mxu0 %v297
    %v2320 = vpop.f32.mrf.mxu0
    %v2321 = vadd.f32 %v2184, %v2320
    %2322 = vmatmul.f32.gmra.mxu0 %v302
    %v2323 = vpop.f32.mrf.mxu0
    %v2324 = vadd.f32 %v2187, %v2323
    %2325 = vmatmul.f32.gmra.mxu0 %v307
    %v2326 = vpop.f32.mrf.mxu0
    %v2327 = vadd.f32 %v2190, %v2326
    %2328 = vmatmul.f32.gmra.mxu0 %v312
    %v2329 = vpop.f32.mrf.mxu0
    %v2330 = vadd.f32 %v2193, %v2329
    %2331 = vmatmul.f32.gmra.mxu0 %v317
    %v2332 = vpop.f32.mrf.mxu0
    %v2333 = vadd.f32 %v2196, %v2332
    %2334 = vmatmul.f32.gmra.mxu0 %v322
    %v2335 = vpop.f32.mrf.mxu0
    %v2336 = vadd.f32 %v2199, %v2335
    %2337 = vmatmul.f32.gmra.mxu0 %v327
    %v2338 = vpop.f32.mrf.mxu0
    %v2339 = vadd.f32 %v2202, %v2338
    %2340 = vmatmul.f32.gmra.mxu0 %v332
    %v2341 = vpop.f32.mrf.mxu0
    %v2342 = vadd.f32 %v2205, %v2341
    %2343 = vmatmul.f32.gmra.mxu0 %v337
    %v2344 = vpop.f32.mrf.mxu0
    %v2345 = vadd.f32 %v2208, %v2344
    %2346 = vmatmul.f32.gmra.mxu0 %v342
    %v2347 = vpop.f32.mrf.mxu0
    %v2348 = vadd.f32 %v2211, %v2347
    %2349 = vmatmul.f32.gmra.mxu0 %v347
    %v2350 = vpop.f32.mrf.mxu0
    %v2351 = vadd.f32 %v2214, %v2350
    %2352 = vmatmul.f32.gmra.mxu0 %v352
    %v2353 = vpop.f32.mrf.mxu0
    %v2354 = vadd.f32 %v2217, %v2353
    %2355 = vmatmul.f32.gmra.mxu0 %v357
    %v2356 = vpop.f32.mrf.mxu0
    %v2357 = vadd.f32 %v2220, %v2356
    %2358 = vmatmul.f32.gmra.mxu0 %v362
    %v2359 = vpop.f32.mrf.mxu0
    %v2360 = vadd.f32 %v2223, %v2359
    %2361 = vmatmul.f32.gmra.mxu0 %v367
    %v2362 = vpop.f32.mrf.mxu0
    %v2363 = vadd.f32 %v2226, %v2362
    %2364 = vmatmul.f32.gmra.mxu0 %v372
    %v2365 = vpop.f32.mrf.mxu0
    %v2366 = vadd.f32 %v2229, %v2365
    %2367 = vmatmul.f32.gmra.mxu0 %v377
    %v2368 = vpop.f32.mrf.mxu0
    %v2369 = vadd.f32 %v2232, %v2368
    %2370 = vmatmul.f32.gmra.mxu0 %v382
    %v2371 = vpop.f32.mrf.mxu0
    %v2372 = vadd.f32 %v2235, %v2371
    %2373 = vmatmul.f32.gmra.mxu0 %v387
    %v2374 = vpop.f32.mrf.mxu0
    %v2375 = vadd.f32 %v2238, %v2374
    %2376 = vmatmul.f32.gmra.mxu0 %v392
    %v2377 = vpop.f32.mrf.mxu0
    %v2378 = vadd.f32 %v2241, %v2377
    %2379 = vmatmul.f32.gmra.mxu0 %v397
    %v2380 = vpop.f32.mrf.mxu0
    %v2381 = vadd.f32 %v2244, %v2380
    %2382 = vmatmul.f32.gmra.mxu0 %v402
    %v2383 = vpop.f32.mrf.mxu0
    %v2384 = vadd.f32 %v2247, %v2383
    %2385 = vmatmul.f32.gmra.mxu0 %v407
    %v2386 = vpop.f32.mrf.mxu0
    %v2387 = vadd.f32 %v2250, %v2386
    %2388 = vmatmul.f32.gmra.mxu0 %v412
    %v2389 = vpop.f32.mrf.mxu0
    %v2390 = vadd.f32 %v2253, %v2389
    %2391 = vmatmul.f32.gmra.mxu0 %v417
    %v2392 = vpop.f32.mrf.mxu0
    %v2393 = vadd.f32 %v2256, %v2392
    %2394 = vmatmul.f32.gmra.mxu0 %v422
    %v2395 = vpop.f32.mrf.mxu0
    %v2396 = vadd.f32 %v2259, %v2395
    %2397 = vmatmul.f32.gmra.mxu0 %v427
    %v2398 = vpop.f32.mrf.mxu0
    %v2399 = vadd.f32 %v2262, %v2398
    %2400 = vmatmul.f32.gmra.mxu0 %v432
    %v2401 = vpop.f32.mrf.mxu0
    %v2402 = vadd.f32 %v2265, %v2401
    %2403 = vmatmul.f32.gmra.mxu0 %v437
    %v2404 = vpop.f32.mrf.mxu0
    %v2405 = vadd.f32 %v2268, %v2404
    %2406 = vmatmul.f32.gmra.mxu0 %v442
    %v2407 = vpop.f32.mrf.mxu0
    %v2408 = vadd.f32 %v2271, %v2407
    %2409 = vmatmul.f32.gmra.mxu0 %v447
    %v2410 = vpop.f32.mrf.mxu0
    %v2411 = vadd.f32 %v2274, %v2410
    %2412 = vmatmul.f32.gmra.mxu0 %v452
    %v2413 = vpop.f32.mrf.mxu0
    %v2414 = vadd.f32 %v2277, %v2413
    %2415 = vdwg.mxu0
    %2416 = vmatpush.msra.mxu0 %v599
    %2417 = vmatpush.msra.mxu0 %v596
    %2418 = vmatpush.msra.mxu0 %v593
    %2419 = vmatpush.msra.mxu0 %v590
    %2420 = vmatpush.msra.mxu0 %v587
    %2421 = vmatpush.msra.mxu0 %v584
    %2422 = vmatpush.msra.mxu0 %v581
    %2423 = vmatpush.msra.mxu0 %v578
    %2424 = vmatpush.msra.mxu0 %v575
    %2425 = vmatpush.msra.mxu0 %v572
    %2426 = vmatpush.msra.mxu0 %v569
    %2427 = vmatpush.msra.mxu0 %v566
    %2428 = vmatpush.msra.mxu0 %v563
    %2429 = vmatpush.msra.mxu0 %v560
    %2430 = vmatpush.msra.mxu0 %v557
    %2431 = vmatpush.msra.mxu0 %v554
    %2432 = vmatmul.f32.gmra.mxu0 %v258
    %v2433 = vpop.f32.mrf.mxu0
    %v2434 = vadd.f32 %v2297, %v2433
    %2435 = vmatmul.f32.gmra.mxu0 %v263
    %v2436 = vpop.f32.mrf.mxu0
    %v2437 = vadd.f32 %v2300, %v2436
    %2438 = vmatmul.f32.gmra.mxu0 %v268
    %v2439 = vpop.f32.mrf.mxu0
    %v2440 = vadd.f32 %v2303, %v2439
    %2441 = vmatmul.f32.gmra.mxu0 %v273
    %v2442 = vpop.f32.mrf.mxu0
    %v2443 = vadd.f32 %v2306, %v2442
    %2444 = vmatmul.f32.gmra.mxu0 %v278
    %v2445 = vpop.f32.mrf.mxu0
    %v2446 = vadd.f32 %v2309, %v2445
    %2447 = vmatmul.f32.gmra.mxu0 %v283
    %v2448 = vpop.f32.mrf.mxu0
    %v2449 = vadd.f32 %v2312, %v2448
    %2450 = vmatmul.f32.gmra.mxu0 %v288
    %v2451 = vpop.f32.mrf.mxu0
    %v2452 = vadd.f32 %v2315, %v2451
    %2453 = vmatmul.f32.gmra.mxu0 %v293
    %v2454 = vpop.f32.mrf.mxu0
    %v2455 = vadd.f32 %v2318, %v2454
    %2456 = vmatmul.f32.gmra.mxu0 %v298
    %v2457 = vpop.f32.mrf.mxu0
    %v2458 = vadd.f32 %v2321, %v2457
    %2459 = vmatmul.f32.gmra.mxu0 %v303
    %v2460 = vpop.f32.mrf.mxu0
    %v2461 = vadd.f32 %v2324, %v2460
    %2462 = vmatmul.f32.gmra.mxu0 %v308
    %v2463 = vpop.f32.mrf.mxu0
    %v2464 = vadd.f32 %v2327, %v2463
    %2465 = vmatmul.f32.gmra.mxu0 %v313
    %v2466 = vpop.f32.mrf.mxu0
    %v2467 = vadd.f32 %v2330, %v2466
    %2468 = vmatmul.f32.gmra.mxu0 %v318
    %v2469 = vpop.f32.mrf.mxu0
    %v2470 = vadd.f32 %v2333, %v2469
    %2471 = vmatmul.f32.gmra.mxu0 %v323
    %v2472 = vpop.f32.mrf.mxu0
    %v2473 = vadd.f32 %v2336, %v2472
    %2474 = vmatmul.f32.gmra.mxu0 %v328
    %v2475 = vpop.f32.mrf.mxu0
    %v2476 = vadd.f32 %v2339, %v2475
    %2477 = vmatmul.f32.gmra.mxu0 %v333
    %v2478 = vpop.f32.mrf.mxu0
    %v2479 = vadd.f32 %v2342, %v2478
    %2480 = vmatmul.f32.gmra.mxu0 %v338
    %v2481 = vpop.f32.mrf.mxu0
    %v2482 = vadd.f32 %v2345, %v2481
    %2483 = vmatmul.f32.gmra.mxu0 %v343
    %v2484 = vpop.f32.mrf.mxu0
    %v2485 = vadd.f32 %v2348, %v2484
    %2486 = vmatmul.f32.gmra.mxu0 %v348
    %v2487 = vpop.f32.mrf.mxu0
    %v2488 = vadd.f32 %v2351, %v2487
    %2489 = vmatmul.f32.gmra.mxu0 %v353
    %v2490 = vpop.f32.mrf.mxu0
    %v2491 = vadd.f32 %v2354, %v2490
    %2492 = vmatmul.f32.gmra.mxu0 %v358
    %v2493 = vpop.f32.mrf.mxu0
    %v2494 = vadd.f32 %v2357, %v2493
    %2495 = vmatmul.f32.gmra.mxu0 %v363
    %v2496 = vpop.f32.mrf.mxu0
    %v2497 = vadd.f32 %v2360, %v2496
    %2498 = vmatmul.f32.gmra.mxu0 %v368
    %v2499 = vpop.f32.mrf.mxu0
    %v2500 = vadd.f32 %v2363, %v2499
    %2501 = vmatmul.f32.gmra.mxu0 %v373
    %v2502 = vpop.f32.mrf.mxu0
    %v2503 = vadd.f32 %v2366, %v2502
    %2504 = vmatmul.f32.gmra.mxu0 %v378
    %v2505 = vpop.f32.mrf.mxu0
    %v2506 = vadd.f32 %v2369, %v2505
    %2507 = vmatmul.f32.gmra.mxu0 %v383
    %v2508 = vpop.f32.mrf.mxu0
    %v2509 = vadd.f32 %v2372, %v2508
    %2510 = vmatmul.f32.gmra.mxu0 %v388
    %v2511 = vpop.f32.mrf.mxu0
    %v2512 = vadd.f32 %v2375, %v2511
    %2513 = vmatmul.f32.gmra.mxu0 %v393
    %v2514 = vpop.f32.mrf.mxu0
    %v2515 = vadd.f32 %v2378, %v2514
    %2516 = vmatmul.f32.gmra.mxu0 %v398
    %v2517 = vpop.f32.mrf.mxu0
    %v2518 = vadd.f32 %v2381, %v2517
    %2519 = vmatmul.f32.gmra.mxu0 %v403
    %v2520 = vpop.f32.mrf.mxu0
    %v2521 = vadd.f32 %v2384, %v2520
    %2522 = vmatmul.f32.gmra.mxu0 %v408
    %v2523 = vpop.f32.mrf.mxu0
    %v2524 = vadd.f32 %v2387, %v2523
    %2525 = vmatmul.f32.gmra.mxu0 %v413
    %v2526 = vpop.f32.mrf.mxu0
    %v2527 = vadd.f32 %v2390, %v2526
    %2528 = vmatmul.f32.gmra.mxu0 %v418
    %v2529 = vpop.f32.mrf.mxu0
    %v2530 = vadd.f32 %v2393, %v2529
    %2531 = vmatmul.f32.gmra.mxu0 %v423
    %v2532 = vpop.f32.mrf.mxu0
    %v2533 = vadd.f32 %v2396, %v2532
    %2534 = vmatmul.f32.gmra.mxu0 %v428
    %v2535 = vpop.f32.mrf.mxu0
    %v2536 = vadd.f32 %v2399, %v2535
    %2537 = vmatmul.f32.gmra.mxu0 %v433
    %v2538 = vpop.f32.mrf.mxu0
    %v2539 = vadd.f32 %v2402, %v2538
    %2540 = vmatmul.f32.gmra.mxu0 %v438
    %v2541 = vpop.f32.mrf.mxu0
    %v2542 = vadd.f32 %v2405, %v2541
    %2543 = vmatmul.f32.gmra.mxu0 %v443
    %v2544 = vpop.f32.mrf.mxu0
    %v2545 = vadd.f32 %v2408, %v2544
    %2546 = vmatmul.f32.gmra.mxu0 %v448
    %v2547 = vpop.f32.mrf.mxu0
    %v2548 = vadd.f32 %v2411, %v2547
    %2549 = vmatmul.f32.gmra.mxu0 %v453
    %v2550 = vpop.f32.mrf.mxu0
    %v2551 = vadd.f32 %v2414, %v2550
    %2552 = vdwg.mxu0
    %2553 = vmatpush.msra.mxu0 %v647
    %2554 = vmatpush.msra.mxu0 %v644
    %2555 = vmatpush.msra.mxu0 %v641
    %2556 = vmatpush.msra.mxu0 %v638
    %2557 = vmatpush.msra.mxu0 %v635
    %2558 = vmatpush.msra.mxu0 %v632
    %2559 = vmatpush.msra.mxu0 %v629
    %2560 = vmatpush.msra.mxu0 %v626
    %2561 = vmatpush.msra.mxu0 %v623
    %2562 = vmatpush.msra.mxu0 %v620
    %2563 = vmatpush.msra.mxu0 %v617
    %2564 = vmatpush.msra.mxu0 %v614
    %2565 = vmatpush.msra.mxu0 %v611
    %2566 = vmatpush.msra.mxu0 %v608
    %2567 = vmatpush.msra.mxu0 %v605
    %2568 = vmatpush.msra.mxu0 %v602
    %2569 = vmatmul.f32.gmra.mxu0 %v259
    %v2570 = vpop.f32.mrf.mxu0
    %v2571 = vadd.f32 %v2434, %v2570
    %2572 = vmatmul.f32.gmra.mxu0 %v264
    %v2573 = vpop.f32.mrf.mxu0
    %v2574 = vadd.f32 %v2437, %v2573
    %2575 = vmatmul.f32.gmra.mxu0 %v269
    %v2576 = vpop.f32.mrf.mxu0
    %v2577 = vadd.f32 %v2440, %v2576
    %2578 = vmatmul.f32.gmra.mxu0 %v274
    %v2579 = vpop.f32.mrf.mxu0
    %v2580 = vadd.f32 %v2443, %v2579
    %2581 = vmatmul.f32.gmra.mxu0 %v279
    %v2582 = vpop.f32.mrf.mxu0
    %v2583 = vadd.f32 %v2446, %v2582
    %2584 = vmatmul.f32.gmra.mxu0 %v284
    %v2585 = vpop.f32.mrf.mxu0
    %v2586 = vadd.f32 %v2449, %v2585
    %2587 = vmatmul.f32.gmra.mxu0 %v289
    %v2588 = vpop.f32.mrf.mxu0
    %v2589 = vadd.f32 %v2452, %v2588
    %2590 = vmatmul.f32.gmra.mxu0 %v294
    %v2591 = vpop.f32.mrf.mxu0
    %v2592 = vadd.f32 %v2455, %v2591
    %2593 = vmatmul.f32.gmra.mxu0 %v299
    %v2594 = vpop.f32.mrf.mxu0
    %v2595 = vadd.f32 %v2458, %v2594
    %2596 = vmatmul.f32.gmra.mxu0 %v304
    %v2597 = vpop.f32.mrf.mxu0
    %v2598 = vadd.f32 %v2461, %v2597
    %2599 = vmatmul.f32.gmra.mxu0 %v309
    %v2600 = vpop.f32.mrf.mxu0
    %v2601 = vadd.f32 %v2464, %v2600
    %2602 = vmatmul.f32.gmra.mxu0 %v314
    %v2603 = vpop.f32.mrf.mxu0
    %v2604 = vadd.f32 %v2467, %v2603
    %2605 = vmatmul.f32.gmra.mxu0 %v319
    %v2606 = vpop.f32.mrf.mxu0
    %v2607 = vadd.f32 %v2470, %v2606
    %2608 = vmatmul.f32.gmra.mxu0 %v324
    %v2609 = vpop.f32.mrf.mxu0
    %v2610 = vadd.f32 %v2473, %v2609
    %2611 = vmatmul.f32.gmra.mxu0 %v329
    %v2612 = vpop.f32.mrf.mxu0
    %v2613 = vadd.f32 %v2476, %v2612
    %2614 = vmatmul.f32.gmra.mxu0 %v334
    %v2615 = vpop.f32.mrf.mxu0
    %v2616 = vadd.f32 %v2479, %v2615
    %2617 = vmatmul.f32.gmra.mxu0 %v339
    %v2618 = vpop.f32.mrf.mxu0
    %v2619 = vadd.f32 %v2482, %v2618
    %2620 = vmatmul.f32.gmra.mxu0 %v344
    %v2621 = vpop.f32.mrf.mxu0
    %v2622 = vadd.f32 %v2485, %v2621
    %2623 = vmatmul.f32.gmra.mxu0 %v349
    %v2624 = vpop.f32.mrf.mxu0
    %v2625 = vadd.f32 %v2488, %v2624
    %2626 = vmatmul.f32.gmra.mxu0 %v354
    %v2627 = vpop.f32.mrf.mxu0
    %v2628 = vadd.f32 %v2491, %v2627
    %2629 = vmatmul.f32.gmra.mxu0 %v359
    %v2630 = vpop.f32.mrf.mxu0
    %v2631 = vadd.f32 %v2494, %v2630
    %2632 = vmatmul.f32.gmra.mxu0 %v364
    %v2633 = vpop.f32.mrf.mxu0
    %v2634 = vadd.f32 %v2497, %v2633
    %2635 = vmatmul.f32.gmra.mxu0 %v369
    %v2636 = vpop.f32.mrf.mxu0
    %v2637 = vadd.f32 %v2500, %v2636
    %2638 = vmatmul.f32.gmra.mxu0 %v374
    %v2639 = vpop.f32.mrf.mxu0
    %v2640 = vadd.f32 %v2503, %v2639
    %2641 = vmatmul.f32.gmra.mxu0 %v379
    %v2642 = vpop.f32.mrf.mxu0
    %v2643 = vadd.f32 %v2506, %v2642
    %2644 = vmatmul.f32.gmra.mxu0 %v384
    %v2645 = vpop.f32.mrf.mxu0
    %v2646 = vadd.f32 %v2509, %v2645
    %2647 = vmatmul.f32.gmra.mxu0 %v389
    %v2648 = vpop.f32.mrf.mxu0
    %v2649 = vadd.f32 %v2512, %v2648
    %2650 = vmatmul.f32.gmra.mxu0 %v394
    %v2651 = vpop.f32.mrf.mxu0
    %v2652 = vadd.f32 %v2515, %v2651
    %2653 = vmatmul.f32.gmra.mxu0 %v399
    %v2654 = vpop.f32.mrf.mxu0
    %v2655 = vadd.f32 %v2518, %v2654
    %2656 = vmatmul.f32.gmra.mxu0 %v404
    %v2657 = vpop.f32.mrf.mxu0
    %v2658 = vadd.f32 %v2521, %v2657
    %2659 = vmatmul.f32.gmra.mxu0 %v409
    %v2660 = vpop.f32.mrf.mxu0
    %v2661 = vadd.f32 %v2524, %v2660
    %2662 = vmatmul.f32.gmra.mxu0 %v414
    %v2663 = vpop.f32.mrf.mxu0
    %v2664 = vadd.f32 %v2527, %v2663
    %2665 = vmatmul.f32.gmra.mxu0 %v419
    %v2666 = vpop.f32.mrf.mxu0
    %v2667 = vadd.f32 %v2530, %v2666
    %2668 = vmatmul.f32.gmra.mxu0 %v424
    %v2669 = vpop.f32.mrf.mxu0
    %v2670 = vadd.f32 %v2533, %v2669
    %2671 = vmatmul.f32.gmra.mxu0 %v429
    %v2672 = vpop.f32.mrf.mxu0
    %v2673 = vadd.f32 %v2536, %v2672
    %2674 = vmatmul.f32.gmra.mxu0 %v434
    %v2675 = vpop.f32.mrf.mxu0
    %v2676 = vadd.f32 %v2539, %v2675
    %2677 = vmatmul.f32.gmra.mxu0 %v439
    %v2678 = vpop.f32.mrf.mxu0
    %v2679 = vadd.f32 %v2542, %v2678
    %2680 = vmatmul.f32.gmra.mxu0 %v444
    %v2681 = vpop.f32.mrf.mxu0
    %v2682 = vadd.f32 %v2545, %v2681
    %2683 = vmatmul.f32.gmra.mxu0 %v449
    %v2684 = vpop.f32.mrf.mxu0
    %v2685 = vadd.f32 %v2548, %v2684
    %2686 = vmatmul.f32.gmra.mxu0 %v454
    %v2687 = vpop.f32.mrf.mxu0
    %v2688 = vadd.f32 %v2551, %v2687
    %2689 = vdwg.mxu0
    %2690 = vmatpush.msra.mxu0 0.0
    %2691 = vmatpush.msra.mxu0 0.0
    %2692 = vmatpush.msra.mxu0 0.0
    %2693 = vmatpush.msra.mxu0 0.0
    %2694 = vmatpush.msra.mxu0 0.0
    %2695 = vmatpush.msra.mxu0 0.0
    %2696 = vmatpush.msra.mxu0 0.0
    %2697 = vmatpush.msra.mxu0 0.0
    %2698 = vmatpush.msra.mxu0 0.0
    %2699 = vmatpush.msra.mxu0 0.0
    %2700 = vmatpush.msra.mxu0 0.0
    %2701 = vmatpush.msra.mxu0 0.0
    %2702 = vmatpush.msra.mxu0 0.0
    %2703 = vmatpush.msra.mxu0 0.0
    %2704 = vmatpush.msra.mxu0 0.0
    %2705 = vmatpush.msra.mxu0 %v650
    %2706 = vmatmul.f32.gmra.mxu0 %v653
    %v2707 = vpop.f32.mrf.mxu0
    %v2708 = vadd.f32 %v2571, %v2707
    %2709 = vmatmul.f32.gmra.mxu0 %v656
    %v2710 = vpop.f32.mrf.mxu0
    %v2711 = vadd.f32 %v2574, %v2710
    %2712 = vmatmul.f32.gmra.mxu0 %v659
    %v2713 = vpop.f32.mrf.mxu0
    %v2714 = vadd.f32 %v2577, %v2713
    %2715 = vmatmul.f32.gmra.mxu0 %v662
    %v2716 = vpop.f32.mrf.mxu0
    %v2717 = vadd.f32 %v2580, %v2716
    %2718 = vmatmul.f32.gmra.mxu0 %v665
    %v2719 = vpop.f32.mrf.mxu0
    %v2720 = vadd.f32 %v2583, %v2719
    %2721 = vmatmul.f32.gmra.mxu0 %v668
    %v2722 = vpop.f32.mrf.mxu0
    %v2723 = vadd.f32 %v2586, %v2722
    %2724 = vmatmul.f32.gmra.mxu0 %v671
    %v2725 = vpop.f32.mrf.mxu0
    %v2726 = vadd.f32 %v2589, %v2725
    %2727 = vmatmul.f32.gmra.mxu0 %v674
    %v2728 = vpop.f32.mrf.mxu0
    %v2729 = vadd.f32 %v2592, %v2728
    %2730 = vmatmul.f32.gmra.mxu0 %v677
    %v2731 = vpop.f32.mrf.mxu0
    %v2732 = vadd.f32 %v2595, %v2731
    %2733 = vmatmul.f32.gmra.mxu0 %v680
    %v2734 = vpop.f32.mrf.mxu0
    %v2735 = vadd.f32 %v2598, %v2734
    %2736 = vmatmul.f32.gmra.mxu0 %v683
    %v2737 = vpop.f32.mrf.mxu0
    %v2738 = vadd.f32 %v2601, %v2737
    %2739 = vmatmul.f32.gmra.mxu0 %v686
    %v2740 = vpop.f32.mrf.mxu0
    %v2741 = vadd.f32 %v2604, %v2740
    %2742 = vmatmul.f32.gmra.mxu0 %v689
    %v2743 = vpop.f32.mrf.mxu0
    %v2744 = vadd.f32 %v2607, %v2743
    %2745 = vmatmul.f32.gmra.mxu0 %v692
    %v2746 = vpop.f32.mrf.mxu0
    %v2747 = vadd.f32 %v2610, %v2746
    %2748 = vmatmul.f32.gmra.mxu0 %v695
    %v2749 = vpop.f32.mrf.mxu0
    %v2750 = vadd.f32 %v2613, %v2749
    %2751 = vmatmul.f32.gmra.mxu0 %v698
    %v2752 = vpop.f32.mrf.mxu0
    %v2753 = vadd.f32 %v2616, %v2752
    %2754 = vmatmul.f32.gmra.mxu0 %v701
    %v2755 = vpop.f32.mrf.mxu0
    %v2756 = vadd.f32 %v2619, %v2755
    %2757 = vmatmul.f32.gmra.mxu0 %v704
    %v2758 = vpop.f32.mrf.mxu0
    %v2759 = vadd.f32 %v2622, %v2758
    %2760 = vmatmul.f32.gmra.mxu0 %v707
    %v2761 = vpop.f32.mrf.mxu0
    %v2762 = vadd.f32 %v2625, %v2761
    %2763 = vmatmul.f32.gmra.mxu0 %v710
    %v2764 = vpop.f32.mrf.mxu0
    %v2765 = vadd.f32 %v2628, %v2764
    %2766 = vmatmul.f32.gmra.mxu0 %v713
    %v2767 = vpop.f32.mrf.mxu0
    %v2768 = vadd.f32 %v2631, %v2767
    %2769 = vmatmul.f32.gmra.mxu0 %v716
    %v2770 = vpop.f32.mrf.mxu0
    %v2771 = vadd.f32 %v2634, %v2770
    %2772 = vmatmul.f32.gmra.mxu0 %v719
    %v2773 = vpop.f32.mrf.mxu0
    %v2774 = vadd.f32 %v2637, %v2773
    %2775 = vmatmul.f32.gmra.mxu0 %v722
    %v2776 = vpop.f32.mrf.mxu0
    %v2777 = vadd.f32 %v2640, %v2776
    %2778 = vmatmul.f32.gmra.mxu0 %v725
    %v2779 = vpop.f32.mrf.mxu0
    %v2780 = vadd.f32 %v2643, %v2779
    %2781 = vmatmul.f32.gmra.mxu0 %v728
    %v2782 = vpop.f32.mrf.mxu0
    %v2783 = vadd.f32 %v2646, %v2782
    %2784 = vmatmul.f32.gmra.mxu0 %v731
    %v2785 = vpop.f32.mrf.mxu0
    %v2786 = vadd.f32 %v2649, %v2785
    %2787 = vmatmul.f32.gmra.mxu0 %v734
    %v2788 = vpop.f32.mrf.mxu0
    %v2789 = vadd.f32 %v2652, %v2788
    %2790 = vmatmul.f32.gmra.mxu0 %v737
    %v2791 = vpop.f32.mrf.mxu0
    %v2792 = vadd.f32 %v2655, %v2791
    %2793 = vmatmul.f32.gmra.mxu0 %v740
    %v2794 = vpop.f32.mrf.mxu0
    %v2795 = vadd.f32 %v2658, %v2794
    %2796 = vmatmul.f32.gmra.mxu0 %v743
    %v2797 = vpop.f32.mrf.mxu0
    %v2798 = vadd.f32 %v2661, %v2797
    %2799 = vmatmul.f32.gmra.mxu0 %v746
    %v2800 = vpop.f32.mrf.mxu0
    %v2801 = vadd.f32 %v2664, %v2800
    %2802 = vmatmul.f32.gmra.mxu0 %v749
    %v2803 = vpop.f32.mrf.mxu0
    %v2804 = vadd.f32 %v2667, %v2803
    %2805 = vmatmul.f32.gmra.mxu0 %v752
    %v2806 = vpop.f32.mrf.mxu0
    %v2807 = vadd.f32 %v2670, %v2806
    %2808 = vmatmul.f32.gmra.mxu0 %v755
    %v2809 = vpop.f32.mrf.mxu0
    %v2810 = vadd.f32 %v2673, %v2809
    %2811 = vmatmul.f32.gmra.mxu0 %v758
    %v2812 = vpop.f32.mrf.mxu0
    %v2813 = vadd.f32 %v2676, %v2812
    %2814 = vmatmul.f32.gmra.mxu0 %v761
    %v2815 = vpop.f32.mrf.mxu0
    %v2816 = vadd.f32 %v2679, %v2815
    %2817 = vmatmul.f32.gmra.mxu0 %v764
    %v2818 = vpop.f32.mrf.mxu0
    %v2819 = vadd.f32 %v2682, %v2818
    %2820 = vmatmul.f32.gmra.mxu0 %v767
    %v2821 = vpop.f32.mrf.mxu0
    %v2822 = vadd.f32 %v2685, %v2821
    %2823 = vmatmul.f32.gmra.mxu0 %v770
    %v2824 = vpop.f32.mrf.mxu0
    %v2825 = vadd.f32 %v2688, %v2824
    %2826 = vdwg.mxu0
    %v2827 = vadd.f32 %v136, %v1338
    %v2828 = vadd.f32 %v137, %v2023
    %v2829 = vadd.f32 %v138, %v2708
    %v2830 = vadd.f32 %v139, %v1341
    %v2831 = vadd.f32 %v140, %v2026
    %v2832 = vadd.f32 %v141, %v2711
    %v2833 = vadd.f32 %v142, %v1344
    %v2834 = vadd.f32 %v143, %v2029
    %v2835 = vadd.f32 %v144, %v2714
    %v2836 = vadd.f32 %v145, %v1347
    %v2837 = vadd.f32 %v146, %v2032
    %v2838 = vadd.f32 %v147, %v2717
    %v2839 = vadd.f32 %v148, %v1350
    %v2840 = vadd.f32 %v149, %v2035
    %v2841 = vadd.f32 %v150, %v2720
    %v2842 = vadd.f32 %v151, %v1353
    %v2843 = vadd.f32 %v152, %v2038
    %v2844 = vadd.f32 %v153, %v2723
    %v2845 = vadd.f32 %v154, %v1356
    %v2846 = vadd.f32 %v155, %v2041
    %v2847 = vadd.f32 %v156, %v2726
    %v2848 = vadd.f32 %v157, %v1359
    %v2849 = vadd.f32 %v158, %v2044
    %v2850 = vadd.f32 %v159, %v2729
    %v2851 = vadd.f32 %v160, %v1362
    %v2852 = vadd.f32 %v161, %v2047
    %v2853 = vadd.f32 %v162, %v2732
    %v2854 = vadd.f32 %v163, %v1365
    %v2855 = vadd.f32 %v164, %v2050
    %v2856 = vadd.f32 %v165, %v2735
    %v2857 = vadd.f32 %v166, %v1368
    %v2858 = vadd.f32 %v167, %v2053
    %v2859 = vadd.f32 %v168, %v2738
    %v2860 = vadd.f32 %v169, %v1371
    %v2861 = vadd.f32 %v170, %v2056
    %v2862 = vadd.f32 %v171, %v2741
    %v2863 = vadd.f32 %v172, %v1374
    %v2864 = vadd.f32 %v173, %v2059
    %v2865 = vadd.f32 %v174, %v2744
    %v2866 = vadd.f32 %v175, %v1377
    %v2867 = vadd.f32 %v176, %v2062
    %v2868 = vadd.f32 %v177, %v2747
    %v2869 = vadd.f32 %v178, %v1380
    %v2870 = vadd.f32 %v179, %v2065
    %v2871 = vadd.f32 %v180, %v2750
    %v2872 = vadd.f32 %v181, %v1383
    %v2873 = vadd.f32 %v182, %v2068
    %v2874 = vadd.f32 %v183, %v2753
    %v2875 = vadd.f32 %v184, %v1386
    %v2876 = vadd.f32 %v185, %v2071
    %v2877 = vadd.f32 %v186, %v2756
    %v2878 = vadd.f32 %v187, %v1389
    %v2879 = vadd.f32 %v188, %v2074
    %v2880 = vadd.f32 %v189, %v2759
    %v2881 = vadd.f32 %v190, %v1392
    %v2882 = vadd.f32 %v191, %v2077
    %v2883 = vadd.f32 %v192, %v2762
    %v2884 = vadd.f32 %v193, %v1395
    %v2885 = vadd.f32 %v194, %v2080
    %v2886 = vadd.f32 %v195, %v2765
    %v2887 = vadd.f32 %v196, %v1398
    %v2888 = vadd.f32 %v197, %v2083
    %v2889 = vadd.f32 %v198, %v2768
    %v2890 = vadd.f32 %v199, %v1401
    %v2891 = vadd.f32 %v200, %v2086
    %v2892 = vadd.f32 %v201, %v2771
    %v2893 = vadd.f32 %v202, %v1404
    %v2894 = vadd.f32 %v203, %v2089
    %v2895 = vadd.f32 %v204, %v2774
    %v2896 = vadd.f32 %v205, %v1407
    %v2897 = vadd.f32 %v206, %v2092
    %v2898 = vadd.f32 %v207, %v2777
    %v2899 = vadd.f32 %v208, %v1410
    %v2900 = vadd.f32 %v209, %v2095
    %v2901 = vadd.f32 %v210, %v2780
    %v2902 = vadd.f32 %v211, %v1413
    %v2903 = vadd.f32 %v212, %v2098
    %v2904 = vadd.f32 %v213, %v2783
    %v2905 = vadd.f32 %v214, %v1416
    %v2906 = vadd.f32 %v215, %v2101
    %v2907 = vadd.f32 %v216, %v2786
    %v2908 = vadd.f32 %v217, %v1419
    %v2909 = vadd.f32 %v218, %v2104
    %v2910 = vadd.f32 %v219, %v2789
    %v2911 = vadd.f32 %v220, %v1422
    %v2912 = vadd.f32 %v221, %v2107
    %v2913 = vadd.f32 %v222, %v2792
    %v2914 = vadd.f32 %v223, %v1425
    %v2915 = vadd.f32 %v224, %v2110
    %v2916 = vadd.f32 %v225, %v2795
    %v2917 = vadd.f32 %v226, %v1428
    %v2918 = vadd.f32 %v227, %v2113
    %v2919 = vadd.f32 %v228, %v2798
    %v2920 = vadd.f32 %v229, %v1431
    %v2921 = vadd.f32 %v230, %v2116
    %v2922 = vadd.f32 %v231, %v2801
    %v2923 = vadd.f32 %v232, %v1434
    %v2924 = vadd.f32 %v233, %v2119
    %v2925 = vadd.f32 %v234, %v2804
    %v2926 = vadd.f32 %v235, %v1437
    %v2927 = vadd.f32 %v236, %v2122
    %v2928 = vadd.f32 %v237, %v2807
    %v2929 = vadd.f32 %v238, %v1440
    %v2930 = vadd.f32 %v239, %v2125
    %v2931 = vadd.f32 %v240, %v2810
    %v2932 = vadd.f32 %v241, %v1443
    %v2933 = vadd.f32 %v242, %v2128
    %v2934 = vadd.f32 %v243, %v2813
    %v2935 = vadd.f32 %v244, %v1446
    %v2936 = vadd.f32 %v245, %v2131
    %v2937 = vadd.f32 %v246, %v2816
    %v2938 = vadd.f32 %v247, %v1449
    %v2939 = vadd.f32 %v248, %v2134
    %v2940 = vadd.f32 %v249, %v2819
    %v2941 = vadd.f32 %v250, %v1452
    %v2942 = vadd.f32 %v251, %v2137
    %v2943 = vadd.f32 %v252, %v2822
    %v2944 = vadd.f32 %v253, %v1455
    %v2945 = vadd.f32 %v254, %v2140
    %v2946 = vadd.f32 %v255, %v2825
    %2947 = vst [vmem:[#allocation2] sm:$0xff] %v2827
    %2948 = vst [vmem:[#allocation2 + $0x8] sm:$0xff] %v2828
    %2949 = vst [vmem:[#allocation2 + $0x10] sm:$0xff] %v2829
    %2950 = vst [vmem:[#allocation2 + $0x18] sm:$0xff] %v2830
    %2951 = vst [vmem:[#allocation2 + $0x20] sm:$0xff] %v2831
    %2952 = vst [vmem:[#allocation2 + $0x28] sm:$0xff] %v2832
    %2953 = vst [vmem:[#allocation2 + $0x30] sm:$0xff] %v2833
    %2954 = vst [vmem:[#allocation2 + $0x38] sm:$0xff] %v2834
    %2955 = vst [vmem:[#allocation2 + $0x40] sm:$0xff] %v2835
    %2956 = vst [vmem:[#allocation2 + $0x48] sm:$0xff] %v2836
    %2957 = vst [vmem:[#allocation2 + $0x50] sm:$0xff] %v2837
    %2958 = vst [vmem:[#allocation2 + $0x58] sm:$0xff] %v2838
    %2959 = vst [vmem:[#allocation2 + $0x60] sm:$0xff] %v2839
    %2960 = vst [vmem:[#allocation2 + $0x68] sm:$0xff] %v2840
    %2961 = vst [vmem:[#allocation2 + $0x70] sm:$0xff] %v2841
    %2962 = vst [vmem:[#allocation2 + $0x78] sm:$0xff] %v2842
    %2963 = vst [vmem:[#allocation2 + $0x80] sm:$0xff] %v2843
    %2964 = vst [vmem:[#allocation2 + $0x88] sm:$0xff] %v2844
    %2965 = vst [vmem:[#allocation2 + $0x90] sm:$0xff] %v2845
    %2966 = vst [vmem:[#allocation2 + $0x98] sm:$0xff] %v2846
    %2967 = vst [vmem:[#allocation2 + $0xa0] sm:$0xff] %v2847
    %2968 = vst [vmem:[#allocation2 + $0xa8] sm:$0xff] %v2848
    %2969 = vst [vmem:[#allocation2 + $0xb0] sm:$0xff] %v2849
    %2970 = vst [vmem:[#allocation2 + $0xb8] sm:$0xff] %v2850
    %2971 = vst [vmem:[#allocation2 + $0xc0] sm:$0xff] %v2851
    %2972 = vst [vmem:[#allocation2 + $0xc8] sm:$0xff] %v2852
    %2973 = vst [vmem:[#allocation2 + $0xd0] sm:$0xff] %v2853
    %2974 = vst [vmem:[#allocation2 + $0xd8] sm:$0xff] %v2854
    %2975 = vst [vmem:[#allocation2 + $0xe0] sm:$0xff] %v2855
    %2976 = vst [vmem:[#allocation2 + $0xe8] sm:$0xff] %v2856
    %2977 = vst [vmem:[#allocation2 + $0xf0] sm:$0xff] %v2857
    %2978 = vst [vmem:[#allocation2 + $0xf8] sm:$0xff] %v2858
    %2979 = vst [vmem:[#allocation2 + $0x100] sm:$0xff] %v2859
    %2980 = vst [vmem:[#allocation2 + $0x108] sm:$0xff] %v2860
    %2981 = vst [vmem:[#allocation2 + $0x110] sm:$0xff] %v2861
    %2982 = vst [vmem:[#allocation2 + $0x118] sm:$0xff] %v2862
    %2983 = vst [vmem:[#allocation2 + $0x120] sm:$0xff] %v2863
    %2984 = vst [vmem:[#allocation2 + $0x128] sm:$0xff] %v2864
    %2985 = vst [vmem:[#allocation2 + $0x130] sm:$0xff] %v2865
    %2986 = vst [vmem:[#allocation2 + $0x138] sm:$0xff] %v2866
    %2987 = vst [vmem:[#allocation2 + $0x140] sm:$0xff] %v2867
    %2988 = vst [vmem:[#allocation2 + $0x148] sm:$0xff] %v2868
    %2989 = vst [vmem:[#allocation2 + $0x150] sm:$0xff] %v2869
    %2990 = vst [vmem:[#allocation2 + $0x158] sm:$0xff] %v2870
    %2991 = vst [vmem:[#allocation2 + $0x160] sm:$0xff] %v2871
    %2992 = vst [vmem:[#allocation2 + $0x168] sm:$0xff] %v2872
    %2993 = vst [vmem:[#allocation2 + $0x170] sm:$0xff] %v2873
    %2994 = vst [vmem:[#allocation2 + $0x178] sm:$0xff] %v2874
    %2995 = vst [vmem:[#allocation2 + $0x180] sm:$0xff] %v2875
    %2996 = vst [vmem:[#allocation2 + $0x188] sm:$0xff] %v2876
    %2997 = vst [vmem:[#allocation2 + $0x190] sm:$0xff] %v2877
    %2998 = vst [vmem:[#allocation2 + $0x198] sm:$0xff] %v2878
    %2999 = vst [vmem:[#allocation2 + $0x1a0] sm:$0xff] %v2879
    %3000 = vst [vmem:[#allocation2 + $0x1a8] sm:$0xff] %v2880
    %3001 = vst [vmem:[#allocation2 + $0x1b0] sm:$0xff] %v2881
    %3002 = vst [vmem:[#allocation2 + $0x1b8] sm:$0xff] %v2882
    %3003 = vst [vmem:[#allocation2 + $0x1c0] sm:$0xff] %v2883
    %3004 = vst [vmem:[#allocation2 + $0x1c8] sm:$0xff] %v2884
    %3005 = vst [vmem:[#allocation2 + $0x1d0] sm:$0xff] %v2885
    %3006 = vst [vmem:[#allocation2 + $0x1d8] sm:$0xff] %v2886
    %3007 = vst [vmem:[#allocation2 + $0x1e0] sm:$0xff] %v2887
    %3008 = vst [vmem:[#allocation2 + $0x1e8] sm:$0xff] %v2888
    %3009 = vst [vmem:[#allocation2 + $0x1f0] sm:$0xff] %v2889
    %3010 = vst [vmem:[#allocation2 + $0x1f8] sm:$0xff] %v2890
    %3011 = vst [vmem:[#allocation2 + $0x200] sm:$0xff] %v2891
    %3012 = vst [vmem:[#allocation2 + $0x208] sm:$0xff] %v2892
    %3013 = vst [vmem:[#allocation2 + $0x210] sm:$0xff] %v2893
    %3014 = vst [vmem:[#allocation2 + $0x218] sm:$0xff] %v2894
    %3015 = vst [vmem:[#allocation2 + $0x220] sm:$0xff] %v2895
    %3016 = vst [vmem:[#allocation2 + $0x228] sm:$0xff] %v2896
    %3017 = vst [vmem:[#allocation2 + $0x230] sm:$0xff] %v2897
    %3018 = vst [vmem:[#allocation2 + $0x238] sm:$0xff] %v2898
    %3019 = vst [vmem:[#allocation2 + $0x240] sm:$0xff] %v2899
    %3020 = vst [vmem:[#allocation2 + $0x248] sm:$0xff] %v2900
    %3021 = vst [vmem:[#allocation2 + $0x250] sm:$0xff] %v2901
    %3022 = vst [vmem:[#allocation2 + $0x258] sm:$0xff] %v2902
    %3023 = vst [vmem:[#allocation2 + $0x260] sm:$0xff] %v2903
    %3024 = vst [vmem:[#allocation2 + $0x268] sm:$0xff] %v2904
    %3025 = vst [vmem:[#allocation2 + $0x270] sm:$0xff] %v2905
    %3026 = vst [vmem:[#allocation2 + $0x278] sm:$0xff] %v2906
    %3027 = vst [vmem:[#allocation2 + $0x280] sm:$0xff] %v2907
    %3028 = vst [vmem:[#allocation2 + $0x288] sm:$0xff] %v2908
    %3029 = vst [vmem:[#allocation2 + $0x290] sm:$0xff] %v2909
    %3030 = vst [vmem:[#allocation2 + $0x298] sm:$0xff] %v2910
    %3031 = vst [vmem:[#allocation2 + $0x2a0] sm:$0xff] %v2911
    %3032 = vst [vmem:[#allocation2 + $0x2a8] sm:$0xff] %v2912
    %3033 = vst [vmem:[#allocation2 + $0x2b0] sm:$0xff] %v2913
    %3034 = vst [vmem:[#allocation2 + $0x2b8] sm:$0xff] %v2914
    %3035 = vst [vmem:[#allocation2 + $0x2c0] sm:$0xff] %v2915
    %3036 = vst [vmem:[#allocation2 + $0x2c8] sm:$0xff] %v2916
    %3037 = vst [vmem:[#allocation2 + $0x2d0] sm:$0xff] %v2917
    %3038 = vst [vmem:[#allocation2 + $0x2d8] sm:$0xff] %v2918
    %3039 = vst [vmem:[#allocation2 + $0x2e0] sm:$0xff] %v2919
    %3040 = vst [vmem:[#allocation2 + $0x2e8] sm:$0xff] %v2920
    %3041 = vst [vmem:[#allocation2 + $0x2f0] sm:$0xff] %v2921
    %3042 = vst [vmem:[#allocation2 + $0x2f8] sm:$0xff] %v2922
    %3043 = vst [vmem:[#allocation2 + $0x300] sm:$0xff] %v2923
    %3044 = vst [vmem:[#allocation2 + $0x308] sm:$0xff] %v2924
    %3045 = vst [vmem:[#allocation2 + $0x310] sm:$0xff] %v2925
    %3046 = vst [vmem:[#allocation2 + $0x318] sm:$0xff] %v2926
    %3047 = vst [vmem:[#allocation2 + $0x320] sm:$0xff] %v2927
    %3048 = vst [vmem:[#allocation2 + $0x328] sm:$0xff] %v2928
    %3049 = vst [vmem:[#allocation2 + $0x330] sm:$0xff] %v2929
    %3050 = vst [vmem:[#allocation2 + $0x338] sm:$0xff] %v2930
    %3051 = vst [vmem:[#allocation2 + $0x340] sm:$0xff] %v2931
    %3052 = vst [vmem:[#allocation2 + $0x348] sm:$0xff] %v2932
    %3053 = vst [vmem:[#allocation2 + $0x350] sm:$0xff] %v2933
    %3054 = vst [vmem:[#allocation2 + $0x358] sm:$0xff] %v2934
    %3055 = vst [vmem:[#allocation2 + $0x360] sm:$0xff] %v2935
    %3056 = vst [vmem:[#allocation2 + $0x368] sm:$0xff] %v2936
    %3057 = vst [vmem:[#allocation2 + $0x370] sm:$0xff] %v2937
    %3058 = vst [vmem:[#allocation2 + $0x378] sm:$0xff] %v2938
    %3059 = vst [vmem:[#allocation2 + $0x380] sm:$0xff] %v2939
    %3060 = vst [vmem:[#allocation2 + $0x388] sm:$0xff] %v2940
    %3061 = vst [vmem:[#allocation2 + $0x390] sm:$0xff] %v2941
    %3062 = vst [vmem:[#allocation2 + $0x398] sm:$0xff] %v2942
    %3063 = vst [vmem:[#allocation2 + $0x3a0] sm:$0xff] %v2943
    %3064 = vst [vmem:[#allocation2 + $0x3a8] sm:$0xff] %v2944
    %3065 = vst [vmem:[#allocation2 + $0x3b0] sm:$0xff] %v2945
    %3066 = vst [vmem:[#allocation2 + $0x3b8] sm:$0xff] %v2946
    // Predicated region
    $region14: #{_pallas_matmul.1} parent=1 // pred_check
      _
    $region15: #{_pallas_matmul.1} parent=1 // pred_check_branch
      %3068 = sbr.rel (0) target = $region17
    $region16: #{_pallas_matmul.1} parent=1 // pred_region
      %3070 = vsyncadd [#allocation3], 0
      %s3071 = sshll.u32 [#allocation2], 4
      %s3072 = int_to_ptr.vmem [resolvable:$true] %s3071
      %s3073 = sshll.u32 %s2, 4
      %s3074 = int_to_ptr.hbm [resolvable:$true] %s3073
      %3079 = dma.vmem_to_hbm [thread:$0]  %s3072, 15360, %s3074, [#allocation3], 384, 384, 24
    $region17: #{_pallas_matmul.1} parent=1 // pred_fallthru
      _
    // Predicated region
    $region18: #{_pallas_matmul.1} parent=1 // pred_check
      _
    $region19: #{_pallas_matmul.1} parent=1 // pred_check_branch
      %3081 = sbr.rel (0) target = $region21
    $region20: #{_pallas_matmul.1} parent=1 // pred_region
      %3083 = dma.done [#allocation3], 15360
    $region21: #{_pallas_matmul.1} parent=1 // pred_fallthru
      _
    %3084 = vsyncpa [#allocation3], 1

</llo_original>
